<compile_context>
chip_gen: v7x
topology: tpu7x:2x2x1
jax: 0.10.0
libtpu: 0.0.40
codegen_flags: <defaults>
</compile_context>

<pallas_src>
import jax
import jax.numpy as jnp
from jax.experimental import pallas as pl
from jax.experimental.pallas import tpu as pltpu

H = 32           # hidden width (Uxy_sizes = Vxy_sizes = [32, 32])
H2 = 2 * H       # U and V nets stacked along sublanes
N = 256          # number of collocation points
PKR = H2 + 8     # packed-param rows (72)
PKC = H2 + 4     # packed-param cols (68)

PI = float(jnp.pi)
LMBD, MU, Q = 1.0, 0.5, 4.0          # constants local to pde_function
C11 = 2.0 * MU + LMBD
C12 = LMBD
C33 = 2.0 * MU
HC33 = 0.5 * C33                      # C33 * 0.5 folded

# Forcing-term constants folded at trace time:
#   Fx = A1*(cos(2πx)·sin(πy)) + A2*(y^3·cos(πx))
#   Fy = B1*(cos(πy)·sin(2πx)) + (B2*y^2 + B3*y^4)*sin(πx)
A1 = -(4.0 * LMBD + 9.0 * MU) * PI * PI
A2 = (LMBD + MU) * Q * PI
B1 = -2.0 * (LMBD + MU) * PI * PI
B2 = 3.0 * Q * LMBD + 6.0 * Q * MU
B3 = -MU * Q * PI * PI / 4.0
TOP2_C = (LMBD + 2.0 * MU) * Q


# ----------------------------------------------------------------------------
# kernel
# ----------------------------------------------------------------------------
def pinn_kernel(xy_ref, pk_ref, out_ref, stk_ref):
    T = xy_ref.shape[1]
    xv = xy_ref[0:1, :]                       # [1, T]  points in lanes
    yv = xy_ref[1:2, :]                       # [1, T]

    pk = pk_ref[...]                          # [72, 68]
    w2bd = pk[0:H2, 0:H2]                     # [64, 64] block-diag hidden W^T
    w1x = pk[0:H2, H2:H2 + 1]                 # [64, 1]  dz1/dx
    w1y = pk[0:H2, H2 + 1:H2 + 2]             # [64, 1]  dz1/dy
    b1 = pk[0:H2, H2 + 2:H2 + 3]              # [64, 1]
    b2 = pk[0:H2, H2 + 3:H2 + 4]              # [64, 1]
    wf = pk[H2:H2 + 8, 0:H2]                  # [8, 64]  rows 0/1 = wf_U/wf_V
    bf = pk[H2:H2 + 8, H2:H2 + 1]             # [8, 1]   rows 0/1 = bf_U/bf_V

    # ---- layer 1 (input layer, both nets stacked): z1 linear in (x, y) ----
    z1 = w1x * xv + w1y * yv + b1             # [64, T]
    a = jnp.tanh(z1)
    d1 = 1.0 - a * a
    d2 = -2.0 * a * d1
    stk_ref[:, 0 * T:1 * T] = a               # value
    stk_ref[:, 1 * T:2 * T] = d1 * w1x        # d/dx
    stk_ref[:, 2 * T:3 * T] = d1 * w1y        # d/dy
    stk_ref[:, 3 * T:4 * T] = d2 * (w1x * w1x)    # d2/dx2
    stk_ref[:, 4 * T:5 * T] = d2 * (w1x * w1y)    # d2/dxdy
    stk_ref[:, 5 * T:6 * T] = d2 * (w1y * w1y)    # d2/dy2

    # ---- hidden layer: ONE block-diagonal matmul over all 6 streams ----
    zs = jnp.dot(w2bd, stk_ref[...], preferred_element_type=jnp.float32)
    z = zs[:, 0 * T:1 * T] + b2
    zx = zs[:, 1 * T:2 * T]
    zy = zs[:, 2 * T:3 * T]
    zxx = zs[:, 3 * T:4 * T]
    zxy = zs[:, 4 * T:5 * T]
    zyy = zs[:, 5 * T:6 * T]
    a = jnp.tanh(z)
    d1 = 1.0 - a * a
    d2 = -2.0 * a * d1
    stk_ref[:, 0 * T:1 * T] = a
    stk_ref[:, 1 * T:2 * T] = d1 * zx
    stk_ref[:, 2 * T:3 * T] = d1 * zy
    stk_ref[:, 3 * T:4 * T] = d2 * zx * zx + d1 * zxx
    stk_ref[:, 4 * T:5 * T] = d2 * zx * zy + d1 * zxy
    stk_ref[:, 5 * T:6 * T] = d2 * zy * zy + d1 * zyy

    # ---- final layer (H -> 1) on the MXU: [8,64] @ [64,6T]; rows 0/1=U/V ----
    zf = jnp.dot(wf, stk_ref[...], preferred_element_type=jnp.float32)
    z = zf[:, 0 * T:1 * T] + bf               # [8, T] (rows 2-7 stay 0)
    zx = zf[:, 1 * T:2 * T]
    zy = zf[:, 2 * T:3 * T]
    zxx = zf[:, 3 * T:4 * T]
    zxy = zf[:, 4 * T:5 * T]
    zyy = zf[:, 5 * T:6 * T]
    a = jnp.tanh(z)
    d1 = 1.0 - a * a
    d2 = -2.0 * a * d1
    vx = d1 * zx
    vy = d1 * zy
    vxx = d2 * zx * zx + d1 * zxx
    vxy = d2 * zx * zy + d1 * zxy
    vyy = d2 * zy * zy + d1 * zyy

    U, V = a[0:1, :], a[1:2, :]
    Ux, Vx = vx[0:1, :], vx[1:2, :]
    Uy, Vy = vy[0:1, :], vy[1:2, :]
    Uxx, Vxx = vxx[0:1, :], vxx[1:2, :]
    Uxy, Vxy = vxy[0:1, :], vxy[1:2, :]
    Uyy, Vyy = vyy[0:1, :], vyy[1:2, :]

    # ---- PDE residuals / stresses / boundary conditions ----
    pi = jnp.float32(PI)
    spx = jnp.sin(pi * xv)
    cpx = jnp.cos(pi * xv)
    spy = jnp.sin(pi * yv)
    cpy = jnp.cos(pi * yv)
    s2px = jnp.sin(2.0 * pi * xv)
    c2px = jnp.cos(2.0 * pi * xv)
    y2 = yv * yv

    Fx = A1 * (c2px * spy) + A2 * (y2 * yv * cpx)
    Fy = B1 * (cpy * s2px) + (B2 * y2 + B3 * (y2 * y2)) * spx

    # Strains / stresses (note: Exy is the *product* form, as in the source).
    Sxx = C11 * Ux + C12 * Vy
    Syy = C11 * Vy + C12 * Ux
    Sxy = HC33 * (Uy * Vx)

    # Analytic second-order derivatives of the stresses.
    Lx = (C11 * Uxx + C12 * Vxy) + HC33 * (Uyy * Vx + Uy * Vxy) - Fx
    Ly = HC33 * (Uxy * Vx + Uy * Vxx) + (C11 * Vyy + C12 * Uxy) - Fy

    zero = jnp.zeros_like(U)
    left = xv == 0.0
    right = xv == 1.0
    bot = yv == 0.0
    top = yv == 1.0

    out_ref[0:1, :] = Lx
    out_ref[1:2, :] = Ly
    out_ref[2:3, :] = Sxx
    out_ref[3:4, :] = Syy
    out_ref[4:5, :] = Sxy
    out_ref[5:6, :] = jnp.where(left, V, zero)
    out_ref[6:7, :] = jnp.where(left, Sxx, zero)
    out_ref[7:8, :] = jnp.where(right, V, zero)
    out_ref[8:9, :] = jnp.where(right, Sxx, zero)
    out_ref[9:10, :] = jnp.where(bot, U, zero)
    out_ref[10:11, :] = jnp.where(bot, V, zero)
    out_ref[11:12, :] = jnp.where(top, U, zero)
    out_ref[12:13, :] = jnp.where(top, Syy - TOP2_C * spx, zero)


# ----------------------------------------------------------------------------
# parameter packing (do this ONCE per parameter update, not per call)
# ----------------------------------------------------------------------------
def pack_params(u_params, v_params):
    """Pack both nets into a single (72, 68) f32 slab (one DMA).

    rows 0:64, cols 0:64   : block-diagonal hidden W^T  [[W2u^T, 0], [0, W2v^T]]
    rows 0:64, col  64..67 : w1[0,:] (dz/dx), w1[1,:] (dz/dy), b1, b2  (U then V)
    rows 64:72, cols 0:64  : final-layer weights; row 64 = [wf_U, 0], row 65 = [0, wf_V]
    rows 64/65, col 64     : final-layer biases bf_U, bf_V
    """
    w1u, b1u, w2u, b2u, wfu, bfu = u_params
    w1v, b1v, w2v, b2v, wfv, bfv = v_params
    pk = jnp.zeros((PKR, PKC), jnp.float32)
    pk = pk.at[0:H, 0:H].set(w2u.T)
    pk = pk.at[H:H2, H:H2].set(w2v.T)
    pk = pk.at[0:H, H2].set(w1u[0, :])
    pk = pk.at[H:H2, H2].set(w1v[0, :])
    pk = pk.at[0:H, H2 + 1].set(w1u[1, :])
    pk = pk.at[H:H2, H2 + 1].set(w1v[1, :])
    pk = pk.at[0:H, H2 + 2].set(b1u[0])
    pk = pk.at[H:H2, H2 + 2].set(b1v[0])
    pk = pk.at[0:H, H2 + 3].set(b2u[0])
    pk = pk.at[H:H2, H2 + 3].set(b2v[0])
    pk = pk.at[H2, 0:H].set(wfu[:, 0])
    pk = pk.at[H2 + 1, H:H2].set(wfv[:, 0])
    pk = pk.at[H2, H2].set(bfu[0, 0])
    pk = pk.at[H2 + 1, H2].set(bfv[0, 0])
    return pk


# ----------------------------------------------------------------------------
# wrapper
# ----------------------------------------------------------------------------
def pinn_forward_packed(xy, pk, tile=None):
    """Fast path: xy (2, N) lane-dense, pk (72, 68). Returns a (13, N) slab."""
    n = xy.shape[1]
    tile = n if tile is None else tile           # grid=(1,) for small N
    assert n % tile == 0 and tile % 128 == 0
    return pl.pallas_call(
        pinn_kernel,
        out_shape=jax.ShapeDtypeStruct((13, n), jnp.float32),
        grid_spec=pltpu.PrefetchScalarGridSpec(
            num_scalar_prefetch=0,
            grid=(n // tile,),
            in_specs=[pl.BlockSpec((2, tile), lambda i: (0, i)),
                      pl.BlockSpec((PKR, PKC), lambda i: (0, 0))],
            out_specs=pl.BlockSpec((13, tile), lambda i: (0, i)),
            scratch_shapes=[pltpu.VMEM((H2, 6 * tile), jnp.float32)]),
        compiler_params=pltpu.CompilerParams(
            dimension_semantics=("parallel",)),
    )(xy, pk)


def pinn_forward(x, y, u_params, v_params, tile=None):
    """Convenience wrapper returning the 13-tuple (matches PINN.forward)."""
    xy = jnp.stack([x, y], axis=0).astype(jnp.float32)   # (2, N) lane-dense
    pk = pack_params(u_params, v_params)                  # cache this in real use
    out = pinn_forward_packed(xy, pk, tile=tile)          # (13, N)
    return tuple(out[i] for i in range(13))


# ----------------------------------------------------------------------------
# deterministic parameter init (Functional: Linear(2,H) -> Linear(H,H) -> Linear(H,1))
# weights stored transposed for row-vector matmuls: W [in, out]
# ----------------------------------------------------------------------------
def init_net(key, in_dim, h):
    ks = jax.random.split(key, 6)
    s = 0.5
    w1 = jax.random.normal(ks[0], (in_dim, h), jnp.float32) * s
    b1 = jax.random.normal(ks[1], (1, h), jnp.float32) * s
    w2 = jax.random.normal(ks[2], (h, h), jnp.float32) * (s / jnp.sqrt(h))
    b2 = jax.random.normal(ks[3], (1, h), jnp.float32) * s
    wf = jax.random.normal(ks[4], (h, 1), jnp.float32) * (s / jnp.sqrt(h))
    bf = jax.random.normal(ks[5], (1, 1), jnp.float32) * s
    return (w1, b1, w2, b2, wf, bf)


# ----------------------------------------------------------------------------
# pure-JAX reference (uses jax autodiff for the derivatives) for validation
# ----------------------------------------------------------------------------
def _mlp_scalar(params, xy):
    w1, b1, w2, b2, wf, bf = params
    h = jnp.tanh(xy @ w1 + b1[0])
    h = jnp.tanh(h @ w2 + b2[0])
    return jnp.tanh(h @ wf + bf[0])[0]


def ref_forward(x, y, u_params, v_params):
    xy = jnp.stack([x, y], axis=1)

    def derivs(params):
        f = lambda p: _mlp_scalar(params, p)
        val = jax.vmap(f)(xy)
        g = jax.vmap(jax.grad(f))(xy)
        Hm = jax.vmap(jax.hessian(f))(xy)
        return val, g[:, 0], g[:, 1], Hm[:, 0, 0], Hm[:, 0, 1], Hm[:, 1, 1]

    U, Ux, Uy, Uxx, Uxy, Uyy = derivs(u_params)
    V, Vx, Vy, Vxx, Vxy, Vyy = derivs(v_params)

    pi = jnp.float32(PI)
    sin, cos = jnp.sin, jnp.cos
    Fx = (-LMBD * (4 * pi**2 * cos(2 * pi * x) * sin(pi * y)
                   - Q * y**3 * pi * cos(pi * x))
          - MU * (pi**2 * cos(2 * pi * x) * sin(pi * y)
                  - Q * y**3 * pi * cos(pi * x))
          - 8 * MU * pi**2 * cos(2 * pi * x) * sin(pi * y))
    Fy = (LMBD * (3 * Q * y**2 * sin(pi * x)
                  - 2 * pi**2 * cos(pi * y) * sin(2 * pi * x))
          - MU * (2 * pi**2 * cos(pi * y) * sin(2 * pi * x)
                  + Q * y**4 * pi**2 * sin(pi * x) / 4)
          + 6 * Q * MU * y**2 * sin(pi * x))

    Sxx = C11 * Ux + C12 * Vy
    Syy = C11 * Vy + C12 * Ux
    Sxy = C33 * 0.5 * Uy * Vx
    Sxx_x = C11 * Uxx + C12 * Vxy
    Sxy_y = C33 * 0.5 * (Uyy * Vx + Uy * Vxy)
    Sxy_x = C33 * 0.5 * (Uxy * Vx + Uy * Vxx)
    Syy_y = C11 * Vyy + C12 * Uxy
    Lx = Sxx_x + Sxy_y - Fx
    Ly = Sxy_x + Syy_y - Fy

    z = jnp.zeros_like(U)
    return (Lx, Ly, Sxx, Syy, Sxy,
            jnp.where(x == 0.0, V, z), jnp.where(x == 0.0, Sxx, z),
            jnp.where(x == 1.0, V, z), jnp.where(x == 1.0, Sxx, z),
            jnp.where(y == 0.0, U, z), jnp.where(y == 0.0, V, z),
            jnp.where(y == 1.0, U, z),
            jnp.where(y == 1.0, Syy - (LMBD + 2 * MU) * Q * sin(pi * x), z))


if __name__ == "__main__":
    key = jax.random.PRNGKey(0)
    kx, ky, ku, kv = jax.random.split(key, 4)

    x = jax.random.uniform(kx, (N,), jnp.float32)
    y = jax.random.uniform(ky, (N,), jnp.float32)
    # hit the boundary cases exactly so the BC masks are exercised
    x = x.at[0].set(0.0).at[1].set(1.0)
    y = y.at[2].set(0.0).at[3].set(1.0)

    u_params = init_net(ku, 2, H)   # Uxy_fn
    v_params = init_net(kv, 2, H)   # Vxy_fn

    outs = pinn_forward(x, y, u_params, v_params)
    outs = jax.block_until_ready(outs)

    refs = ref_forward(x, y, u_params, v_params)
    for o, r in zip(outs, refs):
        assert o.shape == r.shape
        assert jnp.allclose(o, r, rtol=5e-3, atol=5e-3), \
            float(jnp.max(jnp.abs(o - r)))

    print("KERNEL_OK")
</pallas_src>

<mosaic_0001>
module attributes {stable_mosaic.version = 11 : i64} {
  func.func @pinn_kernel(%arg0: i32, %arg1: memref<2x256xf32, #tpu.memory_space<vmem>>, %arg2: memref<72x68xf32, #tpu.memory_space<vmem>>, %arg3: memref<13x256xf32, #tpu.memory_space<vmem>>, %arg4: memref<64x1536xf32, #tpu.memory_space<vmem>>) attributes {dimension_semantics = [#tpu.dimension_semantics<parallel>], iteration_bounds = array<i64: 1>, scalar_prefetch = 0 : i64, scratch_operands = 1 : i64, tpu.core_type = #tpu.core_type<tc>, window_params = [{transform_indices = @transform_0, window_bounds = array<i64: 2, 256>}, {pipeline_mode = #tpu.pipeline_mode<synchronous>, transform_indices = @transform_1, window_bounds = array<i64: 72, 68>}, {transform_indices = @transform_2, window_bounds = array<i64: 13, 256>}]} {
    %c0 = arith.constant 0 : index
    %c0_0 = arith.constant 0 : index
    %0 = vector.load %arg1[%c0, %c0_0] : memref<2x256xf32, #tpu.memory_space<vmem>>, vector<1x256xf32>
    %c1 = arith.constant 1 : index
    %c0_1 = arith.constant 0 : index
    %1 = vector.load %arg1[%c1, %c0_1] : memref<2x256xf32, #tpu.memory_space<vmem>>, vector<1x256xf32>
    %c0_2 = arith.constant 0 : index
    %c0_3 = arith.constant 0 : index
    %2 = vector.load %arg2[%c0_2, %c0_3] : memref<72x68xf32, #tpu.memory_space<vmem>>, vector<72x68xf32>
    %3 = vector.extract_strided_slice %2 {offsets = [0, 0], sizes = [64, 64], strides = [1, 1]} : vector<72x68xf32> to vector<64x64xf32>
    %4 = vector.extract_strided_slice %2 {offsets = [0, 64], sizes = [64, 1], strides = [1, 1]} : vector<72x68xf32> to vector<64x1xf32>
    %5 = vector.extract_strided_slice %2 {offsets = [0, 65], sizes = [64, 1], strides = [1, 1]} : vector<72x68xf32> to vector<64x1xf32>
    %6 = vector.extract_strided_slice %2 {offsets = [0, 66], sizes = [64, 1], strides = [1, 1]} : vector<72x68xf32> to vector<64x1xf32>
    %7 = vector.extract_strided_slice %2 {offsets = [0, 67], sizes = [64, 1], strides = [1, 1]} : vector<72x68xf32> to vector<64x1xf32>
    %8 = vector.extract_strided_slice %2 {offsets = [64, 0], sizes = [8, 64], strides = [1, 1]} : vector<72x68xf32> to vector<8x64xf32>
    %9 = vector.extract_strided_slice %2 {offsets = [64, 64], sizes = [8, 1], strides = [1, 1]} : vector<72x68xf32> to vector<8x1xf32>
    %10 = vector.broadcast %4 : vector<64x1xf32> to vector<64x256xf32>
    %11 = vector.broadcast %0 : vector<1x256xf32> to vector<64x256xf32>
    %12 = arith.mulf %10, %11 : vector<64x256xf32>
    %13 = vector.broadcast %5 : vector<64x1xf32> to vector<64x256xf32>
    %14 = vector.broadcast %1 : vector<1x256xf32> to vector<64x256xf32>
    %15 = arith.mulf %13, %14 : vector<64x256xf32>
    %16 = arith.addf %12, %15 : vector<64x256xf32>
    %17 = vector.broadcast %6 : vector<64x1xf32> to vector<64x256xf32>
    %18 = arith.addf %16, %17 : vector<64x256xf32>
    %19 = math.tanh %18 : vector<64x256xf32>
    %20 = arith.mulf %19, %19 : vector<64x256xf32>
    %cst = arith.constant 1.000000e+00 : f32
    %21 = vector.broadcast %cst : f32 to vector<64x256xf32>
    %22 = arith.subf %21, %20 : vector<64x256xf32>
    %cst_4 = arith.constant -2.000000e+00 : f32
    %23 = vector.broadcast %cst_4 : f32 to vector<64x256xf32>
    %24 = arith.mulf %23, %19 : vector<64x256xf32>
    %25 = arith.mulf %24, %22 : vector<64x256xf32>
    %c0_5 = arith.constant 0 : index
    %c0_6 = arith.constant 0 : index
    %26 = vector.load %arg4[%c0_5, %c0_6] : memref<64x1536xf32, #tpu.memory_space<vmem>>, vector<64x256xf32>
    tpu.vector_store %arg4[%c0_5, %c0_6], %19 {strides = array<i32>} : memref<64x1536xf32, #tpu.memory_space<vmem>>, vector<64x256xf32>,
    %27 = vector.broadcast %4 : vector<64x1xf32> to vector<64x256xf32>
    %28 = arith.mulf %22, %27 : vector<64x256xf32>
    %c0_7 = arith.constant 0 : index
    %c256 = arith.constant 256 : index
    %29 = vector.load %arg4[%c0_7, %c256] : memref<64x1536xf32, #tpu.memory_space<vmem>>, vector<64x256xf32>
    tpu.vector_store %arg4[%c0_7, %c256], %28 {strides = array<i32>} : memref<64x1536xf32, #tpu.memory_space<vmem>>, vector<64x256xf32>,
    %30 = vector.broadcast %5 : vector<64x1xf32> to vector<64x256xf32>
    %31 = arith.mulf %22, %30 : vector<64x256xf32>
    %c0_8 = arith.constant 0 : index
    %c512 = arith.constant 512 : index
    %32 = vector.load %arg4[%c0_8, %c512] : memref<64x1536xf32, #tpu.memory_space<vmem>>, vector<64x256xf32>
    tpu.vector_store %arg4[%c0_8, %c512], %31 {strides = array<i32>} : memref<64x1536xf32, #tpu.memory_space<vmem>>, vector<64x256xf32>,
    %33 = arith.mulf %4, %4 : vector<64x1xf32>
    %34 = vector.broadcast %33 : vector<64x1xf32> to vector<64x256xf32>
    %35 = arith.mulf %25, %34 : vector<64x256xf32>
    %c0_9 = arith.constant 0 : index
    %c768 = arith.constant 768 : index
    %36 = vector.load %arg4[%c0_9, %c768] : memref<64x1536xf32, #tpu.memory_space<vmem>>, vector<64x256xf32>
    tpu.vector_store %arg4[%c0_9, %c768], %35 {strides = array<i32>} : memref<64x1536xf32, #tpu.memory_space<vmem>>, vector<64x256xf32>,
    %37 = arith.mulf %4, %5 : vector<64x1xf32>
    %38 = vector.broadcast %37 : vector<64x1xf32> to vector<64x256xf32>
    %39 = arith.mulf %25, %38 : vector<64x256xf32>
    %c0_10 = arith.constant 0 : index
    %c1024 = arith.constant 1024 : index
    %40 = vector.load %arg4[%c0_10, %c1024] : memref<64x1536xf32, #tpu.memory_space<vmem>>, vector<64x256xf32>
    tpu.vector_store %arg4[%c0_10, %c1024], %39 {strides = array<i32>} : memref<64x1536xf32, #tpu.memory_space<vmem>>, vector<64x256xf32>,
    %41 = arith.mulf %5, %5 : vector<64x1xf32>
    %42 = vector.broadcast %41 : vector<64x1xf32> to vector<64x256xf32>
    %43 = arith.mulf %25, %42 : vector<64x256xf32>
    %c0_11 = arith.constant 0 : index
    %c1280 = arith.constant 1280 : index
    %44 = vector.load %arg4[%c0_11, %c1280] : memref<64x1536xf32, #tpu.memory_space<vmem>>, vector<64x256xf32>
    tpu.vector_store %arg4[%c0_11, %c1280], %43 {strides = array<i32>} : memref<64x1536xf32, #tpu.memory_space<vmem>>, vector<64x256xf32>,
    %c0_12 = arith.constant 0 : index
    %c0_13 = arith.constant 0 : index
    %45 = vector.load %arg4[%c0_12, %c0_13] : memref<64x1536xf32, #tpu.memory_space<vmem>>, vector<64x1536xf32>
    %cst_14 = arith.constant dense<0.000000e+00> : vector<64x1536xf32>
    %46 = tpu.matmul %3, %45, %cst_14 {dimension_numbers = #tpu.dot_dimension_numbers<[1], [0], [0], [1], [0, 0, 1, 1], [], []>} : vector<64x64xf32>, vector<64x1536xf32>, vector<64x1536xf32> -> vector<64x1536xf32>
    %47 = vector.extract_strided_slice %46 {offsets = [0, 0], sizes = [64, 256], strides = [1, 1]} : vector<64x1536xf32> to vector<64x256xf32>
    %48 = vector.broadcast %7 : vector<64x1xf32> to vector<64x256xf32>
    %49 = arith.addf %47, %48 : vector<64x256xf32>
    %50 = vector.extract_strided_slice %46 {offsets = [0, 256], sizes = [64, 256], strides = [1, 1]} : vector<64x1536xf32> to vector<64x256xf32>
    %51 = vector.extract_strided_slice %46 {offsets = [0, 512], sizes = [64, 256], strides = [1, 1]} : vector<64x1536xf32> to vector<64x256xf32>
    %52 = vector.extract_strided_slice %46 {offsets = [0, 768], sizes = [64, 256], strides = [1, 1]} : vector<64x1536xf32> to vector<64x256xf32>
    %53 = vector.extract_strided_slice %46 {offsets = [0, 1024], sizes = [64, 256], strides = [1, 1]} : vector<64x1536xf32> to vector<64x256xf32>
    %54 = vector.extract_strided_slice %46 {offsets = [0, 1280], sizes = [64, 256], strides = [1, 1]} : vector<64x1536xf32> to vector<64x256xf32>
    %55 = math.tanh %49 : vector<64x256xf32>
    %56 = arith.mulf %55, %55 : vector<64x256xf32>
    %cst_15 = arith.constant 1.000000e+00 : f32
    %57 = vector.broadcast %cst_15 : f32 to vector<64x256xf32>
    %58 = arith.subf %57, %56 : vector<64x256xf32>
    %cst_16 = arith.constant -2.000000e+00 : f32
    %59 = vector.broadcast %cst_16 : f32 to vector<64x256xf32>
    %60 = arith.mulf %59, %55 : vector<64x256xf32>
    %61 = arith.mulf %60, %58 : vector<64x256xf32>
    %c0_17 = arith.constant 0 : index
    %c0_18 = arith.constant 0 : index
    %62 = vector.load %arg4[%c0_17, %c0_18] : memref<64x1536xf32, #tpu.memory_space<vmem>>, vector<64x256xf32>
    tpu.vector_store %arg4[%c0_17, %c0_18], %55 {strides = array<i32>} : memref<64x1536xf32, #tpu.memory_space<vmem>>, vector<64x256xf32>,
    %63 = arith.mulf %58, %50 : vector<64x256xf32>
    %c0_19 = arith.constant 0 : index
    %c256_20 = arith.constant 256 : index
    %64 = vector.load %arg4[%c0_19, %c256_20] : memref<64x1536xf32, #tpu.memory_space<vmem>>, vector<64x256xf32>
    tpu.vector_store %arg4[%c0_19, %c256_20], %63 {strides = array<i32>} : memref<64x1536xf32, #tpu.memory_space<vmem>>, vector<64x256xf32>,
    %65 = arith.mulf %58, %51 : vector<64x256xf32>
    %c0_21 = arith.constant 0 : index
    %c512_22 = arith.constant 512 : index
    %66 = vector.load %arg4[%c0_21, %c512_22] : memref<64x1536xf32, #tpu.memory_space<vmem>>, vector<64x256xf32>
    tpu.vector_store %arg4[%c0_21, %c512_22], %65 {strides = array<i32>} : memref<64x1536xf32, #tpu.memory_space<vmem>>, vector<64x256xf32>,
    %67 = arith.mulf %61, %50 : vector<64x256xf32>
    %68 = arith.mulf %67, %50 : vector<64x256xf32>
    %69 = arith.mulf %58, %52 : vector<64x256xf32>
    %70 = arith.addf %68, %69 : vector<64x256xf32>
    %c0_23 = arith.constant 0 : index
    %c768_24 = arith.constant 768 : index
    %71 = vector.load %arg4[%c0_23, %c768_24] : memref<64x1536xf32, #tpu.memory_space<vmem>>, vector<64x256xf32>
    tpu.vector_store %arg4[%c0_23, %c768_24], %70 {strides = array<i32>} : memref<64x1536xf32, #tpu.memory_space<vmem>>, vector<64x256xf32>,
    %72 = arith.mulf %61, %50 : vector<64x256xf32>
    %73 = arith.mulf %72, %51 : vector<64x256xf32>
    %74 = arith.mulf %58, %53 : vector<64x256xf32>
    %75 = arith.addf %73, %74 : vector<64x256xf32>
    %c0_25 = arith.constant 0 : index
    %c1024_26 = arith.constant 1024 : index
    %76 = vector.load %arg4[%c0_25, %c1024_26] : memref<64x1536xf32, #tpu.memory_space<vmem>>, vector<64x256xf32>
    tpu.vector_store %arg4[%c0_25, %c1024_26], %75 {strides = array<i32>} : memref<64x1536xf32, #tpu.memory_space<vmem>>, vector<64x256xf32>,
    %77 = arith.mulf %61, %51 : vector<64x256xf32>
    %78 = arith.mulf %77, %51 : vector<64x256xf32>
    %79 = arith.mulf %58, %54 : vector<64x256xf32>
    %80 = arith.addf %78, %79 : vector<64x256xf32>
    %c0_27 = arith.constant 0 : index
    %c1280_28 = arith.constant 1280 : index
    %81 = vector.load %arg4[%c0_27, %c1280_28] : memref<64x1536xf32, #tpu.memory_space<vmem>>, vector<64x256xf32>
    tpu.vector_store %arg4[%c0_27, %c1280_28], %80 {strides = array<i32>} : memref<64x1536xf32, #tpu.memory_space<vmem>>, vector<64x256xf32>,
    %c0_29 = arith.constant 0 : index
    %c0_30 = arith.constant 0 : index
    %82 = vector.load %arg4[%c0_29, %c0_30] : memref<64x1536xf32, #tpu.memory_space<vmem>>, vector<64x1536xf32>
    %cst_31 = arith.constant dense<0.000000e+00> : vector<8x1536xf32>
    %83 = tpu.matmul %8, %82, %cst_31 {dimension_numbers = #tpu.dot_dimension_numbers<[1], [0], [0], [1], [0, 0, 1, 1], [], []>} : vector<8x64xf32>, vector<64x1536xf32>, vector<8x1536xf32> -> vector<8x1536xf32>
    %84 = vector.extract_strided_slice %83 {offsets = [0, 0], sizes = [8, 256], strides = [1, 1]} : vector<8x1536xf32> to vector<8x256xf32>
    %85 = vector.broadcast %9 : vector<8x1xf32> to vector<8x256xf32>
    %86 = arith.addf %84, %85 : vector<8x256xf32>
    %87 = vector.extract_strided_slice %83 {offsets = [0, 256], sizes = [8, 256], strides = [1, 1]} : vector<8x1536xf32> to vector<8x256xf32>
    %88 = vector.extract_strided_slice %83 {offsets = [0, 512], sizes = [8, 256], strides = [1, 1]} : vector<8x1536xf32> to vector<8x256xf32>
    %89 = vector.extract_strided_slice %83 {offsets = [0, 768], sizes = [8, 256], strides = [1, 1]} : vector<8x1536xf32> to vector<8x256xf32>
    %90 = vector.extract_strided_slice %83 {offsets = [0, 1024], sizes = [8, 256], strides = [1, 1]} : vector<8x1536xf32> to vector<8x256xf32>
    %91 = vector.extract_strided_slice %83 {offsets = [0, 1280], sizes = [8, 256], strides = [1, 1]} : vector<8x1536xf32> to vector<8x256xf32>
    %92 = math.tanh %86 : vector<8x256xf32>
    %93 = arith.mulf %92, %92 : vector<8x256xf32>
    %cst_32 = arith.constant 1.000000e+00 : f32
    %94 = vector.broadcast %cst_32 : f32 to vector<8x256xf32>
    %95 = arith.subf %94, %93 : vector<8x256xf32>
    %cst_33 = arith.constant -2.000000e+00 : f32
    %96 = vector.broadcast %cst_33 : f32 to vector<8x256xf32>
    %97 = arith.mulf %96, %92 : vector<8x256xf32>
    %98 = arith.mulf %97, %95 : vector<8x256xf32>
    %99 = arith.mulf %95, %87 : vector<8x256xf32>
    %100 = arith.mulf %95, %88 : vector<8x256xf32>
    %101 = arith.mulf %98, %87 : vector<8x256xf32>
    %102 = arith.mulf %101, %87 : vector<8x256xf32>
    %103 = arith.mulf %95, %89 : vector<8x256xf32>
    %104 = arith.addf %102, %103 : vector<8x256xf32>
    %105 = arith.mulf %98, %87 : vector<8x256xf32>
    %106 = arith.mulf %105, %88 : vector<8x256xf32>
    %107 = arith.mulf %95, %90 : vector<8x256xf32>
    %108 = arith.addf %106, %107 : vector<8x256xf32>
    %109 = arith.mulf %98, %88 : vector<8x256xf32>
    %110 = arith.mulf %109, %88 : vector<8x256xf32>
    %111 = arith.mulf %95, %91 : vector<8x256xf32>
    %112 = arith.addf %110, %111 : vector<8x256xf32>
    %113 = vector.extract_strided_slice %92 {offsets = [0, 0], sizes = [1, 256], strides = [1, 1]} : vector<8x256xf32> to vector<1x256xf32>
    %114 = vector.extract_strided_slice %92 {offsets = [1, 0], sizes = [1, 256], strides = [1, 1]} : vector<8x256xf32> to vector<1x256xf32>
    %115 = vector.extract_strided_slice %99 {offsets = [0, 0], sizes = [1, 256], strides = [1, 1]} : vector<8x256xf32> to vector<1x256xf32>
    %116 = vector.extract_strided_slice %99 {offsets = [1, 0], sizes = [1, 256], strides = [1, 1]} : vector<8x256xf32> to vector<1x256xf32>
    %117 = vector.extract_strided_slice %100 {offsets = [0, 0], sizes = [1, 256], strides = [1, 1]} : vector<8x256xf32> to vector<1x256xf32>
    %118 = vector.extract_strided_slice %100 {offsets = [1, 0], sizes = [1, 256], strides = [1, 1]} : vector<8x256xf32> to vector<1x256xf32>
    %119 = vector.extract_strided_slice %104 {offsets = [0, 0], sizes = [1, 256], strides = [1, 1]} : vector<8x256xf32> to vector<1x256xf32>
    %120 = vector.extract_strided_slice %104 {offsets = [1, 0], sizes = [1, 256], strides = [1, 1]} : vector<8x256xf32> to vector<1x256xf32>
    %121 = vector.extract_strided_slice %108 {offsets = [0, 0], sizes = [1, 256], strides = [1, 1]} : vector<8x256xf32> to vector<1x256xf32>
    %122 = vector.extract_strided_slice %108 {offsets = [1, 0], sizes = [1, 256], strides = [1, 1]} : vector<8x256xf32> to vector<1x256xf32>
    %123 = vector.extract_strided_slice %112 {offsets = [0, 0], sizes = [1, 256], strides = [1, 1]} : vector<8x256xf32> to vector<1x256xf32>
    %124 = vector.extract_strided_slice %112 {offsets = [1, 0], sizes = [1, 256], strides = [1, 1]} : vector<8x256xf32> to vector<1x256xf32>
    %cst_34 = arith.constant 3.14159274 : f32
    %125 = vector.broadcast %cst_34 : f32 to vector<1x256xf32>
    %126 = arith.mulf %125, %0 : vector<1x256xf32>
    %127 = math.sin %126 : vector<1x256xf32>
    %cst_35 = arith.constant 3.14159274 : f32
    %128 = vector.broadcast %cst_35 : f32 to vector<1x256xf32>
    %129 = arith.mulf %128, %0 : vector<1x256xf32>
    %130 = math.cos %129 : vector<1x256xf32>
    %cst_36 = arith.constant 3.14159274 : f32
    %131 = vector.broadcast %cst_36 : f32 to vector<1x256xf32>
    %132 = arith.mulf %131, %1 : vector<1x256xf32>
    %133 = math.sin %132 : vector<1x256xf32>
    %cst_37 = arith.constant 3.14159274 : f32
    %134 = vector.broadcast %cst_37 : f32 to vector<1x256xf32>
    %135 = arith.mulf %134, %1 : vector<1x256xf32>
    %136 = math.cos %135 : vector<1x256xf32>
    %cst_38 = arith.constant 2.000000e+00 : f32
    %cst_39 = arith.constant 3.14159274 : f32
    %137 = arith.mulf %cst_38, %cst_39 : f32
    %138 = vector.broadcast %137 : f32 to vector<1x256xf32>
    %139 = arith.mulf %138, %0 : vector<1x256xf32>
    %140 = math.sin %139 : vector<1x256xf32>
    %cst_40 = arith.constant 2.000000e+00 : f32
    %cst_41 = arith.constant 3.14159274 : f32
    %141 = arith.mulf %cst_40, %cst_41 : f32
    %142 = vector.broadcast %141 : f32 to vector<1x256xf32>
    %143 = arith.mulf %142, %0 : vector<1x256xf32>
    %144 = math.cos %143 : vector<1x256xf32>
    %145 = arith.mulf %1, %1 : vector<1x256xf32>
    %146 = arith.mulf %144, %133 : vector<1x256xf32>
    %cst_42 = arith.constant -83.8916397 : f32
    %147 = vector.broadcast %cst_42 : f32 to vector<1x256xf32>
    %148 = arith.mulf %147, %146 : vector<1x256xf32>
    %149 = arith.mulf %145, %1 : vector<1x256xf32>
    %150 = arith.mulf %149, %130 : vector<1x256xf32>
    %cst_43 = arith.constant 18.849556 : f32
    %151 = vector.broadcast %cst_43 : f32 to vector<1x256xf32>
    %152 = arith.mulf %151, %150 : vector<1x256xf32>
    %153 = arith.addf %148, %152 : vector<1x256xf32>
    %154 = arith.mulf %136, %140 : vector<1x256xf32>
    %cst_44 = arith.constant -29.6088123 : f32
    %155 = vector.broadcast %cst_44 : f32 to vector<1x256xf32>
    %156 = arith.mulf %155, %154 : vector<1x256xf32>
    %cst_45 = arith.constant 2.400000e+01 : f32
    %157 = vector.broadcast %cst_45 : f32 to vector<1x256xf32>
    %158 = arith.mulf %157, %145 : vector<1x256xf32>
    %159 = arith.mulf %145, %145 : vector<1x256xf32>
    %cst_46 = arith.constant -4.93480206 : f32
    %160 = vector.broadcast %cst_46 : f32 to vector<1x256xf32>
    %161 = arith.mulf %160, %159 : vector<1x256xf32>
    %162 = arith.addf %158, %161 : vector<1x256xf32>
    %163 = arith.mulf %162, %127 : vector<1x256xf32>
    %164 = arith.addf %156, %163 : vector<1x256xf32>
    %cst_47 = arith.constant 2.000000e+00 : f32
    %165 = vector.broadcast %cst_47 : f32 to vector<1x256xf32>
    %166 = arith.mulf %165, %115 : vector<1x256xf32>
    %cst_48 = arith.constant 1.000000e+00 : f32
    %167 = vector.broadcast %cst_48 : f32 to vector<1x256xf32>
    %168 = arith.mulf %167, %118 : vector<1x256xf32>
    %169 = arith.addf %166, %168 : vector<1x256xf32>
    %cst_49 = arith.constant 2.000000e+00 : f32
    %170 = vector.broadcast %cst_49 : f32 to vector<1x256xf32>
    %171 = arith.mulf %170, %118 : vector<1x256xf32>
    %cst_50 = arith.constant 1.000000e+00 : f32
    %172 = vector.broadcast %cst_50 : f32 to vector<1x256xf32>
    %173 = arith.mulf %172, %115 : vector<1x256xf32>
    %174 = arith.addf %171, %173 : vector<1x256xf32>
    %175 = arith.mulf %117, %116 : vector<1x256xf32>
    %cst_51 = arith.constant 5.000000e-01 : f32
    %176 = vector.broadcast %cst_51 : f32 to vector<1x256xf32>
    %177 = arith.mulf %176, %175 : vector<1x256xf32>
    %cst_52 = arith.constant 2.000000e+00 : f32
    %178 = vector.broadcast %cst_52 : f32 to vector<1x256xf32>
    %179 = arith.mulf %178, %119 : vector<1x256xf32>
    %cst_53 = arith.constant 1.000000e+00 : f32
    %180 = vector.broadcast %cst_53 : f32 to vector<1x256xf32>
    %181 = arith.mulf %180, %122 : vector<1x256xf32>
    %182 = arith.addf %179, %181 : vector<1x256xf32>
    %183 = arith.mulf %123, %116 : vector<1x256xf32>
    %184 = arith.mulf %117, %122 : vector<1x256xf32>
    %185 = arith.addf %183, %184 : vector<1x256xf32>
    %cst_54 = arith.constant 5.000000e-01 : f32
    %186 = vector.broadcast %cst_54 : f32 to vector<1x256xf32>
    %187 = arith.mulf %186, %185 : vector<1x256xf32>
    %188 = arith.addf %182, %187 : vector<1x256xf32>
    %189 = arith.subf %188, %153 : vector<1x256xf32>
    %190 = arith.mulf %121, %116 : vector<1x256xf32>
    %191 = arith.mulf %117, %120 : vector<1x256xf32>
    %192 = arith.addf %190, %191 : vector<1x256xf32>
    %cst_55 = arith.constant 5.000000e-01 : f32
    %193 = vector.broadcast %cst_55 : f32 to vector<1x256xf32>
    %194 = arith.mulf %193, %192 : vector<1x256xf32>
    %cst_56 = arith.constant 2.000000e+00 : f32
    %195 = vector.broadcast %cst_56 : f32 to vector<1x256xf32>
    %196 = arith.mulf %195, %124 : vector<1x256xf32>
    %cst_57 = arith.constant 1.000000e+00 : f32
    %197 = vector.broadcast %cst_57 : f32 to vector<1x256xf32>
    %198 = arith.mulf %197, %121 : vector<1x256xf32>
    %199 = arith.addf %196, %198 : vector<1x256xf32>
    %200 = arith.addf %194, %199 : vector<1x256xf32>
    %201 = arith.subf %200, %164 : vector<1x256xf32>
    %cst_58 = arith.constant 0.000000e+00 : f32
    %202 = vector.broadcast %cst_58 : f32 to vector<1x256xf32>
    %cst_59 = arith.constant 0.000000e+00 : f32
    %203 = vector.broadcast %cst_59 : f32 to vector<1x256xf32>
    %204 = arith.cmpf oeq, %0, %203 : vector<1x256xf32>
    %cst_60 = arith.constant 1.000000e+00 : f32
    %205 = vector.broadcast %cst_60 : f32 to vector<1x256xf32>
    %206 = arith.cmpf oeq, %0, %205 : vector<1x256xf32>
    %cst_61 = arith.constant 0.000000e+00 : f32
    %207 = vector.broadcast %cst_61 : f32 to vector<1x256xf32>
    %208 = arith.cmpf oeq, %1, %207 : vector<1x256xf32>
    %cst_62 = arith.constant 1.000000e+00 : f32
    %209 = vector.broadcast %cst_62 : f32 to vector<1x256xf32>
    %210 = arith.cmpf oeq, %1, %209 : vector<1x256xf32>
    %c0_63 = arith.constant 0 : index
    %c0_64 = arith.constant 0 : index
    %211 = vector.load %arg3[%c0_63, %c0_64] : memref<13x256xf32, #tpu.memory_space<vmem>>, vector<1x256xf32>
    tpu.vector_store %arg3[%c0_63, %c0_64], %189 {strides = array<i32>} : memref<13x256xf32, #tpu.memory_space<vmem>>, vector<1x256xf32>,
    %c1_65 = arith.constant 1 : index
    %c0_66 = arith.constant 0 : index
    %212 = vector.load %arg3[%c1_65, %c0_66] : memref<13x256xf32, #tpu.memory_space<vmem>>, vector<1x256xf32>
    tpu.vector_store %arg3[%c1_65, %c0_66], %201 {strides = array<i32>} : memref<13x256xf32, #tpu.memory_space<vmem>>, vector<1x256xf32>,
    %c2 = arith.constant 2 : index
    %c0_67 = arith.constant 0 : index
    %213 = vector.load %arg3[%c2, %c0_67] : memref<13x256xf32, #tpu.memory_space<vmem>>, vector<1x256xf32>
    tpu.vector_store %arg3[%c2, %c0_67], %169 {strides = array<i32>} : memref<13x256xf32, #tpu.memory_space<vmem>>, vector<1x256xf32>,
    %c3 = arith.constant 3 : index
    %c0_68 = arith.constant 0 : index
    %214 = vector.load %arg3[%c3, %c0_68] : memref<13x256xf32, #tpu.memory_space<vmem>>, vector<1x256xf32>
    tpu.vector_store %arg3[%c3, %c0_68], %174 {strides = array<i32>} : memref<13x256xf32, #tpu.memory_space<vmem>>, vector<1x256xf32>,
    %c4 = arith.constant 4 : index
    %c0_69 = arith.constant 0 : index
    %215 = vector.load %arg3[%c4, %c0_69] : memref<13x256xf32, #tpu.memory_space<vmem>>, vector<1x256xf32>
    tpu.vector_store %arg3[%c4, %c0_69], %177 {strides = array<i32>} : memref<13x256xf32, #tpu.memory_space<vmem>>, vector<1x256xf32>,
    %216 = arith.select %204, %114, %202 : vector<1x256xi1>, vector<1x256xf32>
    %c5 = arith.constant 5 : index
    %c0_70 = arith.constant 0 : index
    %217 = vector.load %arg3[%c5, %c0_70] : memref<13x256xf32, #tpu.memory_space<vmem>>, vector<1x256xf32>
    tpu.vector_store %arg3[%c5, %c0_70], %216 {strides = array<i32>} : memref<13x256xf32, #tpu.memory_space<vmem>>, vector<1x256xf32>,
    %218 = arith.select %204, %169, %202 : vector<1x256xi1>, vector<1x256xf32>
    %c6 = arith.constant 6 : index
    %c0_71 = arith.constant 0 : index
    %219 = vector.load %arg3[%c6, %c0_71] : memref<13x256xf32, #tpu.memory_space<vmem>>, vector<1x256xf32>
    tpu.vector_store %arg3[%c6, %c0_71], %218 {strides = array<i32>} : memref<13x256xf32, #tpu.memory_space<vmem>>, vector<1x256xf32>,
    %220 = arith.select %206, %114, %202 : vector<1x256xi1>, vector<1x256xf32>
    %c7 = arith.constant 7 : index
    %c0_72 = arith.constant 0 : index
    %221 = vector.load %arg3[%c7, %c0_72] : memref<13x256xf32, #tpu.memory_space<vmem>>, vector<1x256xf32>
    tpu.vector_store %arg3[%c7, %c0_72], %220 {strides = array<i32>} : memref<13x256xf32, #tpu.memory_space<vmem>>, vector<1x256xf32>,
    %222 = arith.select %206, %169, %202 : vector<1x256xi1>, vector<1x256xf32>
    %c8 = arith.constant 8 : index
    %c0_73 = arith.constant 0 : index
    %223 = vector.load %arg3[%c8, %c0_73] : memref<13x256xf32, #tpu.memory_space<vmem>>, vector<1x256xf32>
    tpu.vector_store %arg3[%c8, %c0_73], %222 {strides = array<i32>} : memref<13x256xf32, #tpu.memory_space<vmem>>, vector<1x256xf32>,
    %224 = arith.select %208, %113, %202 : vector<1x256xi1>, vector<1x256xf32>
    %c9 = arith.constant 9 : index
    %c0_74 = arith.constant 0 : index
    %225 = vector.load %arg3[%c9, %c0_74] : memref<13x256xf32, #tpu.memory_space<vmem>>, vector<1x256xf32>
    tpu.vector_store %arg3[%c9, %c0_74], %224 {strides = array<i32>} : memref<13x256xf32, #tpu.memory_space<vmem>>, vector<1x256xf32>,
    %226 = arith.select %208, %114, %202 : vector<1x256xi1>, vector<1x256xf32>
    %c10 = arith.constant 10 : index
    %c0_75 = arith.constant 0 : index
    %227 = vector.load %arg3[%c10, %c0_75] : memref<13x256xf32, #tpu.memory_space<vmem>>, vector<1x256xf32>
    tpu.vector_store %arg3[%c10, %c0_75], %226 {strides = array<i32>} : memref<13x256xf32, #tpu.memory_space<vmem>>, vector<1x256xf32>,
    %228 = arith.select %210, %113, %202 : vector<1x256xi1>, vector<1x256xf32>
    %c11 = arith.constant 11 : index
    %c0_76 = arith.constant 0 : index
    %229 = vector.load %arg3[%c11, %c0_76] : memref<13x256xf32, #tpu.memory_space<vmem>>, vector<1x256xf32>
    tpu.vector_store %arg3[%c11, %c0_76], %228 {strides = array<i32>} : memref<13x256xf32, #tpu.memory_space<vmem>>, vector<1x256xf32>,
    %cst_77 = arith.constant 8.000000e+00 : f32
    %230 = vector.broadcast %cst_77 : f32 to vector<1x256xf32>
    %231 = arith.mulf %230, %127 : vector<1x256xf32>
    %232 = arith.subf %174, %231 : vector<1x256xf32>
    %233 = arith.select %210, %232, %202 : vector<1x256xi1>, vector<1x256xf32>
    %c12 = arith.constant 12 : index
    %c0_78 = arith.constant 0 : index
    %234 = vector.load %arg3[%c12, %c0_78] : memref<13x256xf32, #tpu.memory_space<vmem>>, vector<1x256xf32>
    tpu.vector_store %arg3[%c12, %c0_78], %233 {strides = array<i32>} : memref<13x256xf32, #tpu.memory_space<vmem>>, vector<1x256xf32>,
    return
  }
  func.func @transform_0(%arg0: i32) -> (i32, i32) {
    %c0_i32 = arith.constant 0 : i32
    %c0_i32_0 = arith.constant 0 : i32
    return %c0_i32, %arg0 : i32, i32
  }
  func.func @transform_1(%arg0: i32) -> (i32, i32) {
    %c0_i32 = arith.constant 0 : i32
    %c0_i32_0 = arith.constant 0 : i32
    %c0_i32_1 = arith.constant 0 : i32
    return %c0_i32, %c0_i32_0 : i32, i32
  }
  func.func @transform_2(%arg0: i32) -> (i32, i32) {
    %c0_i32 = arith.constant 0 : i32
    %c0_i32_0 = arith.constant 0 : i32
    return %c0_i32, %arg0 : i32, i32
  }
}

</mosaic_0001>

<llo_original>
// kernel: tpu_custom_call.1
$region0: #{tpu_custom_call.1}
  #allocation0 [shape = 'u32[]', space=smem, size = 0x4, offset = 0x4, fixed_abs, tag = 'smem constant byte address 0x4 - core index']
  #allocation1 [shape = 'u32[144,128]{1,0:T(1,128)}', space=vmem, size = 0x12000, scoped, tag = 'internal scratch']
  #allocation2 [shape = 'f32[64,1536]{1,0:T(8,128)}', space=vmem, size = 0x60000, scoped, tag = 'scratch operand']
  %s0 = inlined_call_operand.hbm [shape: f32[2,256], index: 0, kind: input, shape index: {}]
  %s1 = inlined_call_operand.hbm [shape: f32[72,68], index: 1, kind: input, shape index: {}]
  %s2 = inlined_call_operand.hbm [shape: f32[13,256], index: 2, kind: output, shape index: {}]
  %s3 = sld [smem:[#allocation0]]
  $region26: #{tpu_custom_call.1} parent=0
    _
  %s5 = ssub.s32 1, %s3
  %s6 = scalar_select 0, %s5, %s3
  $region1: #{tpu_custom_call.1} parent=0
    #allocation3 [shape = 'u8[2048]{0}', space=vmem, size = 0x800, scoped, tag = 'input window, operand 0, single buffered']
    #allocation4 [shape = 's32[1]{0}', space=sflag, size = 0x4, scoped, tag = 'scoped memory for tpu_custom_call.1']
    #allocation5 [shape = 's32[1]{0}', space=sflag, size = 0x4, scoped, tag = 'scoped memory for tpu_custom_call.1']
    #allocation6 [shape = 'u8[36864]{0}', space=vmem, size = 0x9000, scoped, tag = 'input window, operand 1, single buffered']
    #allocation7 [shape = 's32[1]{0}', space=sflag, size = 0x4, scoped, tag = 'scoped memory for tpu_custom_call.1']
    #allocation8 [shape = 'u8[16384]{0}', space=vmem, size = 0x4000, scoped, tag = 'output window, operand 0, single buffered']
    %7 = vsyncpa [#allocation4], 0
    %8 = vsyncpa [#allocation7], 0
    %9 = vsyncpa [#allocation5], 0
    // Predicated region
    $region2: #{tpu_custom_call.1} parent=1 // pred_check
      _
    $region3: #{tpu_custom_call.1} parent=1 // pred_check_branch
      %11 = sbr.rel (0) target = $region5
    $region4: #{tpu_custom_call.1} parent=1 // pred_region
      %s13 = ssub.s32 64, 64
      %14 = vsyncadd [#allocation4], %s13
      %s16 = sshll.u32 [#allocation3], 4
      %s17 = int_to_ptr.vmem [resolvable:$true] %s16
      %19 = dma.hbm_to_vmem [thread:$0]  %s0, 64, %s17, [#allocation4]
    $region5: #{tpu_custom_call.1} parent=1 // pred_fallthru
      _
    // Predicated region
    $region6: #{tpu_custom_call.1} parent=1 // pred_check
      _
    $region7: #{tpu_custom_call.1} parent=1 // pred_check_branch
      %21 = sbr.rel (0) target = $region9
    $region8: #{tpu_custom_call.1} parent=1 // pred_region
      %s23 = ssub.s32 1152, 1152
      %24 = vsyncadd [#allocation7], %s23
      %s25 = sshll.u32 [#allocation6], 4
      %s26 = int_to_ptr.vmem [resolvable:$true] %s25
      %31 = dma.hbm_to_vmem [thread:$0]  %s1, 1152, %s26, [#allocation7], 128, 128, 8
    $region9: #{tpu_custom_call.1} parent=1 // pred_fallthru
      _
    // Predicated region
    $region10: #{tpu_custom_call.1} parent=1 // pred_check
      _
    $region11: #{tpu_custom_call.1} parent=1 // pred_check_branch
      %33 = sbr.rel (0) target = $region13
    $region12: #{tpu_custom_call.1} parent=1 // pred_region
      %34 = dma.done [#allocation4], 64
    $region13: #{tpu_custom_call.1} parent=1 // pred_fallthru
      _
    // Predicated region
    $region14: #{tpu_custom_call.1} parent=1 // pred_check
      _
    $region15: #{tpu_custom_call.1} parent=1 // pred_check_branch
      %36 = sbr.rel (0) target = $region17
    $region16: #{tpu_custom_call.1} parent=1 // pred_region
      %37 = dma.done [#allocation7], 1152
    $region17: #{tpu_custom_call.1} parent=1 // pred_fallthru
      _
    %v38 = vld [vmem:[#allocation3] ss:$2 sm:$0x3]
    %s39 = scalar_lea.vmem [#allocation3], 1
    %v40 = vld [vmem:[%s39] ss:$2 sm:$0x3]
    %v41 = vld [vmem:[#allocation6] sm:$0xff]
    %v42 = vld [vmem:[#allocation6 + $0x8] sm:$0xff]
    %v43 = vld [vmem:[#allocation6 + $0x10] sm:$0xff]
    %v44 = vld [vmem:[#allocation6 + $0x18] sm:$0xff]
    %v45 = vld [vmem:[#allocation6 + $0x20] sm:$0xff]
    %v46 = vld [vmem:[#allocation6 + $0x28] sm:$0xff]
    %v47 = vld [vmem:[#allocation6 + $0x30] sm:$0xff]
    %v48 = vld [vmem:[#allocation6 + $0x38] sm:$0xff]
    %v49 = vld [vmem:[#allocation6 + $0x40] sm:$0xff]
    %51 = vset.pattern.permute.xlu0 64
    %52 = vperm.xlu0 %51, %v41
    %v53 = vpop.permute.xlu0 %52
    %56 = vset.pattern.permute.xlu0 64
    %57 = vperm.xlu0 %56, %v42
    %v58 = vpop.permute.xlu0 %57
    %61 = vset.pattern.permute.xlu0 64
    %62 = vperm.xlu0 %61, %v43
    %v63 = vpop.permute.xlu0 %62
    %66 = vset.pattern.permute.xlu0 64
    %67 = vperm.xlu0 %66, %v44
    %v68 = vpop.permute.xlu0 %67
    %71 = vset.pattern.permute.xlu0 64
    %72 = vperm.xlu0 %71, %v45
    %v73 = vpop.permute.xlu0 %72
    %76 = vset.pattern.permute.xlu0 64
    %77 = vperm.xlu0 %76, %v46
    %v78 = vpop.permute.xlu0 %77
    %81 = vset.pattern.permute.xlu0 64
    %82 = vperm.xlu0 %81, %v47
    %v83 = vpop.permute.xlu0 %82
    %86 = vset.pattern.permute.xlu0 64
    %87 = vperm.xlu0 %86, %v48
    %v88 = vpop.permute.xlu0 %87
    %v91 = vlaneseq
    %v92 = vshrl.u32 %v91, 7
    %v93 = vsub.s32 0, %v92
    %v94 = vrot.slane %v38, %v93
    %v95 = vlaneseq
    %v96 = vshrl.u32 %v95, 7
    %v97 = vsub.s32 1, %v96
    %v98 = vrot.slane %v38, %v97
    %v101 = vmul.f32 %v53, %v94
    %v102 = vmul.f32 %v53, %v98
    %v103 = vmul.f32 %v58, %v94
    %v104 = vmul.f32 %v58, %v98
    %v105 = vmul.f32 %v63, %v94
    %v106 = vmul.f32 %v63, %v98
    %v107 = vmul.f32 %v68, %v94
    %v108 = vmul.f32 %v68, %v98
    %v109 = vmul.f32 %v73, %v94
    %v110 = vmul.f32 %v73, %v98
    %v111 = vmul.f32 %v78, %v94
    %v112 = vmul.f32 %v78, %v98
    %v113 = vmul.f32 %v83, %v94
    %v114 = vmul.f32 %v83, %v98
    %v115 = vmul.f32 %v88, %v94
    %v116 = vmul.f32 %v88, %v98
    %117 = vset.pattern.permute.xlu0 65
    %118 = vperm.xlu0 %117, %v41
    %v119 = vpop.permute.xlu0 %118
    %121 = vset.pattern.permute.xlu0 65
    %122 = vperm.xlu0 %121, %v42
    %v123 = vpop.permute.xlu0 %122
    %125 = vset.pattern.permute.xlu0 65
    %126 = vperm.xlu0 %125, %v43
    %v127 = vpop.permute.xlu0 %126
    %129 = vset.pattern.permute.xlu0 65
    %130 = vperm.xlu0 %129, %v44
    %v131 = vpop.permute.xlu0 %130
    %133 = vset.pattern.permute.xlu0 65
    %134 = vperm.xlu0 %133, %v45
    %v135 = vpop.permute.xlu0 %134
    %137 = vset.pattern.permute.xlu0 65
    %138 = vperm.xlu0 %137, %v46
    %v139 = vpop.permute.xlu0 %138
    %141 = vset.pattern.permute.xlu0 65
    %142 = vperm.xlu0 %141, %v47
    %v143 = vpop.permute.xlu0 %142
    %145 = vset.pattern.permute.xlu0 65
    %146 = vperm.xlu0 %145, %v48
    %v147 = vpop.permute.xlu0 %146
    %v150 = vlaneseq
    %v151 = vshrl.u32 %v150, 7
    %v152 = vsub.s32 0, %v151
    %v153 = vrot.slane %v40, %v152
    %v154 = vlaneseq
    %v155 = vshrl.u32 %v154, 7
    %v156 = vsub.s32 1, %v155
    %v157 = vrot.slane %v40, %v156
    %v160 = vmul.f32 %v119, %v153
    %v161 = vmul.f32 %v119, %v157
    %v162 = vmul.f32 %v123, %v153
    %v163 = vmul.f32 %v123, %v157
    %v164 = vmul.f32 %v127, %v153
    %v165 = vmul.f32 %v127, %v157
    %v166 = vmul.f32 %v131, %v153
    %v167 = vmul.f32 %v131, %v157
    %v168 = vmul.f32 %v135, %v153
    %v169 = vmul.f32 %v135, %v157
    %v170 = vmul.f32 %v139, %v153
    %v171 = vmul.f32 %v139, %v157
    %v172 = vmul.f32 %v143, %v153
    %v173 = vmul.f32 %v143, %v157
    %v174 = vmul.f32 %v147, %v153
    %v175 = vmul.f32 %v147, %v157
    %v176 = vadd.f32 %v101, %v160
    %v177 = vadd.f32 %v102, %v161
    %v178 = vadd.f32 %v103, %v162
    %v179 = vadd.f32 %v104, %v163
    %v180 = vadd.f32 %v105, %v164
    %v181 = vadd.f32 %v106, %v165
    %v182 = vadd.f32 %v107, %v166
    %v183 = vadd.f32 %v108, %v167
    %v184 = vadd.f32 %v109, %v168
    %v185 = vadd.f32 %v110, %v169
    %v186 = vadd.f32 %v111, %v170
    %v187 = vadd.f32 %v112, %v171
    %v188 = vadd.f32 %v113, %v172
    %v189 = vadd.f32 %v114, %v173
    %v190 = vadd.f32 %v115, %v174
    %v191 = vadd.f32 %v116, %v175
    %192 = vset.pattern.permute.xlu0 66
    %193 = vperm.xlu0 %192, %v41
    %v194 = vpop.permute.xlu0 %193
    %196 = vset.pattern.permute.xlu0 66
    %197 = vperm.xlu0 %196, %v42
    %v198 = vpop.permute.xlu0 %197
    %200 = vset.pattern.permute.xlu0 66
    %201 = vperm.xlu0 %200, %v43
    %v202 = vpop.permute.xlu0 %201
    %204 = vset.pattern.permute.xlu0 66
    %205 = vperm.xlu0 %204, %v44
    %v206 = vpop.permute.xlu0 %205
    %208 = vset.pattern.permute.xlu0 66
    %209 = vperm.xlu0 %208, %v45
    %v210 = vpop.permute.xlu0 %209
    %212 = vset.pattern.permute.xlu0 66
    %213 = vperm.xlu0 %212, %v46
    %v214 = vpop.permute.xlu0 %213
    %216 = vset.pattern.permute.xlu0 66
    %217 = vperm.xlu0 %216, %v47
    %v218 = vpop.permute.xlu0 %217
    %220 = vset.pattern.permute.xlu0 66
    %221 = vperm.xlu0 %220, %v48
    %v222 = vpop.permute.xlu0 %221
    %v224 = vadd.f32 %v176, %v194
    %v225 = vadd.f32 %v177, %v194
    %v226 = vadd.f32 %v178, %v198
    %v227 = vadd.f32 %v179, %v198
    %v228 = vadd.f32 %v180, %v202
    %v229 = vadd.f32 %v181, %v202
    %v230 = vadd.f32 %v182, %v206
    %v231 = vadd.f32 %v183, %v206
    %v232 = vadd.f32 %v184, %v210
    %v233 = vadd.f32 %v185, %v210
    %v234 = vadd.f32 %v186, %v214
    %v235 = vadd.f32 %v187, %v214
    %v236 = vadd.f32 %v188, %v218
    %v237 = vadd.f32 %v189, %v218
    %v238 = vadd.f32 %v190, %v222
    %v239 = vadd.f32 %v191, %v222
    %v240 = vtanh.pop %v224
    %v241 = vtanh.pop %v225
    %v242 = vtanh.pop %v226
    %v243 = vtanh.pop %v227
    %v244 = vtanh.pop %v228
    %v245 = vtanh.pop %v229
    %v246 = vtanh.pop %v230
    %v247 = vtanh.pop %v231
    %v248 = vtanh.pop %v232
    %v249 = vtanh.pop %v233
    %v250 = vtanh.pop %v234
    %v251 = vtanh.pop %v235
    %v252 = vtanh.pop %v236
    %v253 = vtanh.pop %v237
    %v254 = vtanh.pop %v238
    %v255 = vtanh.pop %v239
    %v256 = vmul.f32 %v240, %v240
    %v257 = vmul.f32 %v241, %v241
    %v258 = vmul.f32 %v242, %v242
    %v259 = vmul.f32 %v243, %v243
    %v260 = vmul.f32 %v244, %v244
    %v261 = vmul.f32 %v245, %v245
    %v262 = vmul.f32 %v246, %v246
    %v263 = vmul.f32 %v247, %v247
    %v264 = vmul.f32 %v248, %v248
    %v265 = vmul.f32 %v249, %v249
    %v266 = vmul.f32 %v250, %v250
    %v267 = vmul.f32 %v251, %v251
    %v268 = vmul.f32 %v252, %v252
    %v269 = vmul.f32 %v253, %v253
    %v270 = vmul.f32 %v254, %v254
    %v271 = vmul.f32 %v255, %v255
    %v272 = vsub.f32 1.0, %v256
    %v273 = vsub.f32 1.0, %v257
    %v274 = vsub.f32 1.0, %v258
    %v275 = vsub.f32 1.0, %v259
    %v276 = vsub.f32 1.0, %v260
    %v277 = vsub.f32 1.0, %v261
    %v278 = vsub.f32 1.0, %v262
    %v279 = vsub.f32 1.0, %v263
    %v280 = vsub.f32 1.0, %v264
    %v281 = vsub.f32 1.0, %v265
    %v282 = vsub.f32 1.0, %v266
    %v283 = vsub.f32 1.0, %v267
    %v284 = vsub.f32 1.0, %v268
    %v285 = vsub.f32 1.0, %v269
    %v286 = vsub.f32 1.0, %v270
    %v287 = vsub.f32 1.0, %v271
    %v288 = vmul.f32 %v240, -2.0
    %v289 = vmul.f32 %v241, -2.0
    %v290 = vmul.f32 %v242, -2.0
    %v291 = vmul.f32 %v243, -2.0
    %v292 = vmul.f32 %v244, -2.0
    %v293 = vmul.f32 %v245, -2.0
    %v294 = vmul.f32 %v246, -2.0
    %v295 = vmul.f32 %v247, -2.0
    %v296 = vmul.f32 %v248, -2.0
    %v297 = vmul.f32 %v249, -2.0
    %v298 = vmul.f32 %v250, -2.0
    %v299 = vmul.f32 %v251, -2.0
    %v300 = vmul.f32 %v252, -2.0
    %v301 = vmul.f32 %v253, -2.0
    %v302 = vmul.f32 %v254, -2.0
    %v303 = vmul.f32 %v255, -2.0
    %v304 = vmul.f32 %v288, %v272
    %v305 = vmul.f32 %v289, %v273
    %v306 = vmul.f32 %v290, %v274
    %v307 = vmul.f32 %v291, %v275
    %v308 = vmul.f32 %v292, %v276
    %v309 = vmul.f32 %v293, %v277
    %v310 = vmul.f32 %v294, %v278
    %v311 = vmul.f32 %v295, %v279
    %v312 = vmul.f32 %v296, %v280
    %v313 = vmul.f32 %v297, %v281
    %v314 = vmul.f32 %v298, %v282
    %v315 = vmul.f32 %v299, %v283
    %v316 = vmul.f32 %v300, %v284
    %v317 = vmul.f32 %v301, %v285
    %v318 = vmul.f32 %v302, %v286
    %v319 = vmul.f32 %v303, %v287
    %320 = vst [vmem:[#allocation2] sm:$0xff] %v240
    %321 = vst [vmem:[#allocation2 + $0x8] sm:$0xff] %v241
    %322 = vst [vmem:[#allocation2 + $0x60] sm:$0xff] %v242
    %323 = vst [vmem:[#allocation2 + $0x68] sm:$0xff] %v243
    %324 = vst [vmem:[#allocation2 + $0xc0] sm:$0xff] %v244
    %325 = vst [vmem:[#allocation2 + $0xc8] sm:$0xff] %v245
    %326 = vst [vmem:[#allocation2 + $0x120] sm:$0xff] %v246
    %327 = vst [vmem:[#allocation2 + $0x128] sm:$0xff] %v247
    %328 = vst [vmem:[#allocation2 + $0x180] sm:$0xff] %v248
    %329 = vst [vmem:[#allocation2 + $0x188] sm:$0xff] %v249
    %330 = vst [vmem:[#allocation2 + $0x1e0] sm:$0xff] %v250
    %331 = vst [vmem:[#allocation2 + $0x1e8] sm:$0xff] %v251
    %332 = vst [vmem:[#allocation2 + $0x240] sm:$0xff] %v252
    %333 = vst [vmem:[#allocation2 + $0x248] sm:$0xff] %v253
    %334 = vst [vmem:[#allocation2 + $0x2a0] sm:$0xff] %v254
    %335 = vst [vmem:[#allocation2 + $0x2a8] sm:$0xff] %v255
    %v336 = vmul.f32 %v272, %v53
    %v337 = vmul.f32 %v273, %v53
    %v338 = vmul.f32 %v274, %v58
    %v339 = vmul.f32 %v275, %v58
    %v340 = vmul.f32 %v276, %v63
    %v341 = vmul.f32 %v277, %v63
    %v342 = vmul.f32 %v278, %v68
    %v343 = vmul.f32 %v279, %v68
    %v344 = vmul.f32 %v280, %v73
    %v345 = vmul.f32 %v281, %v73
    %v346 = vmul.f32 %v282, %v78
    %v347 = vmul.f32 %v283, %v78
    %v348 = vmul.f32 %v284, %v83
    %v349 = vmul.f32 %v285, %v83
    %v350 = vmul.f32 %v286, %v88
    %v351 = vmul.f32 %v287, %v88
    %352 = vst [vmem:[#allocation2 + $0x10] sm:$0xff] %v336
    %353 = vst [vmem:[#allocation2 + $0x18] sm:$0xff] %v337
    %354 = vst [vmem:[#allocation2 + $0x70] sm:$0xff] %v338
    %355 = vst [vmem:[#allocation2 + $0x78] sm:$0xff] %v339
    %356 = vst [vmem:[#allocation2 + $0xd0] sm:$0xff] %v340
    %357 = vst [vmem:[#allocation2 + $0xd8] sm:$0xff] %v341
    %358 = vst [vmem:[#allocation2 + $0x130] sm:$0xff] %v342
    %359 = vst [vmem:[#allocation2 + $0x138] sm:$0xff] %v343
    %360 = vst [vmem:[#allocation2 + $0x190] sm:$0xff] %v344
    %361 = vst [vmem:[#allocation2 + $0x198] sm:$0xff] %v345
    %362 = vst [vmem:[#allocation2 + $0x1f0] sm:$0xff] %v346
    %363 = vst [vmem:[#allocation2 + $0x1f8] sm:$0xff] %v347
    %364 = vst [vmem:[#allocation2 + $0x250] sm:$0xff] %v348
    %365 = vst [vmem:[#allocation2 + $0x258] sm:$0xff] %v349
    %366 = vst [vmem:[#allocation2 + $0x2b0] sm:$0xff] %v350
    %367 = vst [vmem:[#allocation2 + $0x2b8] sm:$0xff] %v351
    %v368 = vmul.f32 %v272, %v119
    %v369 = vmul.f32 %v273, %v119
    %v370 = vmul.f32 %v274, %v123
    %v371 = vmul.f32 %v275, %v123
    %v372 = vmul.f32 %v276, %v127
    %v373 = vmul.f32 %v277, %v127
    %v374 = vmul.f32 %v278, %v131
    %v375 = vmul.f32 %v279, %v131
    %v376 = vmul.f32 %v280, %v135
    %v377 = vmul.f32 %v281, %v135
    %v378 = vmul.f32 %v282, %v139
    %v379 = vmul.f32 %v283, %v139
    %v380 = vmul.f32 %v284, %v143
    %v381 = vmul.f32 %v285, %v143
    %v382 = vmul.f32 %v286, %v147
    %v383 = vmul.f32 %v287, %v147
    %384 = vst [vmem:[#allocation2 + $0x20] sm:$0xff] %v368
    %385 = vst [vmem:[#allocation2 + $0x28] sm:$0xff] %v369
    %386 = vst [vmem:[#allocation2 + $0x80] sm:$0xff] %v370
    %387 = vst [vmem:[#allocation2 + $0x88] sm:$0xff] %v371
    %388 = vst [vmem:[#allocation2 + $0xe0] sm:$0xff] %v372
    %389 = vst [vmem:[#allocation2 + $0xe8] sm:$0xff] %v373
    %390 = vst [vmem:[#allocation2 + $0x140] sm:$0xff] %v374
    %391 = vst [vmem:[#allocation2 + $0x148] sm:$0xff] %v375
    %392 = vst [vmem:[#allocation2 + $0x1a0] sm:$0xff] %v376
    %393 = vst [vmem:[#allocation2 + $0x1a8] sm:$0xff] %v377
    %394 = vst [vmem:[#allocation2 + $0x200] sm:$0xff] %v378
    %395 = vst [vmem:[#allocation2 + $0x208] sm:$0xff] %v379
    %396 = vst [vmem:[#allocation2 + $0x260] sm:$0xff] %v380
    %397 = vst [vmem:[#allocation2 + $0x268] sm:$0xff] %v381
    %398 = vst [vmem:[#allocation2 + $0x2c0] sm:$0xff] %v382
    %399 = vst [vmem:[#allocation2 + $0x2c8] sm:$0xff] %v383
    %v400 = vmul.f32 %v41, %v41
    %v401 = vmul.f32 %v42, %v42
    %v402 = vmul.f32 %v43, %v43
    %v403 = vmul.f32 %v44, %v44
    %v404 = vmul.f32 %v45, %v45
    %v405 = vmul.f32 %v46, %v46
    %v406 = vmul.f32 %v47, %v47
    %v407 = vmul.f32 %v48, %v48
    %409 = vset.pattern.permute.xlu0 64
    %410 = vperm.xlu0 %409, %v400
    %v411 = vpop.permute.xlu0 %410
    %414 = vset.pattern.permute.xlu0 64
    %415 = vperm.xlu0 %414, %v401
    %v416 = vpop.permute.xlu0 %415
    %419 = vset.pattern.permute.xlu0 64
    %420 = vperm.xlu0 %419, %v402
    %v421 = vpop.permute.xlu0 %420
    %424 = vset.pattern.permute.xlu0 64
    %425 = vperm.xlu0 %424, %v403
    %v426 = vpop.permute.xlu0 %425
    %429 = vset.pattern.permute.xlu0 64
    %430 = vperm.xlu0 %429, %v404
    %v431 = vpop.permute.xlu0 %430
    %434 = vset.pattern.permute.xlu0 64
    %435 = vperm.xlu0 %434, %v405
    %v436 = vpop.permute.xlu0 %435
    %439 = vset.pattern.permute.xlu0 64
    %440 = vperm.xlu0 %439, %v406
    %v441 = vpop.permute.xlu0 %440
    %444 = vset.pattern.permute.xlu0 64
    %445 = vperm.xlu0 %444, %v407
    %v446 = vpop.permute.xlu0 %445
    %v448 = vmul.f32 %v304, %v411
    %v449 = vmul.f32 %v305, %v411
    %v450 = vmul.f32 %v306, %v416
    %v451 = vmul.f32 %v307, %v416
    %v452 = vmul.f32 %v308, %v421
    %v453 = vmul.f32 %v309, %v421
    %v454 = vmul.f32 %v310, %v426
    %v455 = vmul.f32 %v311, %v426
    %v456 = vmul.f32 %v312, %v431
    %v457 = vmul.f32 %v313, %v431
    %v458 = vmul.f32 %v314, %v436
    %v459 = vmul.f32 %v315, %v436
    %v460 = vmul.f32 %v316, %v441
    %v461 = vmul.f32 %v317, %v441
    %v462 = vmul.f32 %v318, %v446
    %v463 = vmul.f32 %v319, %v446
    %464 = vst [vmem:[#allocation2 + $0x30] sm:$0xff] %v448
    %465 = vst [vmem:[#allocation2 + $0x38] sm:$0xff] %v449
    %466 = vst [vmem:[#allocation2 + $0x90] sm:$0xff] %v450
    %467 = vst [vmem:[#allocation2 + $0x98] sm:$0xff] %v451
    %468 = vst [vmem:[#allocation2 + $0xf0] sm:$0xff] %v452
    %469 = vst [vmem:[#allocation2 + $0xf8] sm:$0xff] %v453
    %470 = vst [vmem:[#allocation2 + $0x150] sm:$0xff] %v454
    %471 = vst [vmem:[#allocation2 + $0x158] sm:$0xff] %v455
    %472 = vst [vmem:[#allocation2 + $0x1b0] sm:$0xff] %v456
    %473 = vst [vmem:[#allocation2 + $0x1b8] sm:$0xff] %v457
    %474 = vst [vmem:[#allocation2 + $0x210] sm:$0xff] %v458
    %475 = vst [vmem:[#allocation2 + $0x218] sm:$0xff] %v459
    %476 = vst [vmem:[#allocation2 + $0x270] sm:$0xff] %v460
    %477 = vst [vmem:[#allocation2 + $0x278] sm:$0xff] %v461
    %478 = vst [vmem:[#allocation2 + $0x2d0] sm:$0xff] %v462
    %479 = vst [vmem:[#allocation2 + $0x2d8] sm:$0xff] %v463
    %480 = vrot.lane.b32.xlu0 %v41, 127
    %v481 = vpop.permute.xlu0 %480
    %482 = vrot.lane.b32.xlu0 %v42, 127
    %v483 = vpop.permute.xlu0 %482
    %484 = vrot.lane.b32.xlu0 %v43, 127
    %v485 = vpop.permute.xlu0 %484
    %486 = vrot.lane.b32.xlu0 %v44, 127
    %v487 = vpop.permute.xlu0 %486
    %488 = vrot.lane.b32.xlu0 %v45, 127
    %v489 = vpop.permute.xlu0 %488
    %490 = vrot.lane.b32.xlu0 %v46, 127
    %v491 = vpop.permute.xlu0 %490
    %492 = vrot.lane.b32.xlu0 %v47, 127
    %v493 = vpop.permute.xlu0 %492
    %494 = vrot.lane.b32.xlu0 %v48, 127
    %v495 = vpop.permute.xlu0 %494
    %v504 = vmul.f32 %v41, %v481
    %v505 = vmul.f32 %v42, %v483
    %v506 = vmul.f32 %v43, %v485
    %v507 = vmul.f32 %v44, %v487
    %v508 = vmul.f32 %v45, %v489
    %v509 = vmul.f32 %v46, %v491
    %v510 = vmul.f32 %v47, %v493
    %v511 = vmul.f32 %v48, %v495
    %513 = vset.pattern.permute.xlu0 64
    %514 = vperm.xlu0 %513, %v504
    %v515 = vpop.permute.xlu0 %514
    %518 = vset.pattern.permute.xlu0 64
    %519 = vperm.xlu0 %518, %v505
    %v520 = vpop.permute.xlu0 %519
    %523 = vset.pattern.permute.xlu0 64
    %524 = vperm.xlu0 %523, %v506
    %v525 = vpop.permute.xlu0 %524
    %528 = vset.pattern.permute.xlu0 64
    %529 = vperm.xlu0 %528, %v507
    %v530 = vpop.permute.xlu0 %529
    %533 = vset.pattern.permute.xlu0 64
    %534 = vperm.xlu0 %533, %v508
    %v535 = vpop.permute.xlu0 %534
    %538 = vset.pattern.permute.xlu0 64
    %539 = vperm.xlu0 %538, %v509
    %v540 = vpop.permute.xlu0 %539
    %543 = vset.pattern.permute.xlu0 64
    %544 = vperm.xlu0 %543, %v510
    %v545 = vpop.permute.xlu0 %544
    %548 = vset.pattern.permute.xlu0 64
    %549 = vperm.xlu0 %548, %v511
    %v550 = vpop.permute.xlu0 %549
    %v552 = vmul.f32 %v304, %v515
    %v553 = vmul.f32 %v305, %v515
    %v554 = vmul.f32 %v306, %v520
    %v555 = vmul.f32 %v307, %v520
    %v556 = vmul.f32 %v308, %v525
    %v557 = vmul.f32 %v309, %v525
    %v558 = vmul.f32 %v310, %v530
    %v559 = vmul.f32 %v311, %v530
    %v560 = vmul.f32 %v312, %v535
    %v561 = vmul.f32 %v313, %v535
    %v562 = vmul.f32 %v314, %v540
    %v563 = vmul.f32 %v315, %v540
    %v564 = vmul.f32 %v316, %v545
    %v565 = vmul.f32 %v317, %v545
    %v566 = vmul.f32 %v318, %v550
    %v567 = vmul.f32 %v319, %v550
    %568 = vst [vmem:[#allocation2 + $0x40] sm:$0xff] %v552
    %569 = vst [vmem:[#allocation2 + $0x48] sm:$0xff] %v553
    %570 = vst [vmem:[#allocation2 + $0xa0] sm:$0xff] %v554
    %571 = vst [vmem:[#allocation2 + $0xa8] sm:$0xff] %v555
    %572 = vst [vmem:[#allocation2 + $0x100] sm:$0xff] %v556
    %573 = vst [vmem:[#allocation2 + $0x108] sm:$0xff] %v557
    %574 = vst [vmem:[#allocation2 + $0x160] sm:$0xff] %v558
    %575 = vst [vmem:[#allocation2 + $0x168] sm:$0xff] %v559
    %576 = vst [vmem:[#allocation2 + $0x1c0] sm:$0xff] %v560
    %577 = vst [vmem:[#allocation2 + $0x1c8] sm:$0xff] %v561
    %578 = vst [vmem:[#allocation2 + $0x220] sm:$0xff] %v562
    %579 = vst [vmem:[#allocation2 + $0x228] sm:$0xff] %v563
    %580 = vst [vmem:[#allocation2 + $0x280] sm:$0xff] %v564
    %581 = vst [vmem:[#allocation2 + $0x288] sm:$0xff] %v565
    %582 = vst [vmem:[#allocation2 + $0x2e0] sm:$0xff] %v566
    %583 = vst [vmem:[#allocation2 + $0x2e8] sm:$0xff] %v567
    %584 = vset.pattern.permute.xlu0 65
    %585 = vperm.xlu0 %584, %v400
    %v586 = vpop.permute.xlu0 %585
    %588 = vset.pattern.permute.xlu0 65
    %589 = vperm.xlu0 %588, %v401
    %v590 = vpop.permute.xlu0 %589
    %592 = vset.pattern.permute.xlu0 65
    %593 = vperm.xlu0 %592, %v402
    %v594 = vpop.permute.xlu0 %593
    %596 = vset.pattern.permute.xlu0 65
    %597 = vperm.xlu0 %596, %v403
    %v598 = vpop.permute.xlu0 %597
    %600 = vset.pattern.permute.xlu0 65
    %601 = vperm.xlu0 %600, %v404
    %v602 = vpop.permute.xlu0 %601
    %604 = vset.pattern.permute.xlu0 65
    %605 = vperm.xlu0 %604, %v405
    %v606 = vpop.permute.xlu0 %605
    %608 = vset.pattern.permute.xlu0 65
    %609 = vperm.xlu0 %608, %v406
    %v610 = vpop.permute.xlu0 %609
    %612 = vset.pattern.permute.xlu0 65
    %613 = vperm.xlu0 %612, %v407
    %v614 = vpop.permute.xlu0 %613
    %v616 = vmul.f32 %v304, %v586
    %v617 = vmul.f32 %v305, %v586
    %v618 = vmul.f32 %v306, %v590
    %v619 = vmul.f32 %v307, %v590
    %v620 = vmul.f32 %v308, %v594
    %v621 = vmul.f32 %v309, %v594
    %v622 = vmul.f32 %v310, %v598
    %v623 = vmul.f32 %v311, %v598
    %v624 = vmul.f32 %v312, %v602
    %v625 = vmul.f32 %v313, %v602
    %v626 = vmul.f32 %v314, %v606
    %v627 = vmul.f32 %v315, %v606
    %v628 = vmul.f32 %v316, %v610
    %v629 = vmul.f32 %v317, %v610
    %v630 = vmul.f32 %v318, %v614
    %v631 = vmul.f32 %v319, %v614
    %632 = vst [vmem:[#allocation2 + $0x50] sm:$0xff] %v616
    %633 = vst [vmem:[#allocation2 + $0x58] sm:$0xff] %v617
    %634 = vst [vmem:[#allocation2 + $0xb0] sm:$0xff] %v618
    %635 = vst [vmem:[#allocation2 + $0xb8] sm:$0xff] %v619
    %636 = vst [vmem:[#allocation2 + $0x110] sm:$0xff] %v620
    %637 = vst [vmem:[#allocation2 + $0x118] sm:$0xff] %v621
    %638 = vst [vmem:[#allocation2 + $0x170] sm:$0xff] %v622
    %639 = vst [vmem:[#allocation2 + $0x178] sm:$0xff] %v623
    %640 = vst [vmem:[#allocation2 + $0x1d0] sm:$0xff] %v624
    %641 = vst [vmem:[#allocation2 + $0x1d8] sm:$0xff] %v625
    %642 = vst [vmem:[#allocation2 + $0x230] sm:$0xff] %v626
    %643 = vst [vmem:[#allocation2 + $0x238] sm:$0xff] %v627
    %644 = vst [vmem:[#allocation2 + $0x290] sm:$0xff] %v628
    %645 = vst [vmem:[#allocation2 + $0x298] sm:$0xff] %v629
    %646 = vst [vmem:[#allocation2 + $0x2f0] sm:$0xff] %v630
    %647 = vst [vmem:[#allocation2 + $0x2f8] sm:$0xff] %v631
    %v648 = vld [vmem:[#allocation2] sm:$0xff]
    %v649 = vld [vmem:[#allocation2 + $0x8] sm:$0xff]
    %v650 = vld [vmem:[#allocation2 + $0x10] sm:$0xff]
    %v651 = vld [vmem:[#allocation2 + $0x18] sm:$0xff]
    %v652 = vld [vmem:[#allocation2 + $0x20] sm:$0xff]
    %v653 = vld [vmem:[#allocation2 + $0x28] sm:$0xff]
    %v654 = vld [vmem:[#allocation2 + $0x30] sm:$0xff]
    %v655 = vld [vmem:[#allocation2 + $0x38] sm:$0xff]
    %v656 = vld [vmem:[#allocation2 + $0x40] sm:$0xff]
    %v657 = vld [vmem:[#allocation2 + $0x48] sm:$0xff]
    %v658 = vld [vmem:[#allocation2 + $0x50] sm:$0xff]
    %v659 = vld [vmem:[#allocation2 + $0x58] sm:$0xff]
    %v660 = vld [vmem:[#allocation2 + $0x60] sm:$0xff]
    %v661 = vld [vmem:[#allocation2 + $0x68] sm:$0xff]
    %v662 = vld [vmem:[#allocation2 + $0x70] sm:$0xff]
    %v663 = vld [vmem:[#allocation2 + $0x78] sm:$0xff]
    %v664 = vld [vmem:[#allocation2 + $0x80] sm:$0xff]
    %v665 = vld [vmem:[#allocation2 + $0x88] sm:$0xff]
    %v666 = vld [vmem:[#allocation2 + $0x90] sm:$0xff]
    %v667 = vld [vmem:[#allocation2 + $0x98] sm:$0xff]
    %v668 = vld [vmem:[#allocation2 + $0xa0] sm:$0xff]
    %v669 = vld [vmem:[#allocation2 + $0xa8] sm:$0xff]
    %v670 = vld [vmem:[#allocation2 + $0xb0] sm:$0xff]
    %v671 = vld [vmem:[#allocation2 + $0xb8] sm:$0xff]
    %v672 = vld [vmem:[#allocation2 + $0xc0] sm:$0xff]
    %v673 = vld [vmem:[#allocation2 + $0xc8] sm:$0xff]
    %v674 = vld [vmem:[#allocation2 + $0xd0] sm:$0xff]
    %v675 = vld [vmem:[#allocation2 + $0xd8] sm:$0xff]
    %v676 = vld [vmem:[#allocation2 + $0xe0] sm:$0xff]
    %v677 = vld [vmem:[#allocation2 + $0xe8] sm:$0xff]
    %v678 = vld [vmem:[#allocation2 + $0xf0] sm:$0xff]
    %v679 = vld [vmem:[#allocation2 + $0xf8] sm:$0xff]
    %v680 = vld [vmem:[#allocation2 + $0x100] sm:$0xff]
    %v681 = vld [vmem:[#allocation2 + $0x108] sm:$0xff]
    %v682 = vld [vmem:[#allocation2 + $0x110] sm:$0xff]
    %v683 = vld [vmem:[#allocation2 + $0x118] sm:$0xff]
    %v684 = vld [vmem:[#allocation2 + $0x120] sm:$0xff]
    %v685 = vld [vmem:[#allocation2 + $0x128] sm:$0xff]
    %v686 = vld [vmem:[#allocation2 + $0x130] sm:$0xff]
    %v687 = vld [vmem:[#allocation2 + $0x138] sm:$0xff]
    %v688 = vld [vmem:[#allocation2 + $0x140] sm:$0xff]
    %v689 = vld [vmem:[#allocation2 + $0x148] sm:$0xff]
    %v690 = vld [vmem:[#allocation2 + $0x150] sm:$0xff]
    %v691 = vld [vmem:[#allocation2 + $0x158] sm:$0xff]
    %v692 = vld [vmem:[#allocation2 + $0x160] sm:$0xff]
    %v693 = vld [vmem:[#allocation2 + $0x168] sm:$0xff]
    %v694 = vld [vmem:[#allocation2 + $0x170] sm:$0xff]
    %v695 = vld [vmem:[#allocation2 + $0x178] sm:$0xff]
    %v696 = vld [vmem:[#allocation2 + $0x180] sm:$0xff]
    %v697 = vld [vmem:[#allocation2 + $0x188] sm:$0xff]
    %v698 = vld [vmem:[#allocation2 + $0x190] sm:$0xff]
    %v699 = vld [vmem:[#allocation2 + $0x198] sm:$0xff]
    %v700 = vld [vmem:[#allocation2 + $0x1a0] sm:$0xff]
    %v701 = vld [vmem:[#allocation2 + $0x1a8] sm:$0xff]
    %v702 = vld [vmem:[#allocation2 + $0x1b0] sm:$0xff]
    %v703 = vld [vmem:[#allocation2 + $0x1b8] sm:$0xff]
    %v704 = vld [vmem:[#allocation2 + $0x1c0] sm:$0xff]
    %v705 = vld [vmem:[#allocation2 + $0x1c8] sm:$0xff]
    %v706 = vld [vmem:[#allocation2 + $0x1d0] sm:$0xff]
    %v707 = vld [vmem:[#allocation2 + $0x1d8] sm:$0xff]
    %v708 = vld [vmem:[#allocation2 + $0x1e0] sm:$0xff]
    %v709 = vld [vmem:[#allocation2 + $0x1e8] sm:$0xff]
    %v710 = vld [vmem:[#allocation2 + $0x1f0] sm:$0xff]
    %v711 = vld [vmem:[#allocation2 + $0x1f8] sm:$0xff]
    %v712 = vld [vmem:[#allocation2 + $0x200] sm:$0xff]
    %v713 = vld [vmem:[#allocation2 + $0x208] sm:$0xff]
    %v714 = vld [vmem:[#allocation2 + $0x210] sm:$0xff]
    %v715 = vld [vmem:[#allocation2 + $0x218] sm:$0xff]
    %v716 = vld [vmem:[#allocation2 + $0x220] sm:$0xff]
    %v717 = vld [vmem:[#allocation2 + $0x228] sm:$0xff]
    %v718 = vld [vmem:[#allocation2 + $0x230] sm:$0xff]
    %v719 = vld [vmem:[#allocation2 + $0x238] sm:$0xff]
    %v720 = vld [vmem:[#allocation2 + $0x240] sm:$0xff]
    %v721 = vld [vmem:[#allocation2 + $0x248] sm:$0xff]
    %v722 = vld [vmem:[#allocation2 + $0x250] sm:$0xff]
    %v723 = vld [vmem:[#allocation2 + $0x258] sm:$0xff]
    %v724 = vld [vmem:[#allocation2 + $0x260] sm:$0xff]
    %v725 = vld [vmem:[#allocation2 + $0x268] sm:$0xff]
    %v726 = vld [vmem:[#allocation2 + $0x270] sm:$0xff]
    %v727 = vld [vmem:[#allocation2 + $0x278] sm:$0xff]
    %v728 = vld [vmem:[#allocation2 + $0x280] sm:$0xff]
    %v729 = vld [vmem:[#allocation2 + $0x288] sm:$0xff]
    %v730 = vld [vmem:[#allocation2 + $0x290] sm:$0xff]
    %v731 = vld [vmem:[#allocation2 + $0x298] sm:$0xff]
    %v732 = vld [vmem:[#allocation2 + $0x2a0] sm:$0xff]
    %v733 = vld [vmem:[#allocation2 + $0x2a8] sm:$0xff]
    %v734 = vld [vmem:[#allocation2 + $0x2b0] sm:$0xff]
    %v735 = vld [vmem:[#allocation2 + $0x2b8] sm:$0xff]
    %v736 = vld [vmem:[#allocation2 + $0x2c0] sm:$0xff]
    %v737 = vld [vmem:[#allocation2 + $0x2c8] sm:$0xff]
    %v738 = vld [vmem:[#allocation2 + $0x2d0] sm:$0xff]
    %v739 = vld [vmem:[#allocation2 + $0x2d8] sm:$0xff]
    %v740 = vld [vmem:[#allocation2 + $0x2e0] sm:$0xff]
    %v741 = vld [vmem:[#allocation2 + $0x2e8] sm:$0xff]
    %v742 = vld [vmem:[#allocation2 + $0x2f0] sm:$0xff]
    %v743 = vld [vmem:[#allocation2 + $0x2f8] sm:$0xff]
    %vm744 = vcmask 523264
    %v745 = vsel %vm744, %v41, 0
    %v747 = vsel %vm744, %v42, 0
    %v749 = vsel %vm744, %v43, 0
    %v751 = vsel %vm744, %v44, 0
    %v753 = vsel %vm744, %v45, 0
    %v755 = vsel %vm744, %v46, 0
    %v757 = vsel %vm744, %v47, 0
    %v759 = vsel %vm744, %v48, 0
    %761 = vmatprep.subr.mxu0 %v649
    %762 = vmatpush1.msra.mxu0 %v648
    %763 = vmatprep.subr.mxu0 %v661
    %764 = vmatpush1.msra.mxu0 %v660
    %765 = vmatprep.subr.mxu0 %v673
    %766 = vmatpush1.msra.mxu0 %v672
    %767 = vmatprep.subr.mxu0 %v685
    %768 = vmatpush1.msra.mxu0 %v684
    %769 = vmatprep.subr.mxu0 %v697
    %770 = vmatpush1.msra.mxu0 %v696
    %771 = vmatprep.subr.mxu0 %v709
    %772 = vmatpush1.msra.mxu0 %v708
    %773 = vmatprep.subr.mxu0 %v721
    %774 = vmatpush1.msra.mxu0 %v720
    %775 = vmatprep.subr.mxu0 %v733
    %776 = vmatpush1.msra.mxu0 %v732
    %777 = vmatprep.subr.mxu0 0.0
    %778 = vmatpush1.msra.mxu0 0.0
    %779 = vmatprep.subr.mxu0 0.0
    %780 = vmatpush1.msra.mxu0 0.0
    %781 = vmatprep.subr.mxu0 0.0
    %782 = vmatpush1.msra.mxu0 0.0
    %783 = vmatprep.subr.mxu0 0.0
    %784 = vmatpush1.msra.mxu0 0.0
    %785 = vmatprep.subr.mxu0 0.0
    %786 = vmatpush1.msra.mxu0 0.0
    %787 = vmatprep.subr.mxu0 0.0
    %788 = vmatpush1.msra.mxu0 0.0
    %789 = vmatprep.subr.mxu0 0.0
    %790 = vmatpush1.msra.mxu0 0.0
    %791 = vmatprep.subr.mxu0 0.0
    %792 = vmatpush1.msra.mxu0 0.0
    %793 = vmatprep.subr.mxu0 0.0
    %794 = vmatpush1.msra.mxu0 0.0
    %795 = vmatprep.subr.mxu0 0.0
    %796 = vmatpush1.msra.mxu0 0.0
    %797 = vmatprep.subr.mxu0 0.0
    %798 = vmatpush1.msra.mxu0 0.0
    %799 = vmatprep.subr.mxu0 0.0
    %800 = vmatpush1.msra.mxu0 0.0
    %801 = vmatprep.subr.mxu0 0.0
    %802 = vmatpush1.msra.mxu0 0.0
    %803 = vmatprep.subr.mxu0 0.0
    %804 = vmatpush1.msra.mxu0 0.0
    %805 = vmatprep.subr.mxu0 0.0
    %806 = vmatpush1.msra.mxu0 0.0
    %807 = vmatprep.subr.mxu0 0.0
    %808 = vmatpush1.msra.mxu0 0.0
    %809 = vmatprep.subr.mxu0 0.0
    %810 = vmatpush1.msra.mxu0 0.0
    %811 = vmatprep.subr.mxu0 0.0
    %812 = vmatpush1.msra.mxu0 0.0
    %813 = vmatprep.subr.mxu0 0.0
    %814 = vmatpush1.msra.mxu0 0.0
    %815 = vmatprep.subr.mxu0 0.0
    %816 = vmatpush1.msra.mxu0 0.0
    %817 = vmatprep.subr.mxu0 0.0
    %818 = vmatpush1.msra.mxu0 0.0
    %819 = vmatprep.subr.mxu0 0.0
    %820 = vmatpush1.msra.mxu0 0.0
    %821 = vmatprep.subr.mxu0 0.0
    %822 = vmatpush1.msra.mxu0 0.0
    %823 = vmatprep.subr.mxu0 0.0
    %824 = vmatpush1.msra.mxu0 0.0
    %825 = vmatprep.mubr.f32.mxu0 0.0
    %826 = vmatmul.mubr.f32.gmra.mrb[0].mxu0 %v745
    %v827 = vpop.f32.mrb[0].mxu0
    %v828 = vadd.f32 0.0, %v827
    %v829 = vpop.f32.mrb[0].mxu0
    %v830 = vadd.f32 0.0, %v829
    %831 = vmatprep.mubr.f32.mxu0 0.0
    %832 = vmatmul.mubr.f32.gmra.mrb[0].mxu0 %v747
    %v833 = vpop.f32.mrb[0].mxu0
    %v834 = vadd.f32 0.0, %v833
    %v835 = vpop.f32.mrb[0].mxu0
    %v836 = vadd.f32 0.0, %v835
    %837 = vmatprep.mubr.f32.mxu0 0.0
    %838 = vmatmul.mubr.f32.gmra.mrb[0].mxu0 %v749
    %v839 = vpop.f32.mrb[0].mxu0
    %v840 = vadd.f32 0.0, %v839
    %v841 = vpop.f32.mrb[0].mxu0
    %v842 = vadd.f32 0.0, %v841
    %843 = vmatprep.mubr.f32.mxu0 0.0
    %844 = vmatmul.mubr.f32.gmra.mrb[0].mxu0 %v751
    %v845 = vpop.f32.mrb[0].mxu0
    %v846 = vadd.f32 0.0, %v845
    %v847 = vpop.f32.mrb[0].mxu0
    %v848 = vadd.f32 0.0, %v847
    %849 = vmatprep.mubr.f32.mxu0 0.0
    %850 = vmatmul.mubr.f32.gmra.mrb[0].mxu0 %v753
    %v851 = vpop.f32.mrb[0].mxu0
    %v852 = vadd.f32 0.0, %v851
    %v853 = vpop.f32.mrb[0].mxu0
    %v854 = vadd.f32 0.0, %v853
    %855 = vmatprep.mubr.f32.mxu0 0.0
    %856 = vmatmul.mubr.f32.gmra.mrb[0].mxu0 %v755
    %v857 = vpop.f32.mrb[0].mxu0
    %v858 = vadd.f32 0.0, %v857
    %v859 = vpop.f32.mrb[0].mxu0
    %v860 = vadd.f32 0.0, %v859
    %861 = vmatprep.mubr.f32.mxu0 0.0
    %862 = vmatmul.mubr.f32.gmra.mrb[0].mxu0 %v757
    %v863 = vpop.f32.mrb[0].mxu0
    %v864 = vadd.f32 0.0, %v863
    %v865 = vpop.f32.mrb[0].mxu0
    %v866 = vadd.f32 0.0, %v865
    %867 = vmatprep.mubr.f32.mxu0 0.0
    %868 = vmatmul.mubr.f32.gmra.mrb[0].mxu0 %v759
    %v869 = vpop.f32.mrb[0].mxu0
    %v870 = vadd.f32 0.0, %v869
    %v871 = vpop.f32.mrb[0].mxu0
    %v872 = vadd.f32 0.0, %v871
    %873 = vdwg.mxu0
    %874 = vmatprep.subr.mxu0 %v651
    %875 = vmatpush1.msra.mxu0 %v650
    %876 = vmatprep.subr.mxu0 %v663
    %877 = vmatpush1.msra.mxu0 %v662
    %878 = vmatprep.subr.mxu0 %v675
    %879 = vmatpush1.msra.mxu0 %v674
    %880 = vmatprep.subr.mxu0 %v687
    %881 = vmatpush1.msra.mxu0 %v686
    %882 = vmatprep.subr.mxu0 %v699
    %883 = vmatpush1.msra.mxu0 %v698
    %884 = vmatprep.subr.mxu0 %v711
    %885 = vmatpush1.msra.mxu0 %v710
    %886 = vmatprep.subr.mxu0 %v723
    %887 = vmatpush1.msra.mxu0 %v722
    %888 = vmatprep.subr.mxu0 %v735
    %889 = vmatpush1.msra.mxu0 %v734
    %890 = vmatprep.subr.mxu0 0.0
    %891 = vmatpush1.msra.mxu0 0.0
    %892 = vmatprep.subr.mxu0 0.0
    %893 = vmatpush1.msra.mxu0 0.0
    %894 = vmatprep.subr.mxu0 0.0
    %895 = vmatpush1.msra.mxu0 0.0
    %896 = vmatprep.subr.mxu0 0.0
    %897 = vmatpush1.msra.mxu0 0.0
    %898 = vmatprep.subr.mxu0 0.0
    %899 = vmatpush1.msra.mxu0 0.0
    %900 = vmatprep.subr.mxu0 0.0
    %901 = vmatpush1.msra.mxu0 0.0
    %902 = vmatprep.subr.mxu0 0.0
    %903 = vmatpush1.msra.mxu0 0.0
    %904 = vmatprep.subr.mxu0 0.0
    %905 = vmatpush1.msra.mxu0 0.0
    %906 = vmatprep.subr.mxu0 0.0
    %907 = vmatpush1.msra.mxu0 0.0
    %908 = vmatprep.subr.mxu0 0.0
    %909 = vmatpush1.msra.mxu0 0.0
    %910 = vmatprep.subr.mxu0 0.0
    %911 = vmatpush1.msra.mxu0 0.0
    %912 = vmatprep.subr.mxu0 0.0
    %913 = vmatpush1.msra.mxu0 0.0
    %914 = vmatprep.subr.mxu0 0.0
    %915 = vmatpush1.msra.mxu0 0.0
    %916 = vmatprep.subr.mxu0 0.0
    %917 = vmatpush1.msra.mxu0 0.0
    %918 = vmatprep.subr.mxu0 0.0
    %919 = vmatpush1.msra.mxu0 0.0
    %920 = vmatprep.subr.mxu0 0.0
    %921 = vmatpush1.msra.mxu0 0.0
    %922 = vmatprep.subr.mxu0 0.0
    %923 = vmatpush1.msra.mxu0 0.0
    %924 = vmatprep.subr.mxu0 0.0
    %925 = vmatpush1.msra.mxu0 0.0
    %926 = vmatprep.subr.mxu0 0.0
    %927 = vmatpush1.msra.mxu0 0.0
    %928 = vmatprep.subr.mxu0 0.0
    %929 = vmatpush1.msra.mxu0 0.0
    %930 = vmatprep.subr.mxu0 0.0
    %931 = vmatpush1.msra.mxu0 0.0
    %932 = vmatprep.subr.mxu0 0.0
    %933 = vmatpush1.msra.mxu0 0.0
    %934 = vmatprep.subr.mxu0 0.0
    %935 = vmatpush1.msra.mxu0 0.0
    %936 = vmatprep.subr.mxu0 0.0
    %937 = vmatpush1.msra.mxu0 0.0
    %938 = vmatprep.mubr.f32.mxu0 0.0
    %939 = vmatmul.mubr.f32.gmra.mrb[0].mxu0 %v745
    %v940 = vpop.f32.mrb[0].mxu0
    %v941 = vadd.f32 0.0, %v940
    %v942 = vpop.f32.mrb[0].mxu0
    %v943 = vadd.f32 0.0, %v942
    %944 = vmatprep.mubr.f32.mxu0 0.0
    %945 = vmatmul.mubr.f32.gmra.mrb[0].mxu0 %v747
    %v946 = vpop.f32.mrb[0].mxu0
    %v947 = vadd.f32 0.0, %v946
    %v948 = vpop.f32.mrb[0].mxu0
    %v949 = vadd.f32 0.0, %v948
    %950 = vmatprep.mubr.f32.mxu0 0.0
    %951 = vmatmul.mubr.f32.gmra.mrb[0].mxu0 %v749
    %v952 = vpop.f32.mrb[0].mxu0
    %v953 = vadd.f32 0.0, %v952
    %v954 = vpop.f32.mrb[0].mxu0
    %v955 = vadd.f32 0.0, %v954
    %956 = vmatprep.mubr.f32.mxu0 0.0
    %957 = vmatmul.mubr.f32.gmra.mrb[0].mxu0 %v751
    %v958 = vpop.f32.mrb[0].mxu0
    %v959 = vadd.f32 0.0, %v958
    %v960 = vpop.f32.mrb[0].mxu0
    %v961 = vadd.f32 0.0, %v960
    %962 = vmatprep.mubr.f32.mxu0 0.0
    %963 = vmatmul.mubr.f32.gmra.mrb[0].mxu0 %v753
    %v964 = vpop.f32.mrb[0].mxu0
    %v965 = vadd.f32 0.0, %v964
    %v966 = vpop.f32.mrb[0].mxu0
    %v967 = vadd.f32 0.0, %v966
    %968 = vmatprep.mubr.f32.mxu0 0.0
    %969 = vmatmul.mubr.f32.gmra.mrb[0].mxu0 %v755
    %v970 = vpop.f32.mrb[0].mxu0
    %v971 = vadd.f32 0.0, %v970
    %v972 = vpop.f32.mrb[0].mxu0
    %v973 = vadd.f32 0.0, %v972
    %974 = vmatprep.mubr.f32.mxu0 0.0
    %975 = vmatmul.mubr.f32.gmra.mrb[0].mxu0 %v757
    %v976 = vpop.f32.mrb[0].mxu0
    %v977 = vadd.f32 0.0, %v976
    %v978 = vpop.f32.mrb[0].mxu0
    %v979 = vadd.f32 0.0, %v978
    %980 = vmatprep.mubr.f32.mxu0 0.0
    %981 = vmatmul.mubr.f32.gmra.mrb[0].mxu0 %v759
    %v982 = vpop.f32.mrb[0].mxu0
    %v983 = vadd.f32 0.0, %v982
    %v984 = vpop.f32.mrb[0].mxu0
    %v985 = vadd.f32 0.0, %v984
    %986 = vdwg.mxu0
    %987 = vmatprep.subr.mxu0 %v653
    %988 = vmatpush1.msra.mxu0 %v652
    %989 = vmatprep.subr.mxu0 %v665
    %990 = vmatpush1.msra.mxu0 %v664
    %991 = vmatprep.subr.mxu0 %v677
    %992 = vmatpush1.msra.mxu0 %v676
    %993 = vmatprep.subr.mxu0 %v689
    %994 = vmatpush1.msra.mxu0 %v688
    %995 = vmatprep.subr.mxu0 %v701
    %996 = vmatpush1.msra.mxu0 %v700
    %997 = vmatprep.subr.mxu0 %v713
    %998 = vmatpush1.msra.mxu0 %v712
    %999 = vmatprep.subr.mxu0 %v725
    %1000 = vmatpush1.msra.mxu0 %v724
    %1001 = vmatprep.subr.mxu0 %v737
    %1002 = vmatpush1.msra.mxu0 %v736
    %1003 = vmatprep.subr.mxu0 0.0
    %1004 = vmatpush1.msra.mxu0 0.0
    %1005 = vmatprep.subr.mxu0 0.0
    %1006 = vmatpush1.msra.mxu0 0.0
    %1007 = vmatprep.subr.mxu0 0.0
    %1008 = vmatpush1.msra.mxu0 0.0
    %1009 = vmatprep.subr.mxu0 0.0
    %1010 = vmatpush1.msra.mxu0 0.0
    %1011 = vmatprep.subr.mxu0 0.0
    %1012 = vmatpush1.msra.mxu0 0.0
    %1013 = vmatprep.subr.mxu0 0.0
    %1014 = vmatpush1.msra.mxu0 0.0
    %1015 = vmatprep.subr.mxu0 0.0
    %1016 = vmatpush1.msra.mxu0 0.0
    %1017 = vmatprep.subr.mxu0 0.0
    %1018 = vmatpush1.msra.mxu0 0.0
    %1019 = vmatprep.subr.mxu0 0.0
    %1020 = vmatpush1.msra.mxu0 0.0
    %1021 = vmatprep.subr.mxu0 0.0
    %1022 = vmatpush1.msra.mxu0 0.0
    %1023 = vmatprep.subr.mxu0 0.0
    %1024 = vmatpush1.msra.mxu0 0.0
    %1025 = vmatprep.subr.mxu0 0.0
    %1026 = vmatpush1.msra.mxu0 0.0
    %1027 = vmatprep.subr.mxu0 0.0
    %1028 = vmatpush1.msra.mxu0 0.0
    %1029 = vmatprep.subr.mxu0 0.0
    %1030 = vmatpush1.msra.mxu0 0.0
    %1031 = vmatprep.subr.mxu0 0.0
    %1032 = vmatpush1.msra.mxu0 0.0
    %1033 = vmatprep.subr.mxu0 0.0
    %1034 = vmatpush1.msra.mxu0 0.0
    %1035 = vmatprep.subr.mxu0 0.0
    %1036 = vmatpush1.msra.mxu0 0.0
    %1037 = vmatprep.subr.mxu0 0.0
    %1038 = vmatpush1.msra.mxu0 0.0
    %1039 = vmatprep.subr.mxu0 0.0
    %1040 = vmatpush1.msra.mxu0 0.0
    %1041 = vmatprep.subr.mxu0 0.0
    %1042 = vmatpush1.msra.mxu0 0.0
    %1043 = vmatprep.subr.mxu0 0.0
    %1044 = vmatpush1.msra.mxu0 0.0
    %1045 = vmatprep.subr.mxu0 0.0
    %1046 = vmatpush1.msra.mxu0 0.0
    %1047 = vmatprep.subr.mxu0 0.0
    %1048 = vmatpush1.msra.mxu0 0.0
    %1049 = vmatprep.subr.mxu0 0.0
    %1050 = vmatpush1.msra.mxu0 0.0
    %1051 = vmatprep.mubr.f32.mxu0 0.0
    %1052 = vmatmul.mubr.f32.gmra.mrb[0].mxu0 %v745
    %v1053 = vpop.f32.mrb[0].mxu0
    %v1054 = vadd.f32 0.0, %v1053
    %v1055 = vpop.f32.mrb[0].mxu0
    %v1056 = vadd.f32 0.0, %v1055
    %1057 = vmatprep.mubr.f32.mxu0 0.0
    %1058 = vmatmul.mubr.f32.gmra.mrb[0].mxu0 %v747
    %v1059 = vpop.f32.mrb[0].mxu0
    %v1060 = vadd.f32 0.0, %v1059
    %v1061 = vpop.f32.mrb[0].mxu0
    %v1062 = vadd.f32 0.0, %v1061
    %1063 = vmatprep.mubr.f32.mxu0 0.0
    %1064 = vmatmul.mubr.f32.gmra.mrb[0].mxu0 %v749
    %v1065 = vpop.f32.mrb[0].mxu0
    %v1066 = vadd.f32 0.0, %v1065
    %v1067 = vpop.f32.mrb[0].mxu0
    %v1068 = vadd.f32 0.0, %v1067
    %1069 = vmatprep.mubr.f32.mxu0 0.0
    %1070 = vmatmul.mubr.f32.gmra.mrb[0].mxu0 %v751
    %v1071 = vpop.f32.mrb[0].mxu0
    %v1072 = vadd.f32 0.0, %v1071
    %v1073 = vpop.f32.mrb[0].mxu0
    %v1074 = vadd.f32 0.0, %v1073
    %1075 = vmatprep.mubr.f32.mxu0 0.0
    %1076 = vmatmul.mubr.f32.gmra.mrb[0].mxu0 %v753
    %v1077 = vpop.f32.mrb[0].mxu0
    %v1078 = vadd.f32 0.0, %v1077
    %v1079 = vpop.f32.mrb[0].mxu0
    %v1080 = vadd.f32 0.0, %v1079
    %1081 = vmatprep.mubr.f32.mxu0 0.0
    %1082 = vmatmul.mubr.f32.gmra.mrb[0].mxu0 %v755
    %v1083 = vpop.f32.mrb[0].mxu0
    %v1084 = vadd.f32 0.0, %v1083
    %v1085 = vpop.f32.mrb[0].mxu0
    %v1086 = vadd.f32 0.0, %v1085
    %1087 = vmatprep.mubr.f32.mxu0 0.0
    %1088 = vmatmul.mubr.f32.gmra.mrb[0].mxu0 %v757
    %v1089 = vpop.f32.mrb[0].mxu0
    %v1090 = vadd.f32 0.0, %v1089
    %v1091 = vpop.f32.mrb[0].mxu0
    %v1092 = vadd.f32 0.0, %v1091
    %1093 = vmatprep.mubr.f32.mxu0 0.0
    %1094 = vmatmul.mubr.f32.gmra.mrb[0].mxu0 %v759
    %v1095 = vpop.f32.mrb[0].mxu0
    %v1096 = vadd.f32 0.0, %v1095
    %v1097 = vpop.f32.mrb[0].mxu0
    %v1098 = vadd.f32 0.0, %v1097
    %1099 = vdwg.mxu0
    %1100 = vmatprep.subr.mxu0 %v655
    %1101 = vmatpush1.msra.mxu0 %v654
    %1102 = vmatprep.subr.mxu0 %v667
    %1103 = vmatpush1.msra.mxu0 %v666
    %1104 = vmatprep.subr.mxu0 %v679
    %1105 = vmatpush1.msra.mxu0 %v678
    %1106 = vmatprep.subr.mxu0 %v691
    %1107 = vmatpush1.msra.mxu0 %v690
    %1108 = vmatprep.subr.mxu0 %v703
    %1109 = vmatpush1.msra.mxu0 %v702
    %1110 = vmatprep.subr.mxu0 %v715
    %1111 = vmatpush1.msra.mxu0 %v714
    %1112 = vmatprep.subr.mxu0 %v727
    %1113 = vmatpush1.msra.mxu0 %v726
    %1114 = vmatprep.subr.mxu0 %v739
    %1115 = vmatpush1.msra.mxu0 %v738
    %1116 = vmatprep.subr.mxu0 0.0
    %1117 = vmatpush1.msra.mxu0 0.0
    %1118 = vmatprep.subr.mxu0 0.0
    %1119 = vmatpush1.msra.mxu0 0.0
    %1120 = vmatprep.subr.mxu0 0.0
    %1121 = vmatpush1.msra.mxu0 0.0
    %1122 = vmatprep.subr.mxu0 0.0
    %1123 = vmatpush1.msra.mxu0 0.0
    %1124 = vmatprep.subr.mxu0 0.0
    %1125 = vmatpush1.msra.mxu0 0.0
    %1126 = vmatprep.subr.mxu0 0.0
    %1127 = vmatpush1.msra.mxu0 0.0
    %1128 = vmatprep.subr.mxu0 0.0
    %1129 = vmatpush1.msra.mxu0 0.0
    %1130 = vmatprep.subr.mxu0 0.0
    %1131 = vmatpush1.msra.mxu0 0.0
    %1132 = vmatprep.subr.mxu0 0.0
    %1133 = vmatpush1.msra.mxu0 0.0
    %1134 = vmatprep.subr.mxu0 0.0
    %1135 = vmatpush1.msra.mxu0 0.0
    %1136 = vmatprep.subr.mxu0 0.0
    %1137 = vmatpush1.msra.mxu0 0.0
    %1138 = vmatprep.subr.mxu0 0.0
    %1139 = vmatpush1.msra.mxu0 0.0
    %1140 = vmatprep.subr.mxu0 0.0
    %1141 = vmatpush1.msra.mxu0 0.0
    %1142 = vmatprep.subr.mxu0 0.0
    %1143 = vmatpush1.msra.mxu0 0.0
    %1144 = vmatprep.subr.mxu0 0.0
    %1145 = vmatpush1.msra.mxu0 0.0
    %1146 = vmatprep.subr.mxu0 0.0
    %1147 = vmatpush1.msra.mxu0 0.0
    %1148 = vmatprep.subr.mxu0 0.0
    %1149 = vmatpush1.msra.mxu0 0.0
    %1150 = vmatprep.subr.mxu0 0.0
    %1151 = vmatpush1.msra.mxu0 0.0
    %1152 = vmatprep.subr.mxu0 0.0
    %1153 = vmatpush1.msra.mxu0 0.0
    %1154 = vmatprep.subr.mxu0 0.0
    %1155 = vmatpush1.msra.mxu0 0.0
    %1156 = vmatprep.subr.mxu0 0.0
    %1157 = vmatpush1.msra.mxu0 0.0
    %1158 = vmatprep.subr.mxu0 0.0
    %1159 = vmatpush1.msra.mxu0 0.0
    %1160 = vmatprep.subr.mxu0 0.0
    %1161 = vmatpush1.msra.mxu0 0.0
    %1162 = vmatprep.subr.mxu0 0.0
    %1163 = vmatpush1.msra.mxu0 0.0
    %1164 = vmatprep.mubr.f32.mxu0 0.0
    %1165 = vmatmul.mubr.f32.gmra.mrb[0].mxu0 %v745
    %v1166 = vpop.f32.mrb[0].mxu0
    %v1167 = vadd.f32 0.0, %v1166
    %v1168 = vpop.f32.mrb[0].mxu0
    %v1169 = vadd.f32 0.0, %v1168
    %1170 = vmatprep.mubr.f32.mxu0 0.0
    %1171 = vmatmul.mubr.f32.gmra.mrb[0].mxu0 %v747
    %v1172 = vpop.f32.mrb[0].mxu0
    %v1173 = vadd.f32 0.0, %v1172
    %v1174 = vpop.f32.mrb[0].mxu0
    %v1175 = vadd.f32 0.0, %v1174
    %1176 = vmatprep.mubr.f32.mxu0 0.0
    %1177 = vmatmul.mubr.f32.gmra.mrb[0].mxu0 %v749
    %v1178 = vpop.f32.mrb[0].mxu0
    %v1179 = vadd.f32 0.0, %v1178
    %v1180 = vpop.f32.mrb[0].mxu0
    %v1181 = vadd.f32 0.0, %v1180
    %1182 = vmatprep.mubr.f32.mxu0 0.0
    %1183 = vmatmul.mubr.f32.gmra.mrb[0].mxu0 %v751
    %v1184 = vpop.f32.mrb[0].mxu0
    %v1185 = vadd.f32 0.0, %v1184
    %v1186 = vpop.f32.mrb[0].mxu0
    %v1187 = vadd.f32 0.0, %v1186
    %1188 = vmatprep.mubr.f32.mxu0 0.0
    %1189 = vmatmul.mubr.f32.gmra.mrb[0].mxu0 %v753
    %v1190 = vpop.f32.mrb[0].mxu0
    %v1191 = vadd.f32 0.0, %v1190
    %v1192 = vpop.f32.mrb[0].mxu0
    %v1193 = vadd.f32 0.0, %v1192
    %1194 = vmatprep.mubr.f32.mxu0 0.0
    %1195 = vmatmul.mubr.f32.gmra.mrb[0].mxu0 %v755
    %v1196 = vpop.f32.mrb[0].mxu0
    %v1197 = vadd.f32 0.0, %v1196
    %v1198 = vpop.f32.mrb[0].mxu0
    %v1199 = vadd.f32 0.0, %v1198
    %1200 = vmatprep.mubr.f32.mxu0 0.0
    %1201 = vmatmul.mubr.f32.gmra.mrb[0].mxu0 %v757
    %v1202 = vpop.f32.mrb[0].mxu0
    %v1203 = vadd.f32 0.0, %v1202
    %v1204 = vpop.f32.mrb[0].mxu0
    %v1205 = vadd.f32 0.0, %v1204
    %1206 = vmatprep.mubr.f32.mxu0 0.0
    %1207 = vmatmul.mubr.f32.gmra.mrb[0].mxu0 %v759
    %v1208 = vpop.f32.mrb[0].mxu0
    %v1209 = vadd.f32 0.0, %v1208
    %v1210 = vpop.f32.mrb[0].mxu0
    %v1211 = vadd.f32 0.0, %v1210
    %1212 = vdwg.mxu0
    %1213 = vmatprep.subr.mxu0 %v657
    %1214 = vmatpush1.msra.mxu0 %v656
    %1215 = vmatprep.subr.mxu0 %v669
    %1216 = vmatpush1.msra.mxu0 %v668
    %1217 = vmatprep.subr.mxu0 %v681
    %1218 = vmatpush1.msra.mxu0 %v680
    %1219 = vmatprep.subr.mxu0 %v693
    %1220 = vmatpush1.msra.mxu0 %v692
    %1221 = vmatprep.subr.mxu0 %v705
    %1222 = vmatpush1.msra.mxu0 %v704
    %1223 = vmatprep.subr.mxu0 %v717
    %1224 = vmatpush1.msra.mxu0 %v716
    %1225 = vmatprep.subr.mxu0 %v729
    %1226 = vmatpush1.msra.mxu0 %v728
    %1227 = vmatprep.subr.mxu0 %v741
    %1228 = vmatpush1.msra.mxu0 %v740
    %1229 = vmatprep.subr.mxu0 0.0
    %1230 = vmatpush1.msra.mxu0 0.0
    %1231 = vmatprep.subr.mxu0 0.0
    %1232 = vmatpush1.msra.mxu0 0.0
    %1233 = vmatprep.subr.mxu0 0.0
    %1234 = vmatpush1.msra.mxu0 0.0
    %1235 = vmatprep.subr.mxu0 0.0
    %1236 = vmatpush1.msra.mxu0 0.0
    %1237 = vmatprep.subr.mxu0 0.0
    %1238 = vmatpush1.msra.mxu0 0.0
    %1239 = vmatprep.subr.mxu0 0.0
    %1240 = vmatpush1.msra.mxu0 0.0
    %1241 = vmatprep.subr.mxu0 0.0
    %1242 = vmatpush1.msra.mxu0 0.0
    %1243 = vmatprep.subr.mxu0 0.0
    %1244 = vmatpush1.msra.mxu0 0.0
    %1245 = vmatprep.subr.mxu0 0.0
    %1246 = vmatpush1.msra.mxu0 0.0
    %1247 = vmatprep.subr.mxu0 0.0
    %1248 = vmatpush1.msra.mxu0 0.0
    %1249 = vmatprep.subr.mxu0 0.0
    %1250 = vmatpush1.msra.mxu0 0.0
    %1251 = vmatprep.subr.mxu0 0.0
    %1252 = vmatpush1.msra.mxu0 0.0
    %1253 = vmatprep.subr.mxu0 0.0
    %1254 = vmatpush1.msra.mxu0 0.0
    %1255 = vmatprep.subr.mxu0 0.0
    %1256 = vmatpush1.msra.mxu0 0.0
    %1257 = vmatprep.subr.mxu0 0.0
    %1258 = vmatpush1.msra.mxu0 0.0
    %1259 = vmatprep.subr.mxu0 0.0
    %1260 = vmatpush1.msra.mxu0 0.0
    %1261 = vmatprep.subr.mxu0 0.0
    %1262 = vmatpush1.msra.mxu0 0.0
    %1263 = vmatprep.subr.mxu0 0.0
    %1264 = vmatpush1.msra.mxu0 0.0
    %1265 = vmatprep.subr.mxu0 0.0
    %1266 = vmatpush1.msra.mxu0 0.0
    %1267 = vmatprep.subr.mxu0 0.0
    %1268 = vmatpush1.msra.mxu0 0.0
    %1269 = vmatprep.subr.mxu0 0.0
    %1270 = vmatpush1.msra.mxu0 0.0
    %1271 = vmatprep.subr.mxu0 0.0
    %1272 = vmatpush1.msra.mxu0 0.0
    %1273 = vmatprep.subr.mxu0 0.0
    %1274 = vmatpush1.msra.mxu0 0.0
    %1275 = vmatprep.subr.mxu0 0.0
    %1276 = vmatpush1.msra.mxu0 0.0
    %1277 = vmatprep.mubr.f32.mxu0 0.0
    %1278 = vmatmul.mubr.f32.gmra.mrb[0].mxu0 %v745
    %v1279 = vpop.f32.mrb[0].mxu0
    %v1280 = vadd.f32 0.0, %v1279
    %v1281 = vpop.f32.mrb[0].mxu0
    %v1282 = vadd.f32 0.0, %v1281
    %1283 = vmatprep.mubr.f32.mxu0 0.0
    %1284 = vmatmul.mubr.f32.gmra.mrb[0].mxu0 %v747
    %v1285 = vpop.f32.mrb[0].mxu0
    %v1286 = vadd.f32 0.0, %v1285
    %v1287 = vpop.f32.mrb[0].mxu0
    %v1288 = vadd.f32 0.0, %v1287
    %1289 = vmatprep.mubr.f32.mxu0 0.0
    %1290 = vmatmul.mubr.f32.gmra.mrb[0].mxu0 %v749
    %v1291 = vpop.f32.mrb[0].mxu0
    %v1292 = vadd.f32 0.0, %v1291
    %v1293 = vpop.f32.mrb[0].mxu0
    %v1294 = vadd.f32 0.0, %v1293
    %1295 = vmatprep.mubr.f32.mxu0 0.0
    %1296 = vmatmul.mubr.f32.gmra.mrb[0].mxu0 %v751
    %v1297 = vpop.f32.mrb[0].mxu0
    %v1298 = vadd.f32 0.0, %v1297
    %v1299 = vpop.f32.mrb[0].mxu0
    %v1300 = vadd.f32 0.0, %v1299
    %1301 = vmatprep.mubr.f32.mxu0 0.0
    %1302 = vmatmul.mubr.f32.gmra.mrb[0].mxu0 %v753
    %v1303 = vpop.f32.mrb[0].mxu0
    %v1304 = vadd.f32 0.0, %v1303
    %v1305 = vpop.f32.mrb[0].mxu0
    %v1306 = vadd.f32 0.0, %v1305
    %1307 = vmatprep.mubr.f32.mxu0 0.0
    %1308 = vmatmul.mubr.f32.gmra.mrb[0].mxu0 %v755
    %v1309 = vpop.f32.mrb[0].mxu0
    %v1310 = vadd.f32 0.0, %v1309
    %v1311 = vpop.f32.mrb[0].mxu0
    %v1312 = vadd.f32 0.0, %v1311
    %1313 = vmatprep.mubr.f32.mxu0 0.0
    %1314 = vmatmul.mubr.f32.gmra.mrb[0].mxu0 %v757
    %v1315 = vpop.f32.mrb[0].mxu0
    %v1316 = vadd.f32 0.0, %v1315
    %v1317 = vpop.f32.mrb[0].mxu0
    %v1318 = vadd.f32 0.0, %v1317
    %1319 = vmatprep.mubr.f32.mxu0 0.0
    %1320 = vmatmul.mubr.f32.gmra.mrb[0].mxu0 %v759
    %v1321 = vpop.f32.mrb[0].mxu0
    %v1322 = vadd.f32 0.0, %v1321
    %v1323 = vpop.f32.mrb[0].mxu0
    %v1324 = vadd.f32 0.0, %v1323
    %1325 = vdwg.mxu0
    %1326 = vmatprep.subr.mxu0 %v659
    %1327 = vmatpush1.msra.mxu0 %v658
    %1328 = vmatprep.subr.mxu0 %v671
    %1329 = vmatpush1.msra.mxu0 %v670
    %1330 = vmatprep.subr.mxu0 %v683
    %1331 = vmatpush1.msra.mxu0 %v682
    %1332 = vmatprep.subr.mxu0 %v695
    %1333 = vmatpush1.msra.mxu0 %v694
    %1334 = vmatprep.subr.mxu0 %v707
    %1335 = vmatpush1.msra.mxu0 %v706
    %1336 = vmatprep.subr.mxu0 %v719
    %1337 = vmatpush1.msra.mxu0 %v718
    %1338 = vmatprep.subr.mxu0 %v731
    %1339 = vmatpush1.msra.mxu0 %v730
    %1340 = vmatprep.subr.mxu0 %v743
    %1341 = vmatpush1.msra.mxu0 %v742
    %1342 = vmatprep.subr.mxu0 0.0
    %1343 = vmatpush1.msra.mxu0 0.0
    %1344 = vmatprep.subr.mxu0 0.0
    %1345 = vmatpush1.msra.mxu0 0.0
    %1346 = vmatprep.subr.mxu0 0.0
    %1347 = vmatpush1.msra.mxu0 0.0
    %1348 = vmatprep.subr.mxu0 0.0
    %1349 = vmatpush1.msra.mxu0 0.0
    %1350 = vmatprep.subr.mxu0 0.0
    %1351 = vmatpush1.msra.mxu0 0.0
    %1352 = vmatprep.subr.mxu0 0.0
    %1353 = vmatpush1.msra.mxu0 0.0
    %1354 = vmatprep.subr.mxu0 0.0
    %1355 = vmatpush1.msra.mxu0 0.0
    %1356 = vmatprep.subr.mxu0 0.0
    %1357 = vmatpush1.msra.mxu0 0.0
    %1358 = vmatprep.subr.mxu0 0.0
    %1359 = vmatpush1.msra.mxu0 0.0
    %1360 = vmatprep.subr.mxu0 0.0
    %1361 = vmatpush1.msra.mxu0 0.0
    %1362 = vmatprep.subr.mxu0 0.0
    %1363 = vmatpush1.msra.mxu0 0.0
    %1364 = vmatprep.subr.mxu0 0.0
    %1365 = vmatpush1.msra.mxu0 0.0
    %1366 = vmatprep.subr.mxu0 0.0
    %1367 = vmatpush1.msra.mxu0 0.0
    %1368 = vmatprep.subr.mxu0 0.0
    %1369 = vmatpush1.msra.mxu0 0.0
    %1370 = vmatprep.subr.mxu0 0.0
    %1371 = vmatpush1.msra.mxu0 0.0
    %1372 = vmatprep.subr.mxu0 0.0
    %1373 = vmatpush1.msra.mxu0 0.0
    %1374 = vmatprep.subr.mxu0 0.0
    %1375 = vmatpush1.msra.mxu0 0.0
    %1376 = vmatprep.subr.mxu0 0.0
    %1377 = vmatpush1.msra.mxu0 0.0
    %1378 = vmatprep.subr.mxu0 0.0
    %1379 = vmatpush1.msra.mxu0 0.0
    %1380 = vmatprep.subr.mxu0 0.0
    %1381 = vmatpush1.msra.mxu0 0.0
    %1382 = vmatprep.subr.mxu0 0.0
    %1383 = vmatpush1.msra.mxu0 0.0
    %1384 = vmatprep.subr.mxu0 0.0
    %1385 = vmatpush1.msra.mxu0 0.0
    %1386 = vmatprep.subr.mxu0 0.0
    %1387 = vmatpush1.msra.mxu0 0.0
    %1388 = vmatprep.subr.mxu0 0.0
    %1389 = vmatpush1.msra.mxu0 0.0
    %1390 = vmatprep.mubr.f32.mxu0 0.0
    %1391 = vmatmul.mubr.f32.gmra.mrb[0].mxu0 %v745
    %v1392 = vpop.f32.mrb[0].mxu0
    %v1393 = vadd.f32 0.0, %v1392
    %v1394 = vpop.f32.mrb[0].mxu0
    %v1395 = vadd.f32 0.0, %v1394
    %1396 = vmatprep.mubr.f32.mxu0 0.0
    %1397 = vmatmul.mubr.f32.gmra.mrb[0].mxu0 %v747
    %v1398 = vpop.f32.mrb[0].mxu0
    %v1399 = vadd.f32 0.0, %v1398
    %v1400 = vpop.f32.mrb[0].mxu0
    %v1401 = vadd.f32 0.0, %v1400
    %1402 = vmatprep.mubr.f32.mxu0 0.0
    %1403 = vmatmul.mubr.f32.gmra.mrb[0].mxu0 %v749
    %v1404 = vpop.f32.mrb[0].mxu0
    %v1405 = vadd.f32 0.0, %v1404
    %v1406 = vpop.f32.mrb[0].mxu0
    %v1407 = vadd.f32 0.0, %v1406
    %1408 = vmatprep.mubr.f32.mxu0 0.0
    %1409 = vmatmul.mubr.f32.gmra.mrb[0].mxu0 %v751
    %v1410 = vpop.f32.mrb[0].mxu0
    %v1411 = vadd.f32 0.0, %v1410
    %v1412 = vpop.f32.mrb[0].mxu0
    %v1413 = vadd.f32 0.0, %v1412
    %1414 = vmatprep.mubr.f32.mxu0 0.0
    %1415 = vmatmul.mubr.f32.gmra.mrb[0].mxu0 %v753
    %v1416 = vpop.f32.mrb[0].mxu0
    %v1417 = vadd.f32 0.0, %v1416
    %v1418 = vpop.f32.mrb[0].mxu0
    %v1419 = vadd.f32 0.0, %v1418
    %1420 = vmatprep.mubr.f32.mxu0 0.0
    %1421 = vmatmul.mubr.f32.gmra.mrb[0].mxu0 %v755
    %v1422 = vpop.f32.mrb[0].mxu0
    %v1423 = vadd.f32 0.0, %v1422
    %v1424 = vpop.f32.mrb[0].mxu0
    %v1425 = vadd.f32 0.0, %v1424
    %1426 = vmatprep.mubr.f32.mxu0 0.0
    %1427 = vmatmul.mubr.f32.gmra.mrb[0].mxu0 %v757
    %v1428 = vpop.f32.mrb[0].mxu0
    %v1429 = vadd.f32 0.0, %v1428
    %v1430 = vpop.f32.mrb[0].mxu0
    %v1431 = vadd.f32 0.0, %v1430
    %1432 = vmatprep.mubr.f32.mxu0 0.0
    %1433 = vmatmul.mubr.f32.gmra.mrb[0].mxu0 %v759
    %v1434 = vpop.f32.mrb[0].mxu0
    %v1435 = vadd.f32 0.0, %v1434
    %v1436 = vpop.f32.mrb[0].mxu0
    %v1437 = vadd.f32 0.0, %v1436
    %1438 = vdwg.mxu0
    %1439 = vset.pattern.permute.xlu0 67
    %1440 = vperm.xlu0 %1439, %v41
    %v1441 = vpop.permute.xlu0 %1440
    %1443 = vset.pattern.permute.xlu0 67
    %1444 = vperm.xlu0 %1443, %v42
    %v1445 = vpop.permute.xlu0 %1444
    %1447 = vset.pattern.permute.xlu0 67
    %1448 = vperm.xlu0 %1447, %v43
    %v1449 = vpop.permute.xlu0 %1448
    %1451 = vset.pattern.permute.xlu0 67
    %1452 = vperm.xlu0 %1451, %v44
    %v1453 = vpop.permute.xlu0 %1452
    %1455 = vset.pattern.permute.xlu0 67
    %1456 = vperm.xlu0 %1455, %v45
    %v1457 = vpop.permute.xlu0 %1456
    %1459 = vset.pattern.permute.xlu0 67
    %1460 = vperm.xlu0 %1459, %v46
    %v1461 = vpop.permute.xlu0 %1460
    %1463 = vset.pattern.permute.xlu0 67
    %1464 = vperm.xlu0 %1463, %v47
    %v1465 = vpop.permute.xlu0 %1464
    %1467 = vset.pattern.permute.xlu0 67
    %1468 = vperm.xlu0 %1467, %v48
    %v1469 = vpop.permute.xlu0 %1468
    %v1471 = vadd.f32 %v828, %v1441
    %v1472 = vadd.f32 %v830, %v1441
    %v1473 = vadd.f32 %v834, %v1445
    %v1474 = vadd.f32 %v836, %v1445
    %v1475 = vadd.f32 %v840, %v1449
    %v1476 = vadd.f32 %v842, %v1449
    %v1477 = vadd.f32 %v846, %v1453
    %v1478 = vadd.f32 %v848, %v1453
    %v1479 = vadd.f32 %v852, %v1457
    %v1480 = vadd.f32 %v854, %v1457
    %v1481 = vadd.f32 %v858, %v1461
    %v1482 = vadd.f32 %v860, %v1461
    %v1483 = vadd.f32 %v864, %v1465
    %v1484 = vadd.f32 %v866, %v1465
    %v1485 = vadd.f32 %v870, %v1469
    %v1486 = vadd.f32 %v872, %v1469
    %v1487 = vtanh.pop %v1471
    %v1488 = vtanh.pop %v1472
    %v1489 = vtanh.pop %v1473
    %v1490 = vtanh.pop %v1474
    %v1491 = vtanh.pop %v1475
    %v1492 = vtanh.pop %v1476
    %v1493 = vtanh.pop %v1477
    %v1494 = vtanh.pop %v1478
    %v1495 = vtanh.pop %v1479
    %v1496 = vtanh.pop %v1480
    %v1497 = vtanh.pop %v1481
    %v1498 = vtanh.pop %v1482
    %v1499 = vtanh.pop %v1483
    %v1500 = vtanh.pop %v1484
    %v1501 = vtanh.pop %v1485
    %v1502 = vtanh.pop %v1486
    %v1503 = vmul.f32 %v1487, %v1487
    %v1504 = vmul.f32 %v1488, %v1488
    %v1505 = vmul.f32 %v1489, %v1489
    %v1506 = vmul.f32 %v1490, %v1490
    %v1507 = vmul.f32 %v1491, %v1491
    %v1508 = vmul.f32 %v1492, %v1492
    %v1509 = vmul.f32 %v1493, %v1493
    %v1510 = vmul.f32 %v1494, %v1494
    %v1511 = vmul.f32 %v1495, %v1495
    %v1512 = vmul.f32 %v1496, %v1496
    %v1513 = vmul.f32 %v1497, %v1497
    %v1514 = vmul.f32 %v1498, %v1498
    %v1515 = vmul.f32 %v1499, %v1499
    %v1516 = vmul.f32 %v1500, %v1500
    %v1517 = vmul.f32 %v1501, %v1501
    %v1518 = vmul.f32 %v1502, %v1502
    %v1519 = vsub.f32 1.0, %v1503
    %v1520 = vsub.f32 1.0, %v1504
    %v1521 = vsub.f32 1.0, %v1505
    %v1522 = vsub.f32 1.0, %v1506
    %v1523 = vsub.f32 1.0, %v1507
    %v1524 = vsub.f32 1.0, %v1508
    %v1525 = vsub.f32 1.0, %v1509
    %v1526 = vsub.f32 1.0, %v1510
    %v1527 = vsub.f32 1.0, %v1511
    %v1528 = vsub.f32 1.0, %v1512
    %v1529 = vsub.f32 1.0, %v1513
    %v1530 = vsub.f32 1.0, %v1514
    %v1531 = vsub.f32 1.0, %v1515
    %v1532 = vsub.f32 1.0, %v1516
    %v1533 = vsub.f32 1.0, %v1517
    %v1534 = vsub.f32 1.0, %v1518
    %v1535 = vmul.f32 %v1487, -2.0
    %v1536 = vmul.f32 %v1488, -2.0
    %v1537 = vmul.f32 %v1489, -2.0
    %v1538 = vmul.f32 %v1490, -2.0
    %v1539 = vmul.f32 %v1491, -2.0
    %v1540 = vmul.f32 %v1492, -2.0
    %v1541 = vmul.f32 %v1493, -2.0
    %v1542 = vmul.f32 %v1494, -2.0
    %v1543 = vmul.f32 %v1495, -2.0
    %v1544 = vmul.f32 %v1496, -2.0
    %v1545 = vmul.f32 %v1497, -2.0
    %v1546 = vmul.f32 %v1498, -2.0
    %v1547 = vmul.f32 %v1499, -2.0
    %v1548 = vmul.f32 %v1500, -2.0
    %v1549 = vmul.f32 %v1501, -2.0
    %v1550 = vmul.f32 %v1502, -2.0
    %v1551 = vmul.f32 %v1535, %v1519
    %v1552 = vmul.f32 %v1536, %v1520
    %v1553 = vmul.f32 %v1537, %v1521
    %v1554 = vmul.f32 %v1538, %v1522
    %v1555 = vmul.f32 %v1539, %v1523
    %v1556 = vmul.f32 %v1540, %v1524
    %v1557 = vmul.f32 %v1541, %v1525
    %v1558 = vmul.f32 %v1542, %v1526
    %v1559 = vmul.f32 %v1543, %v1527
    %v1560 = vmul.f32 %v1544, %v1528
    %v1561 = vmul.f32 %v1545, %v1529
    %v1562 = vmul.f32 %v1546, %v1530
    %v1563 = vmul.f32 %v1547, %v1531
    %v1564 = vmul.f32 %v1548, %v1532
    %v1565 = vmul.f32 %v1549, %v1533
    %v1566 = vmul.f32 %v1550, %v1534
    %1567 = vst [vmem:[#allocation2] sm:$0xff] %v1487
    %1568 = vst [vmem:[#allocation2 + $0x8] sm:$0xff] %v1488
    %1569 = vst [vmem:[#allocation2 + $0x60] sm:$0xff] %v1489
    %1570 = vst [vmem:[#allocation2 + $0x68] sm:$0xff] %v1490
    %1571 = vst [vmem:[#allocation2 + $0xc0] sm:$0xff] %v1491
    %1572 = vst [vmem:[#allocation2 + $0xc8] sm:$0xff] %v1492
    %1573 = vst [vmem:[#allocation2 + $0x120] sm:$0xff] %v1493
    %1574 = vst [vmem:[#allocation2 + $0x128] sm:$0xff] %v1494
    %1575 = vst [vmem:[#allocation2 + $0x180] sm:$0xff] %v1495
    %1576 = vst [vmem:[#allocation2 + $0x188] sm:$0xff] %v1496
    %1577 = vst [vmem:[#allocation2 + $0x1e0] sm:$0xff] %v1497
    %1578 = vst [vmem:[#allocation2 + $0x1e8] sm:$0xff] %v1498
    %1579 = vst [vmem:[#allocation2 + $0x240] sm:$0xff] %v1499
    %1580 = vst [vmem:[#allocation2 + $0x248] sm:$0xff] %v1500
    %1581 = vst [vmem:[#allocation2 + $0x2a0] sm:$0xff] %v1501
    %1582 = vst [vmem:[#allocation2 + $0x2a8] sm:$0xff] %v1502
    %v1583 = vmul.f32 %v1519, %v941
    %v1584 = vmul.f32 %v1520, %v943
    %v1585 = vmul.f32 %v1521, %v947
    %v1586 = vmul.f32 %v1522, %v949
    %v1587 = vmul.f32 %v1523, %v953
    %v1588 = vmul.f32 %v1524, %v955
    %v1589 = vmul.f32 %v1525, %v959
    %v1590 = vmul.f32 %v1526, %v961
    %v1591 = vmul.f32 %v1527, %v965
    %v1592 = vmul.f32 %v1528, %v967
    %v1593 = vmul.f32 %v1529, %v971
    %v1594 = vmul.f32 %v1530, %v973
    %v1595 = vmul.f32 %v1531, %v977
    %v1596 = vmul.f32 %v1532, %v979
    %v1597 = vmul.f32 %v1533, %v983
    %v1598 = vmul.f32 %v1534, %v985
    %1599 = vst [vmem:[#allocation2 + $0x10] sm:$0xff] %v1583
    %1600 = vst [vmem:[#allocation2 + $0x18] sm:$0xff] %v1584
    %1601 = vst [vmem:[#allocation2 + $0x70] sm:$0xff] %v1585
    %1602 = vst [vmem:[#allocation2 + $0x78] sm:$0xff] %v1586
    %1603 = vst [vmem:[#allocation2 + $0xd0] sm:$0xff] %v1587
    %1604 = vst [vmem:[#allocation2 + $0xd8] sm:$0xff] %v1588
    %1605 = vst [vmem:[#allocation2 + $0x130] sm:$0xff] %v1589
    %1606 = vst [vmem:[#allocation2 + $0x138] sm:$0xff] %v1590
    %1607 = vst [vmem:[#allocation2 + $0x190] sm:$0xff] %v1591
    %1608 = vst [vmem:[#allocation2 + $0x198] sm:$0xff] %v1592
    %1609 = vst [vmem:[#allocation2 + $0x1f0] sm:$0xff] %v1593
    %1610 = vst [vmem:[#allocation2 + $0x1f8] sm:$0xff] %v1594
    %1611 = vst [vmem:[#allocation2 + $0x250] sm:$0xff] %v1595
    %1612 = vst [vmem:[#allocation2 + $0x258] sm:$0xff] %v1596
    %1613 = vst [vmem:[#allocation2 + $0x2b0] sm:$0xff] %v1597
    %1614 = vst [vmem:[#allocation2 + $0x2b8] sm:$0xff] %v1598
    %v1615 = vmul.f32 %v1519, %v1054
    %v1616 = vmul.f32 %v1520, %v1056
    %v1617 = vmul.f32 %v1521, %v1060
    %v1618 = vmul.f32 %v1522, %v1062
    %v1619 = vmul.f32 %v1523, %v1066
    %v1620 = vmul.f32 %v1524, %v1068
    %v1621 = vmul.f32 %v1525, %v1072
    %v1622 = vmul.f32 %v1526, %v1074
    %v1623 = vmul.f32 %v1527, %v1078
    %v1624 = vmul.f32 %v1528, %v1080
    %v1625 = vmul.f32 %v1529, %v1084
    %v1626 = vmul.f32 %v1530, %v1086
    %v1627 = vmul.f32 %v1531, %v1090
    %v1628 = vmul.f32 %v1532, %v1092
    %v1629 = vmul.f32 %v1533, %v1096
    %v1630 = vmul.f32 %v1534, %v1098
    %1631 = vst [vmem:[#allocation2 + $0x20] sm:$0xff] %v1615
    %1632 = vst [vmem:[#allocation2 + $0x28] sm:$0xff] %v1616
    %1633 = vst [vmem:[#allocation2 + $0x80] sm:$0xff] %v1617
    %1634 = vst [vmem:[#allocation2 + $0x88] sm:$0xff] %v1618
    %1635 = vst [vmem:[#allocation2 + $0xe0] sm:$0xff] %v1619
    %1636 = vst [vmem:[#allocation2 + $0xe8] sm:$0xff] %v1620
    %1637 = vst [vmem:[#allocation2 + $0x140] sm:$0xff] %v1621
    %1638 = vst [vmem:[#allocation2 + $0x148] sm:$0xff] %v1622
    %1639 = vst [vmem:[#allocation2 + $0x1a0] sm:$0xff] %v1623
    %1640 = vst [vmem:[#allocation2 + $0x1a8] sm:$0xff] %v1624
    %1641 = vst [vmem:[#allocation2 + $0x200] sm:$0xff] %v1625
    %1642 = vst [vmem:[#allocation2 + $0x208] sm:$0xff] %v1626
    %1643 = vst [vmem:[#allocation2 + $0x260] sm:$0xff] %v1627
    %1644 = vst [vmem:[#allocation2 + $0x268] sm:$0xff] %v1628
    %1645 = vst [vmem:[#allocation2 + $0x2c0] sm:$0xff] %v1629
    %1646 = vst [vmem:[#allocation2 + $0x2c8] sm:$0xff] %v1630
    %v1647 = vmul.f32 %v1551, %v941
    %v1648 = vmul.f32 %v1552, %v943
    %v1649 = vmul.f32 %v1553, %v947
    %v1650 = vmul.f32 %v1554, %v949
    %v1651 = vmul.f32 %v1555, %v953
    %v1652 = vmul.f32 %v1556, %v955
    %v1653 = vmul.f32 %v1557, %v959
    %v1654 = vmul.f32 %v1558, %v961
    %v1655 = vmul.f32 %v1559, %v965
    %v1656 = vmul.f32 %v1560, %v967
    %v1657 = vmul.f32 %v1561, %v971
    %v1658 = vmul.f32 %v1562, %v973
    %v1659 = vmul.f32 %v1563, %v977
    %v1660 = vmul.f32 %v1564, %v979
    %v1661 = vmul.f32 %v1565, %v983
    %v1662 = vmul.f32 %v1566, %v985
    %v1663 = vmul.f32 %v1647, %v941
    %v1664 = vmul.f32 %v1648, %v943
    %v1665 = vmul.f32 %v1649, %v947
    %v1666 = vmul.f32 %v1650, %v949
    %v1667 = vmul.f32 %v1651, %v953
    %v1668 = vmul.f32 %v1652, %v955
    %v1669 = vmul.f32 %v1653, %v959
    %v1670 = vmul.f32 %v1654, %v961
    %v1671 = vmul.f32 %v1655, %v965
    %v1672 = vmul.f32 %v1656, %v967
    %v1673 = vmul.f32 %v1657, %v971
    %v1674 = vmul.f32 %v1658, %v973
    %v1675 = vmul.f32 %v1659, %v977
    %v1676 = vmul.f32 %v1660, %v979
    %v1677 = vmul.f32 %v1661, %v983
    %v1678 = vmul.f32 %v1662, %v985
    %v1679 = vmul.f32 %v1519, %v1167
    %v1680 = vmul.f32 %v1520, %v1169
    %v1681 = vmul.f32 %v1521, %v1173
    %v1682 = vmul.f32 %v1522, %v1175
    %v1683 = vmul.f32 %v1523, %v1179
    %v1684 = vmul.f32 %v1524, %v1181
    %v1685 = vmul.f32 %v1525, %v1185
    %v1686 = vmul.f32 %v1526, %v1187
    %v1687 = vmul.f32 %v1527, %v1191
    %v1688 = vmul.f32 %v1528, %v1193
    %v1689 = vmul.f32 %v1529, %v1197
    %v1690 = vmul.f32 %v1530, %v1199
    %v1691 = vmul.f32 %v1531, %v1203
    %v1692 = vmul.f32 %v1532, %v1205
    %v1693 = vmul.f32 %v1533, %v1209
    %v1694 = vmul.f32 %v1534, %v1211
    %v1695 = vadd.f32 %v1663, %v1679
    %v1696 = vadd.f32 %v1664, %v1680
    %v1697 = vadd.f32 %v1665, %v1681
    %v1698 = vadd.f32 %v1666, %v1682
    %v1699 = vadd.f32 %v1667, %v1683
    %v1700 = vadd.f32 %v1668, %v1684
    %v1701 = vadd.f32 %v1669, %v1685
    %v1702 = vadd.f32 %v1670, %v1686
    %v1703 = vadd.f32 %v1671, %v1687
    %v1704 = vadd.f32 %v1672, %v1688
    %v1705 = vadd.f32 %v1673, %v1689
    %v1706 = vadd.f32 %v1674, %v1690
    %v1707 = vadd.f32 %v1675, %v1691
    %v1708 = vadd.f32 %v1676, %v1692
    %v1709 = vadd.f32 %v1677, %v1693
    %v1710 = vadd.f32 %v1678, %v1694
    %1711 = vst [vmem:[#allocation2 + $0x30] sm:$0xff] %v1695
    %1712 = vst [vmem:[#allocation2 + $0x38] sm:$0xff] %v1696
    %1713 = vst [vmem:[#allocation2 + $0x90] sm:$0xff] %v1697
    %1714 = vst [vmem:[#allocation2 + $0x98] sm:$0xff] %v1698
    %1715 = vst [vmem:[#allocation2 + $0xf0] sm:$0xff] %v1699
    %1716 = vst [vmem:[#allocation2 + $0xf8] sm:$0xff] %v1700
    %1717 = vst [vmem:[#allocation2 + $0x150] sm:$0xff] %v1701
    %1718 = vst [vmem:[#allocation2 + $0x158] sm:$0xff] %v1702
    %1719 = vst [vmem:[#allocation2 + $0x1b0] sm:$0xff] %v1703
    %1720 = vst [vmem:[#allocation2 + $0x1b8] sm:$0xff] %v1704
    %1721 = vst [vmem:[#allocation2 + $0x210] sm:$0xff] %v1705
    %1722 = vst [vmem:[#allocation2 + $0x218] sm:$0xff] %v1706
    %1723 = vst [vmem:[#allocation2 + $0x270] sm:$0xff] %v1707
    %1724 = vst [vmem:[#allocation2 + $0x278] sm:$0xff] %v1708
    %1725 = vst [vmem:[#allocation2 + $0x2d0] sm:$0xff] %v1709
    %1726 = vst [vmem:[#allocation2 + $0x2d8] sm:$0xff] %v1710
    %v1727 = vmul.f32 %v1647, %v1054
    %v1728 = vmul.f32 %v1648, %v1056
    %v1729 = vmul.f32 %v1649, %v1060
    %v1730 = vmul.f32 %v1650, %v1062
    %v1731 = vmul.f32 %v1651, %v1066
    %v1732 = vmul.f32 %v1652, %v1068
    %v1733 = vmul.f32 %v1653, %v1072
    %v1734 = vmul.f32 %v1654, %v1074
    %v1735 = vmul.f32 %v1655, %v1078
    %v1736 = vmul.f32 %v1656, %v1080
    %v1737 = vmul.f32 %v1657, %v1084
    %v1738 = vmul.f32 %v1658, %v1086
    %v1739 = vmul.f32 %v1659, %v1090
    %v1740 = vmul.f32 %v1660, %v1092
    %v1741 = vmul.f32 %v1661, %v1096
    %v1742 = vmul.f32 %v1662, %v1098
    %v1743 = vmul.f32 %v1519, %v1280
    %v1744 = vmul.f32 %v1520, %v1282
    %v1745 = vmul.f32 %v1521, %v1286
    %v1746 = vmul.f32 %v1522, %v1288
    %v1747 = vmul.f32 %v1523, %v1292
    %v1748 = vmul.f32 %v1524, %v1294
    %v1749 = vmul.f32 %v1525, %v1298
    %v1750 = vmul.f32 %v1526, %v1300
    %v1751 = vmul.f32 %v1527, %v1304
    %v1752 = vmul.f32 %v1528, %v1306
    %v1753 = vmul.f32 %v1529, %v1310
    %v1754 = vmul.f32 %v1530, %v1312
    %v1755 = vmul.f32 %v1531, %v1316
    %v1756 = vmul.f32 %v1532, %v1318
    %v1757 = vmul.f32 %v1533, %v1322
    %v1758 = vmul.f32 %v1534, %v1324
    %v1759 = vadd.f32 %v1727, %v1743
    %v1760 = vadd.f32 %v1728, %v1744
    %v1761 = vadd.f32 %v1729, %v1745
    %v1762 = vadd.f32 %v1730, %v1746
    %v1763 = vadd.f32 %v1731, %v1747
    %v1764 = vadd.f32 %v1732, %v1748
    %v1765 = vadd.f32 %v1733, %v1749
    %v1766 = vadd.f32 %v1734, %v1750
    %v1767 = vadd.f32 %v1735, %v1751
    %v1768 = vadd.f32 %v1736, %v1752
    %v1769 = vadd.f32 %v1737, %v1753
    %v1770 = vadd.f32 %v1738, %v1754
    %v1771 = vadd.f32 %v1739, %v1755
    %v1772 = vadd.f32 %v1740, %v1756
    %v1773 = vadd.f32 %v1741, %v1757
    %v1774 = vadd.f32 %v1742, %v1758
    %1775 = vst [vmem:[#allocation2 + $0x40] sm:$0xff] %v1759
    %1776 = vst [vmem:[#allocation2 + $0x48] sm:$0xff] %v1760
    %1777 = vst [vmem:[#allocation2 + $0xa0] sm:$0xff] %v1761
    %1778 = vst [vmem:[#allocation2 + $0xa8] sm:$0xff] %v1762
    %1779 = vst [vmem:[#allocation2 + $0x100] sm:$0xff] %v1763
    %1780 = vst [vmem:[#allocation2 + $0x108] sm:$0xff] %v1764
    %1781 = vst [vmem:[#allocation2 + $0x160] sm:$0xff] %v1765
    %1782 = vst [vmem:[#allocation2 + $0x168] sm:$0xff] %v1766
    %1783 = vst [vmem:[#allocation2 + $0x1c0] sm:$0xff] %v1767
    %1784 = vst [vmem:[#allocation2 + $0x1c8] sm:$0xff] %v1768
    %1785 = vst [vmem:[#allocation2 + $0x220] sm:$0xff] %v1769
    %1786 = vst [vmem:[#allocation2 + $0x228] sm:$0xff] %v1770
    %1787 = vst [vmem:[#allocation2 + $0x280] sm:$0xff] %v1771
    %1788 = vst [vmem:[#allocation2 + $0x288] sm:$0xff] %v1772
    %1789 = vst [vmem:[#allocation2 + $0x2e0] sm:$0xff] %v1773
    %1790 = vst [vmem:[#allocation2 + $0x2e8] sm:$0xff] %v1774
    %v1791 = vmul.f32 %v1551, %v1054
    %v1792 = vmul.f32 %v1552, %v1056
    %v1793 = vmul.f32 %v1553, %v1060
    %v1794 = vmul.f32 %v1554, %v1062
    %v1795 = vmul.f32 %v1555, %v1066
    %v1796 = vmul.f32 %v1556, %v1068
    %v1797 = vmul.f32 %v1557, %v1072
    %v1798 = vmul.f32 %v1558, %v1074
    %v1799 = vmul.f32 %v1559, %v1078
    %v1800 = vmul.f32 %v1560, %v1080
    %v1801 = vmul.f32 %v1561, %v1084
    %v1802 = vmul.f32 %v1562, %v1086
    %v1803 = vmul.f32 %v1563, %v1090
    %v1804 = vmul.f32 %v1564, %v1092
    %v1805 = vmul.f32 %v1565, %v1096
    %v1806 = vmul.f32 %v1566, %v1098
    %v1807 = vmul.f32 %v1791, %v1054
    %v1808 = vmul.f32 %v1792, %v1056
    %v1809 = vmul.f32 %v1793, %v1060
    %v1810 = vmul.f32 %v1794, %v1062
    %v1811 = vmul.f32 %v1795, %v1066
    %v1812 = vmul.f32 %v1796, %v1068
    %v1813 = vmul.f32 %v1797, %v1072
    %v1814 = vmul.f32 %v1798, %v1074
    %v1815 = vmul.f32 %v1799, %v1078
    %v1816 = vmul.f32 %v1800, %v1080
    %v1817 = vmul.f32 %v1801, %v1084
    %v1818 = vmul.f32 %v1802, %v1086
    %v1819 = vmul.f32 %v1803, %v1090
    %v1820 = vmul.f32 %v1804, %v1092
    %v1821 = vmul.f32 %v1805, %v1096
    %v1822 = vmul.f32 %v1806, %v1098
    %v1823 = vmul.f32 %v1519, %v1393
    %v1824 = vmul.f32 %v1520, %v1395
    %v1825 = vmul.f32 %v1521, %v1399
    %v1826 = vmul.f32 %v1522, %v1401
    %v1827 = vmul.f32 %v1523, %v1405
    %v1828 = vmul.f32 %v1524, %v1407
    %v1829 = vmul.f32 %v1525, %v1411
    %v1830 = vmul.f32 %v1526, %v1413
    %v1831 = vmul.f32 %v1527, %v1417
    %v1832 = vmul.f32 %v1528, %v1419
    %v1833 = vmul.f32 %v1529, %v1423
    %v1834 = vmul.f32 %v1530, %v1425
    %v1835 = vmul.f32 %v1531, %v1429
    %v1836 = vmul.f32 %v1532, %v1431
    %v1837 = vmul.f32 %v1533, %v1435
    %v1838 = vmul.f32 %v1534, %v1437
    %v1839 = vadd.f32 %v1807, %v1823
    %v1840 = vadd.f32 %v1808, %v1824
    %v1841 = vadd.f32 %v1809, %v1825
    %v1842 = vadd.f32 %v1810, %v1826
    %v1843 = vadd.f32 %v1811, %v1827
    %v1844 = vadd.f32 %v1812, %v1828
    %v1845 = vadd.f32 %v1813, %v1829
    %v1846 = vadd.f32 %v1814, %v1830
    %v1847 = vadd.f32 %v1815, %v1831
    %v1848 = vadd.f32 %v1816, %v1832
    %v1849 = vadd.f32 %v1817, %v1833
    %v1850 = vadd.f32 %v1818, %v1834
    %v1851 = vadd.f32 %v1819, %v1835
    %v1852 = vadd.f32 %v1820, %v1836
    %v1853 = vadd.f32 %v1821, %v1837
    %v1854 = vadd.f32 %v1822, %v1838
    %1855 = vst [vmem:[#allocation2 + $0x50] sm:$0xff] %v1839
    %1856 = vst [vmem:[#allocation2 + $0x58] sm:$0xff] %v1840
    %1857 = vst [vmem:[#allocation2 + $0xb0] sm:$0xff] %v1841
    %1858 = vst [vmem:[#allocation2 + $0xb8] sm:$0xff] %v1842
    %1859 = vst [vmem:[#allocation2 + $0x110] sm:$0xff] %v1843
    %1860 = vst [vmem:[#allocation2 + $0x118] sm:$0xff] %v1844
    %1861 = vst [vmem:[#allocation2 + $0x170] sm:$0xff] %v1845
    %1862 = vst [vmem:[#allocation2 + $0x178] sm:$0xff] %v1846
    %1863 = vst [vmem:[#allocation2 + $0x1d0] sm:$0xff] %v1847
    %1864 = vst [vmem:[#allocation2 + $0x1d8] sm:$0xff] %v1848
    %1865 = vst [vmem:[#allocation2 + $0x230] sm:$0xff] %v1849
    %1866 = vst [vmem:[#allocation2 + $0x238] sm:$0xff] %v1850
    %1867 = vst [vmem:[#allocation2 + $0x290] sm:$0xff] %v1851
    %1868 = vst [vmem:[#allocation2 + $0x298] sm:$0xff] %v1852
    %1869 = vst [vmem:[#allocation2 + $0x2f0] sm:$0xff] %v1853
    %1870 = vst [vmem:[#allocation2 + $0x2f8] sm:$0xff] %v1854
    %v1871 = vld [vmem:[#allocation2] sm:$0xff]
    %v1872 = vld [vmem:[#allocation2 + $0x8] sm:$0xff]
    %v1873 = vld [vmem:[#allocation2 + $0x10] sm:$0xff]
    %v1874 = vld [vmem:[#allocation2 + $0x18] sm:$0xff]
    %v1875 = vld [vmem:[#allocation2 + $0x20] sm:$0xff]
    %v1876 = vld [vmem:[#allocation2 + $0x28] sm:$0xff]
    %v1877 = vld [vmem:[#allocation2 + $0x30] sm:$0xff]
    %v1878 = vld [vmem:[#allocation2 + $0x38] sm:$0xff]
    %v1879 = vld [vmem:[#allocation2 + $0x40] sm:$0xff]
    %v1880 = vld [vmem:[#allocation2 + $0x48] sm:$0xff]
    %v1881 = vld [vmem:[#allocation2 + $0x50] sm:$0xff]
    %v1882 = vld [vmem:[#allocation2 + $0x58] sm:$0xff]
    %v1883 = vld [vmem:[#allocation2 + $0x60] sm:$0xff]
    %v1884 = vld [vmem:[#allocation2 + $0x68] sm:$0xff]
    %v1885 = vld [vmem:[#allocation2 + $0x70] sm:$0xff]
    %v1886 = vld [vmem:[#allocation2 + $0x78] sm:$0xff]
    %v1887 = vld [vmem:[#allocation2 + $0x80] sm:$0xff]
    %v1888 = vld [vmem:[#allocation2 + $0x88] sm:$0xff]
    %v1889 = vld [vmem:[#allocation2 + $0x90] sm:$0xff]
    %v1890 = vld [vmem:[#allocation2 + $0x98] sm:$0xff]
    %v1891 = vld [vmem:[#allocation2 + $0xa0] sm:$0xff]
    %v1892 = vld [vmem:[#allocation2 + $0xa8] sm:$0xff]
    %v1893 = vld [vmem:[#allocation2 + $0xb0] sm:$0xff]
    %v1894 = vld [vmem:[#allocation2 + $0xb8] sm:$0xff]
    %v1895 = vld [vmem:[#allocation2 + $0xc0] sm:$0xff]
    %v1896 = vld [vmem:[#allocation2 + $0xc8] sm:$0xff]
    %v1897 = vld [vmem:[#allocation2 + $0xd0] sm:$0xff]
    %v1898 = vld [vmem:[#allocation2 + $0xd8] sm:$0xff]
    %v1899 = vld [vmem:[#allocation2 + $0xe0] sm:$0xff]
    %v1900 = vld [vmem:[#allocation2 + $0xe8] sm:$0xff]
    %v1901 = vld [vmem:[#allocation2 + $0xf0] sm:$0xff]
    %v1902 = vld [vmem:[#allocation2 + $0xf8] sm:$0xff]
    %v1903 = vld [vmem:[#allocation2 + $0x100] sm:$0xff]
    %v1904 = vld [vmem:[#allocation2 + $0x108] sm:$0xff]
    %v1905 = vld [vmem:[#allocation2 + $0x110] sm:$0xff]
    %v1906 = vld [vmem:[#allocation2 + $0x118] sm:$0xff]
    %v1907 = vld [vmem:[#allocation2 + $0x120] sm:$0xff]
    %v1908 = vld [vmem:[#allocation2 + $0x128] sm:$0xff]
    %v1909 = vld [vmem:[#allocation2 + $0x130] sm:$0xff]
    %v1910 = vld [vmem:[#allocation2 + $0x138] sm:$0xff]
    %v1911 = vld [vmem:[#allocation2 + $0x140] sm:$0xff]
    %v1912 = vld [vmem:[#allocation2 + $0x148] sm:$0xff]
    %v1913 = vld [vmem:[#allocation2 + $0x150] sm:$0xff]
    %v1914 = vld [vmem:[#allocation2 + $0x158] sm:$0xff]
    %v1915 = vld [vmem:[#allocation2 + $0x160] sm:$0xff]
    %v1916 = vld [vmem:[#allocation2 + $0x168] sm:$0xff]
    %v1917 = vld [vmem:[#allocation2 + $0x170] sm:$0xff]
    %v1918 = vld [vmem:[#allocation2 + $0x178] sm:$0xff]
    %v1919 = vld [vmem:[#allocation2 + $0x180] sm:$0xff]
    %v1920 = vld [vmem:[#allocation2 + $0x188] sm:$0xff]
    %v1921 = vld [vmem:[#allocation2 + $0x190] sm:$0xff]
    %v1922 = vld [vmem:[#allocation2 + $0x198] sm:$0xff]
    %v1923 = vld [vmem:[#allocation2 + $0x1a0] sm:$0xff]
    %v1924 = vld [vmem:[#allocation2 + $0x1a8] sm:$0xff]
    %v1925 = vld [vmem:[#allocation2 + $0x1b0] sm:$0xff]
    %v1926 = vld [vmem:[#allocation2 + $0x1b8] sm:$0xff]
    %v1927 = vld [vmem:[#allocation2 + $0x1c0] sm:$0xff]
    %v1928 = vld [vmem:[#allocation2 + $0x1c8] sm:$0xff]
    %v1929 = vld [vmem:[#allocation2 + $0x1d0] sm:$0xff]
    %v1930 = vld [vmem:[#allocation2 + $0x1d8] sm:$0xff]
    %v1931 = vld [vmem:[#allocation2 + $0x1e0] sm:$0xff]
    %v1932 = vld [vmem:[#allocation2 + $0x1e8] sm:$0xff]
    %v1933 = vld [vmem:[#allocation2 + $0x1f0] sm:$0xff]
    %v1934 = vld [vmem:[#allocation2 + $0x1f8] sm:$0xff]
    %v1935 = vld [vmem:[#allocation2 + $0x200] sm:$0xff]
    %v1936 = vld [vmem:[#allocation2 + $0x208] sm:$0xff]
    %v1937 = vld [vmem:[#allocation2 + $0x210] sm:$0xff]
    %v1938 = vld [vmem:[#allocation2 + $0x218] sm:$0xff]
    %v1939 = vld [vmem:[#allocation2 + $0x220] sm:$0xff]
    %v1940 = vld [vmem:[#allocation2 + $0x228] sm:$0xff]
    %v1941 = vld [vmem:[#allocation2 + $0x230] sm:$0xff]
    %v1942 = vld [vmem:[#allocation2 + $0x238] sm:$0xff]
    %v1943 = vld [vmem:[#allocation2 + $0x240] sm:$0xff]
    %v1944 = vld [vmem:[#allocation2 + $0x248] sm:$0xff]
    %v1945 = vld [vmem:[#allocation2 + $0x250] sm:$0xff]
    %v1946 = vld [vmem:[#allocation2 + $0x258] sm:$0xff]
    %v1947 = vld [vmem:[#allocation2 + $0x260] sm:$0xff]
    %v1948 = vld [vmem:[#allocation2 + $0x268] sm:$0xff]
    %v1949 = vld [vmem:[#allocation2 + $0x270] sm:$0xff]
    %v1950 = vld [vmem:[#allocation2 + $0x278] sm:$0xff]
    %v1951 = vld [vmem:[#allocation2 + $0x280] sm:$0xff]
    %v1952 = vld [vmem:[#allocation2 + $0x288] sm:$0xff]
    %v1953 = vld [vmem:[#allocation2 + $0x290] sm:$0xff]
    %v1954 = vld [vmem:[#allocation2 + $0x298] sm:$0xff]
    %v1955 = vld [vmem:[#allocation2 + $0x2a0] sm:$0xff]
    %v1956 = vld [vmem:[#allocation2 + $0x2a8] sm:$0xff]
    %v1957 = vld [vmem:[#allocation2 + $0x2b0] sm:$0xff]
    %v1958 = vld [vmem:[#allocation2 + $0x2b8] sm:$0xff]
    %v1959 = vld [vmem:[#allocation2 + $0x2c0] sm:$0xff]
    %v1960 = vld [vmem:[#allocation2 + $0x2c8] sm:$0xff]
    %v1961 = vld [vmem:[#allocation2 + $0x2d0] sm:$0xff]
    %v1962 = vld [vmem:[#allocation2 + $0x2d8] sm:$0xff]
    %v1963 = vld [vmem:[#allocation2 + $0x2e0] sm:$0xff]
    %v1964 = vld [vmem:[#allocation2 + $0x2e8] sm:$0xff]
    %v1965 = vld [vmem:[#allocation2 + $0x2f0] sm:$0xff]
    %v1966 = vld [vmem:[#allocation2 + $0x2f8] sm:$0xff]
    %v1968 = vsel %vm744, %v49, 0
    %1970 = vmatprep.subr.mxu0 %v1872
    %1971 = vmatpush1.msra.mxu0 %v1871
    %1972 = vmatprep.subr.mxu0 %v1884
    %1973 = vmatpush1.msra.mxu0 %v1883
    %1974 = vmatprep.subr.mxu0 %v1896
    %1975 = vmatpush1.msra.mxu0 %v1895
    %1976 = vmatprep.subr.mxu0 %v1908
    %1977 = vmatpush1.msra.mxu0 %v1907
    %1978 = vmatprep.subr.mxu0 %v1920
    %1979 = vmatpush1.msra.mxu0 %v1919
    %1980 = vmatprep.subr.mxu0 %v1932
    %1981 = vmatpush1.msra.mxu0 %v1931
    %1982 = vmatprep.subr.mxu0 %v1944
    %1983 = vmatpush1.msra.mxu0 %v1943
    %1984 = vmatprep.subr.mxu0 %v1956
    %1985 = vmatpush1.msra.mxu0 %v1955
    %1986 = vmatprep.subr.mxu0 0.0
    %1987 = vmatpush1.msra.mxu0 0.0
    %1988 = vmatprep.subr.mxu0 0.0
    %1989 = vmatpush1.msra.mxu0 0.0
    %1990 = vmatprep.subr.mxu0 0.0
    %1991 = vmatpush1.msra.mxu0 0.0
    %1992 = vmatprep.subr.mxu0 0.0
    %1993 = vmatpush1.msra.mxu0 0.0
    %1994 = vmatprep.subr.mxu0 0.0
    %1995 = vmatpush1.msra.mxu0 0.0
    %1996 = vmatprep.subr.mxu0 0.0
    %1997 = vmatpush1.msra.mxu0 0.0
    %1998 = vmatprep.subr.mxu0 0.0
    %1999 = vmatpush1.msra.mxu0 0.0
    %2000 = vmatprep.subr.mxu0 0.0
    %2001 = vmatpush1.msra.mxu0 0.0
    %2002 = vmatprep.subr.mxu0 0.0
    %2003 = vmatpush1.msra.mxu0 0.0
    %2004 = vmatprep.subr.mxu0 0.0
    %2005 = vmatpush1.msra.mxu0 0.0
    %2006 = vmatprep.subr.mxu0 0.0
    %2007 = vmatpush1.msra.mxu0 0.0
    %2008 = vmatprep.subr.mxu0 0.0
    %2009 = vmatpush1.msra.mxu0 0.0
    %2010 = vmatprep.subr.mxu0 0.0
    %2011 = vmatpush1.msra.mxu0 0.0
    %2012 = vmatprep.subr.mxu0 0.0
    %2013 = vmatpush1.msra.mxu0 0.0
    %2014 = vmatprep.subr.mxu0 0.0
    %2015 = vmatpush1.msra.mxu0 0.0
    %2016 = vmatprep.subr.mxu0 0.0
    %2017 = vmatpush1.msra.mxu0 0.0
    %2018 = vmatprep.subr.mxu0 0.0
    %2019 = vmatpush1.msra.mxu0 0.0
    %2020 = vmatprep.subr.mxu0 0.0
    %2021 = vmatpush1.msra.mxu0 0.0
    %2022 = vmatprep.subr.mxu0 0.0
    %2023 = vmatpush1.msra.mxu0 0.0
    %2024 = vmatprep.subr.mxu0 0.0
    %2025 = vmatpush1.msra.mxu0 0.0
    %2026 = vmatprep.subr.mxu0 0.0
    %2027 = vmatpush1.msra.mxu0 0.0
    %2028 = vmatprep.subr.mxu0 0.0
    %2029 = vmatpush1.msra.mxu0 0.0
    %2030 = vmatprep.subr.mxu0 0.0
    %2031 = vmatpush1.msra.mxu0 0.0
    %2032 = vmatprep.subr.mxu0 0.0
    %2033 = vmatpush1.msra.mxu0 0.0
    %2034 = vmatprep.mubr.f32.mxu0 0.0
    %2035 = vmatmul.mubr.f32.gmra.mrb[0].mxu0 %v1968
    %v2036 = vpop.f32.mrb[0].mxu0
    %v2037 = vadd.f32 0.0, %v2036
    %v2038 = vpop.f32.mrb[0].mxu0
    %v2039 = vadd.f32 0.0, %v2038
    %2040 = vdwg.mxu0
    %2041 = vmatprep.subr.mxu0 %v1874
    %2042 = vmatpush1.msra.mxu0 %v1873
    %2043 = vmatprep.subr.mxu0 %v1886
    %2044 = vmatpush1.msra.mxu0 %v1885
    %2045 = vmatprep.subr.mxu0 %v1898
    %2046 = vmatpush1.msra.mxu0 %v1897
    %2047 = vmatprep.subr.mxu0 %v1910
    %2048 = vmatpush1.msra.mxu0 %v1909
    %2049 = vmatprep.subr.mxu0 %v1922
    %2050 = vmatpush1.msra.mxu0 %v1921
    %2051 = vmatprep.subr.mxu0 %v1934
    %2052 = vmatpush1.msra.mxu0 %v1933
    %2053 = vmatprep.subr.mxu0 %v1946
    %2054 = vmatpush1.msra.mxu0 %v1945
    %2055 = vmatprep.subr.mxu0 %v1958
    %2056 = vmatpush1.msra.mxu0 %v1957
    %2057 = vmatprep.subr.mxu0 0.0
    %2058 = vmatpush1.msra.mxu0 0.0
    %2059 = vmatprep.subr.mxu0 0.0
    %2060 = vmatpush1.msra.mxu0 0.0
    %2061 = vmatprep.subr.mxu0 0.0
    %2062 = vmatpush1.msra.mxu0 0.0
    %2063 = vmatprep.subr.mxu0 0.0
    %2064 = vmatpush1.msra.mxu0 0.0
    %2065 = vmatprep.subr.mxu0 0.0
    %2066 = vmatpush1.msra.mxu0 0.0
    %2067 = vmatprep.subr.mxu0 0.0
    %2068 = vmatpush1.msra.mxu0 0.0
    %2069 = vmatprep.subr.mxu0 0.0
    %2070 = vmatpush1.msra.mxu0 0.0
    %2071 = vmatprep.subr.mxu0 0.0
    %2072 = vmatpush1.msra.mxu0 0.0
    %2073 = vmatprep.subr.mxu0 0.0
    %2074 = vmatpush1.msra.mxu0 0.0
    %2075 = vmatprep.subr.mxu0 0.0
    %2076 = vmatpush1.msra.mxu0 0.0
    %2077 = vmatprep.subr.mxu0 0.0
    %2078 = vmatpush1.msra.mxu0 0.0
    %2079 = vmatprep.subr.mxu0 0.0
    %2080 = vmatpush1.msra.mxu0 0.0
    %2081 = vmatprep.subr.mxu0 0.0
    %2082 = vmatpush1.msra.mxu0 0.0
    %2083 = vmatprep.subr.mxu0 0.0
    %2084 = vmatpush1.msra.mxu0 0.0
    %2085 = vmatprep.subr.mxu0 0.0
    %2086 = vmatpush1.msra.mxu0 0.0
    %2087 = vmatprep.subr.mxu0 0.0
    %2088 = vmatpush1.msra.mxu0 0.0
    %2089 = vmatprep.subr.mxu0 0.0
    %2090 = vmatpush1.msra.mxu0 0.0
    %2091 = vmatprep.subr.mxu0 0.0
    %2092 = vmatpush1.msra.mxu0 0.0
    %2093 = vmatprep.subr.mxu0 0.0
    %2094 = vmatpush1.msra.mxu0 0.0
    %2095 = vmatprep.subr.mxu0 0.0
    %2096 = vmatpush1.msra.mxu0 0.0
    %2097 = vmatprep.subr.mxu0 0.0
    %2098 = vmatpush1.msra.mxu0 0.0
    %2099 = vmatprep.subr.mxu0 0.0
    %2100 = vmatpush1.msra.mxu0 0.0
    %2101 = vmatprep.subr.mxu0 0.0
    %2102 = vmatpush1.msra.mxu0 0.0
    %2103 = vmatprep.subr.mxu0 0.0
    %2104 = vmatpush1.msra.mxu0 0.0
    %2105 = vmatprep.mubr.f32.mxu0 0.0
    %2106 = vmatmul.mubr.f32.gmra.mrb[0].mxu0 %v1968
    %v2107 = vpop.f32.mrb[0].mxu0
    %v2108 = vadd.f32 0.0, %v2107
    %v2109 = vpop.f32.mrb[0].mxu0
    %v2110 = vadd.f32 0.0, %v2109
    %2111 = vdwg.mxu0
    %2112 = vmatprep.subr.mxu0 %v1876
    %2113 = vmatpush1.msra.mxu0 %v1875
    %2114 = vmatprep.subr.mxu0 %v1888
    %2115 = vmatpush1.msra.mxu0 %v1887
    %2116 = vmatprep.subr.mxu0 %v1900
    %2117 = vmatpush1.msra.mxu0 %v1899
    %2118 = vmatprep.subr.mxu0 %v1912
    %2119 = vmatpush1.msra.mxu0 %v1911
    %2120 = vmatprep.subr.mxu0 %v1924
    %2121 = vmatpush1.msra.mxu0 %v1923
    %2122 = vmatprep.subr.mxu0 %v1936
    %2123 = vmatpush1.msra.mxu0 %v1935
    %2124 = vmatprep.subr.mxu0 %v1948
    %2125 = vmatpush1.msra.mxu0 %v1947
    %2126 = vmatprep.subr.mxu0 %v1960
    %2127 = vmatpush1.msra.mxu0 %v1959
    %2128 = vmatprep.subr.mxu0 0.0
    %2129 = vmatpush1.msra.mxu0 0.0
    %2130 = vmatprep.subr.mxu0 0.0
    %2131 = vmatpush1.msra.mxu0 0.0
    %2132 = vmatprep.subr.mxu0 0.0
    %2133 = vmatpush1.msra.mxu0 0.0
    %2134 = vmatprep.subr.mxu0 0.0
    %2135 = vmatpush1.msra.mxu0 0.0
    %2136 = vmatprep.subr.mxu0 0.0
    %2137 = vmatpush1.msra.mxu0 0.0
    %2138 = vmatprep.subr.mxu0 0.0
    %2139 = vmatpush1.msra.mxu0 0.0
    %2140 = vmatprep.subr.mxu0 0.0
    %2141 = vmatpush1.msra.mxu0 0.0
    %2142 = vmatprep.subr.mxu0 0.0
    %2143 = vmatpush1.msra.mxu0 0.0
    %2144 = vmatprep.subr.mxu0 0.0
    %2145 = vmatpush1.msra.mxu0 0.0
    %2146 = vmatprep.subr.mxu0 0.0
    %2147 = vmatpush1.msra.mxu0 0.0
    %2148 = vmatprep.subr.mxu0 0.0
    %2149 = vmatpush1.msra.mxu0 0.0
    %2150 = vmatprep.subr.mxu0 0.0
    %2151 = vmatpush1.msra.mxu0 0.0
    %2152 = vmatprep.subr.mxu0 0.0
    %2153 = vmatpush1.msra.mxu0 0.0
    %2154 = vmatprep.subr.mxu0 0.0
    %2155 = vmatpush1.msra.mxu0 0.0
    %2156 = vmatprep.subr.mxu0 0.0
    %2157 = vmatpush1.msra.mxu0 0.0
    %2158 = vmatprep.subr.mxu0 0.0
    %2159 = vmatpush1.msra.mxu0 0.0
    %2160 = vmatprep.subr.mxu0 0.0
    %2161 = vmatpush1.msra.mxu0 0.0
    %2162 = vmatprep.subr.mxu0 0.0
    %2163 = vmatpush1.msra.mxu0 0.0
    %2164 = vmatprep.subr.mxu0 0.0
    %2165 = vmatpush1.msra.mxu0 0.0
    %2166 = vmatprep.subr.mxu0 0.0
    %2167 = vmatpush1.msra.mxu0 0.0
    %2168 = vmatprep.subr.mxu0 0.0
    %2169 = vmatpush1.msra.mxu0 0.0
    %2170 = vmatprep.subr.mxu0 0.0
    %2171 = vmatpush1.msra.mxu0 0.0
    %2172 = vmatprep.subr.mxu0 0.0
    %2173 = vmatpush1.msra.mxu0 0.0
    %2174 = vmatprep.subr.mxu0 0.0
    %2175 = vmatpush1.msra.mxu0 0.0
    %2176 = vmatprep.mubr.f32.mxu0 0.0
    %2177 = vmatmul.mubr.f32.gmra.mrb[0].mxu0 %v1968
    %v2178 = vpop.f32.mrb[0].mxu0
    %v2179 = vadd.f32 0.0, %v2178
    %v2180 = vpop.f32.mrb[0].mxu0
    %v2181 = vadd.f32 0.0, %v2180
    %2182 = vdwg.mxu0
    %2183 = vmatprep.subr.mxu0 %v1878
    %2184 = vmatpush1.msra.mxu0 %v1877
    %2185 = vmatprep.subr.mxu0 %v1890
    %2186 = vmatpush1.msra.mxu0 %v1889
    %2187 = vmatprep.subr.mxu0 %v1902
    %2188 = vmatpush1.msra.mxu0 %v1901
    %2189 = vmatprep.subr.mxu0 %v1914
    %2190 = vmatpush1.msra.mxu0 %v1913
    %2191 = vmatprep.subr.mxu0 %v1926
    %2192 = vmatpush1.msra.mxu0 %v1925
    %2193 = vmatprep.subr.mxu0 %v1938
    %2194 = vmatpush1.msra.mxu0 %v1937
    %2195 = vmatprep.subr.mxu0 %v1950
    %2196 = vmatpush1.msra.mxu0 %v1949
    %2197 = vmatprep.subr.mxu0 %v1962
    %2198 = vmatpush1.msra.mxu0 %v1961
    %2199 = vmatprep.subr.mxu0 0.0
    %2200 = vmatpush1.msra.mxu0 0.0
    %2201 = vmatprep.subr.mxu0 0.0
    %2202 = vmatpush1.msra.mxu0 0.0
    %2203 = vmatprep.subr.mxu0 0.0
    %2204 = vmatpush1.msra.mxu0 0.0
    %2205 = vmatprep.subr.mxu0 0.0
    %2206 = vmatpush1.msra.mxu0 0.0
    %2207 = vmatprep.subr.mxu0 0.0
    %2208 = vmatpush1.msra.mxu0 0.0
    %2209 = vmatprep.subr.mxu0 0.0
    %2210 = vmatpush1.msra.mxu0 0.0
    %2211 = vmatprep.subr.mxu0 0.0
    %2212 = vmatpush1.msra.mxu0 0.0
    %2213 = vmatprep.subr.mxu0 0.0
    %2214 = vmatpush1.msra.mxu0 0.0
    %2215 = vmatprep.subr.mxu0 0.0
    %2216 = vmatpush1.msra.mxu0 0.0
    %2217 = vmatprep.subr.mxu0 0.0
    %2218 = vmatpush1.msra.mxu0 0.0
    %2219 = vmatprep.subr.mxu0 0.0
    %2220 = vmatpush1.msra.mxu0 0.0
    %2221 = vmatprep.subr.mxu0 0.0
    %2222 = vmatpush1.msra.mxu0 0.0
    %2223 = vmatprep.subr.mxu0 0.0
    %2224 = vmatpush1.msra.mxu0 0.0
    %2225 = vmatprep.subr.mxu0 0.0
    %2226 = vmatpush1.msra.mxu0 0.0
    %2227 = vmatprep.subr.mxu0 0.0
    %2228 = vmatpush1.msra.mxu0 0.0
    %2229 = vmatprep.subr.mxu0 0.0
    %2230 = vmatpush1.msra.mxu0 0.0
    %2231 = vmatprep.subr.mxu0 0.0
    %2232 = vmatpush1.msra.mxu0 0.0
    %2233 = vmatprep.subr.mxu0 0.0
    %2234 = vmatpush1.msra.mxu0 0.0
    %2235 = vmatprep.subr.mxu0 0.0
    %2236 = vmatpush1.msra.mxu0 0.0
    %2237 = vmatprep.subr.mxu0 0.0
    %2238 = vmatpush1.msra.mxu0 0.0
    %2239 = vmatprep.subr.mxu0 0.0
    %2240 = vmatpush1.msra.mxu0 0.0
    %2241 = vmatprep.subr.mxu0 0.0
    %2242 = vmatpush1.msra.mxu0 0.0
    %2243 = vmatprep.subr.mxu0 0.0
    %2244 = vmatpush1.msra.mxu0 0.0
    %2245 = vmatprep.subr.mxu0 0.0
    %2246 = vmatpush1.msra.mxu0 0.0
    %2247 = vmatprep.mubr.f32.mxu0 0.0
    %2248 = vmatmul.mubr.f32.gmra.mrb[0].mxu0 %v1968
    %v2249 = vpop.f32.mrb[0].mxu0
    %v2250 = vadd.f32 0.0, %v2249
    %v2251 = vpop.f32.mrb[0].mxu0
    %v2252 = vadd.f32 0.0, %v2251
    %2253 = vdwg.mxu0
    %2254 = vmatprep.subr.mxu0 %v1880
    %2255 = vmatpush1.msra.mxu0 %v1879
    %2256 = vmatprep.subr.mxu0 %v1892
    %2257 = vmatpush1.msra.mxu0 %v1891
    %2258 = vmatprep.subr.mxu0 %v1904
    %2259 = vmatpush1.msra.mxu0 %v1903
    %2260 = vmatprep.subr.mxu0 %v1916
    %2261 = vmatpush1.msra.mxu0 %v1915
    %2262 = vmatprep.subr.mxu0 %v1928
    %2263 = vmatpush1.msra.mxu0 %v1927
    %2264 = vmatprep.subr.mxu0 %v1940
    %2265 = vmatpush1.msra.mxu0 %v1939
    %2266 = vmatprep.subr.mxu0 %v1952
    %2267 = vmatpush1.msra.mxu0 %v1951
    %2268 = vmatprep.subr.mxu0 %v1964
    %2269 = vmatpush1.msra.mxu0 %v1963
    %2270 = vmatprep.subr.mxu0 0.0
    %2271 = vmatpush1.msra.mxu0 0.0
    %2272 = vmatprep.subr.mxu0 0.0
    %2273 = vmatpush1.msra.mxu0 0.0
    %2274 = vmatprep.subr.mxu0 0.0
    %2275 = vmatpush1.msra.mxu0 0.0
    %2276 = vmatprep.subr.mxu0 0.0
    %2277 = vmatpush1.msra.mxu0 0.0
    %2278 = vmatprep.subr.mxu0 0.0
    %2279 = vmatpush1.msra.mxu0 0.0
    %2280 = vmatprep.subr.mxu0 0.0
    %2281 = vmatpush1.msra.mxu0 0.0
    %2282 = vmatprep.subr.mxu0 0.0
    %2283 = vmatpush1.msra.mxu0 0.0
    %2284 = vmatprep.subr.mxu0 0.0
    %2285 = vmatpush1.msra.mxu0 0.0
    %2286 = vmatprep.subr.mxu0 0.0
    %2287 = vmatpush1.msra.mxu0 0.0
    %2288 = vmatprep.subr.mxu0 0.0
    %2289 = vmatpush1.msra.mxu0 0.0
    %2290 = vmatprep.subr.mxu0 0.0
    %2291 = vmatpush1.msra.mxu0 0.0
    %2292 = vmatprep.subr.mxu0 0.0
    %2293 = vmatpush1.msra.mxu0 0.0
    %2294 = vmatprep.subr.mxu0 0.0
    %2295 = vmatpush1.msra.mxu0 0.0
    %2296 = vmatprep.subr.mxu0 0.0
    %2297 = vmatpush1.msra.mxu0 0.0
    %2298 = vmatprep.subr.mxu0 0.0
    %2299 = vmatpush1.msra.mxu0 0.0
    %2300 = vmatprep.subr.mxu0 0.0
    %2301 = vmatpush1.msra.mxu0 0.0
    %2302 = vmatprep.subr.mxu0 0.0
    %2303 = vmatpush1.msra.mxu0 0.0
    %2304 = vmatprep.subr.mxu0 0.0
    %2305 = vmatpush1.msra.mxu0 0.0
    %2306 = vmatprep.subr.mxu0 0.0
    %2307 = vmatpush1.msra.mxu0 0.0
    %2308 = vmatprep.subr.mxu0 0.0
    %2309 = vmatpush1.msra.mxu0 0.0
    %2310 = vmatprep.subr.mxu0 0.0
    %2311 = vmatpush1.msra.mxu0 0.0
    %2312 = vmatprep.subr.mxu0 0.0
    %2313 = vmatpush1.msra.mxu0 0.0
    %2314 = vmatprep.subr.mxu0 0.0
    %2315 = vmatpush1.msra.mxu0 0.0
    %2316 = vmatprep.subr.mxu0 0.0
    %2317 = vmatpush1.msra.mxu0 0.0
    %2318 = vmatprep.mubr.f32.mxu0 0.0
    %2319 = vmatmul.mubr.f32.gmra.mrb[0].mxu0 %v1968
    %v2320 = vpop.f32.mrb[0].mxu0
    %v2321 = vadd.f32 0.0, %v2320
    %v2322 = vpop.f32.mrb[0].mxu0
    %v2323 = vadd.f32 0.0, %v2322
    %2324 = vdwg.mxu0
    %2325 = vmatprep.subr.mxu0 %v1882
    %2326 = vmatpush1.msra.mxu0 %v1881
    %2327 = vmatprep.subr.mxu0 %v1894
    %2328 = vmatpush1.msra.mxu0 %v1893
    %2329 = vmatprep.subr.mxu0 %v1906
    %2330 = vmatpush1.msra.mxu0 %v1905
    %2331 = vmatprep.subr.mxu0 %v1918
    %2332 = vmatpush1.msra.mxu0 %v1917
    %2333 = vmatprep.subr.mxu0 %v1930
    %2334 = vmatpush1.msra.mxu0 %v1929
    %2335 = vmatprep.subr.mxu0 %v1942
    %2336 = vmatpush1.msra.mxu0 %v1941
    %2337 = vmatprep.subr.mxu0 %v1954
    %2338 = vmatpush1.msra.mxu0 %v1953
    %2339 = vmatprep.subr.mxu0 %v1966
    %2340 = vmatpush1.msra.mxu0 %v1965
    %2341 = vmatprep.subr.mxu0 0.0
    %2342 = vmatpush1.msra.mxu0 0.0
    %2343 = vmatprep.subr.mxu0 0.0
    %2344 = vmatpush1.msra.mxu0 0.0
    %2345 = vmatprep.subr.mxu0 0.0
    %2346 = vmatpush1.msra.mxu0 0.0
    %2347 = vmatprep.subr.mxu0 0.0
    %2348 = vmatpush1.msra.mxu0 0.0
    %2349 = vmatprep.subr.mxu0 0.0
    %2350 = vmatpush1.msra.mxu0 0.0
    %2351 = vmatprep.subr.mxu0 0.0
    %2352 = vmatpush1.msra.mxu0 0.0
    %2353 = vmatprep.subr.mxu0 0.0
    %2354 = vmatpush1.msra.mxu0 0.0
    %2355 = vmatprep.subr.mxu0 0.0
    %2356 = vmatpush1.msra.mxu0 0.0
    %2357 = vmatprep.subr.mxu0 0.0
    %2358 = vmatpush1.msra.mxu0 0.0
    %2359 = vmatprep.subr.mxu0 0.0
    %2360 = vmatpush1.msra.mxu0 0.0
    %2361 = vmatprep.subr.mxu0 0.0
    %2362 = vmatpush1.msra.mxu0 0.0
    %2363 = vmatprep.subr.mxu0 0.0
    %2364 = vmatpush1.msra.mxu0 0.0
    %2365 = vmatprep.subr.mxu0 0.0
    %2366 = vmatpush1.msra.mxu0 0.0
    %2367 = vmatprep.subr.mxu0 0.0
    %2368 = vmatpush1.msra.mxu0 0.0
    %2369 = vmatprep.subr.mxu0 0.0
    %2370 = vmatpush1.msra.mxu0 0.0
    %2371 = vmatprep.subr.mxu0 0.0
    %2372 = vmatpush1.msra.mxu0 0.0
    %2373 = vmatprep.subr.mxu0 0.0
    %2374 = vmatpush1.msra.mxu0 0.0
    %2375 = vmatprep.subr.mxu0 0.0
    %2376 = vmatpush1.msra.mxu0 0.0
    %2377 = vmatprep.subr.mxu0 0.0
    %2378 = vmatpush1.msra.mxu0 0.0
    %2379 = vmatprep.subr.mxu0 0.0
    %2380 = vmatpush1.msra.mxu0 0.0
    %2381 = vmatprep.subr.mxu0 0.0
    %2382 = vmatpush1.msra.mxu0 0.0
    %2383 = vmatprep.subr.mxu0 0.0
    %2384 = vmatpush1.msra.mxu0 0.0
    %2385 = vmatprep.subr.mxu0 0.0
    %2386 = vmatpush1.msra.mxu0 0.0
    %2387 = vmatprep.subr.mxu0 0.0
    %2388 = vmatpush1.msra.mxu0 0.0
    %2389 = vmatprep.mubr.f32.mxu0 0.0
    %2390 = vmatmul.mubr.f32.gmra.mrb[0].mxu0 %v1968
    %v2391 = vpop.f32.mrb[0].mxu0
    %v2392 = vadd.f32 0.0, %v2391
    %v2393 = vpop.f32.mrb[0].mxu0
    %v2394 = vadd.f32 0.0, %v2393
    %2395 = vdwg.mxu0
    %2396 = vset.pattern.permute.xlu0 64
    %2397 = vperm.xlu0 %2396, %v49
    %v2398 = vpop.permute.xlu0 %2397
    %v2400 = vadd.f32 %v2037, %v2398
    %v2401 = vadd.f32 %v2039, %v2398
    %v2402 = vtanh.pop %v2400
    %v2403 = vtanh.pop %v2401
    %v2404 = vmul.f32 %v2402, %v2402
    %v2405 = vmul.f32 %v2403, %v2403
    %v2406 = vsub.f32 1.0, %v2404
    %v2407 = vsub.f32 1.0, %v2405
    %v2408 = vmul.f32 %v2402, -2.0
    %v2409 = vmul.f32 %v2403, -2.0
    %v2410 = vmul.f32 %v2408, %v2406
    %v2411 = vmul.f32 %v2409, %v2407
    %v2412 = vmul.f32 %v2406, %v2108
    %v2413 = vmul.f32 %v2407, %v2110
    %v2414 = vmul.f32 %v2406, %v2179
    %v2415 = vmul.f32 %v2407, %v2181
    %v2416 = vmul.f32 %v2410, %v2108
    %v2417 = vmul.f32 %v2411, %v2110
    %v2418 = vmul.f32 %v2416, %v2108
    %v2419 = vmul.f32 %v2417, %v2110
    %v2420 = vmul.f32 %v2406, %v2250
    %v2421 = vmul.f32 %v2407, %v2252
    %v2422 = vadd.f32 %v2418, %v2420
    %v2423 = vadd.f32 %v2419, %v2421
    %v2424 = vmul.f32 %v2416, %v2179
    %v2425 = vmul.f32 %v2417, %v2181
    %v2426 = vmul.f32 %v2406, %v2321
    %v2427 = vmul.f32 %v2407, %v2323
    %v2428 = vadd.f32 %v2424, %v2426
    %v2429 = vadd.f32 %v2425, %v2427
    %v2430 = vmul.f32 %v2410, %v2179
    %v2431 = vmul.f32 %v2411, %v2181
    %v2432 = vmul.f32 %v2430, %v2179
    %v2433 = vmul.f32 %v2431, %v2181
    %v2434 = vmul.f32 %v2406, %v2392
    %v2435 = vmul.f32 %v2407, %v2394
    %v2436 = vadd.f32 %v2432, %v2434
    %v2437 = vadd.f32 %v2433, %v2435
    %v2438 = vmul.f32 %v38, 3.1415927
    %v2439 = vand.u32 2147483647, %v2438
    %vm2440 = vcmp.le.f32.partialorder %v2439, 0.7853982
    %vm2441 = vcmp.lt.s32.totalorder %v2438, 0
    %v2442 = vand.u32 %v2438, 2139095040
    %v2443 = vshrl.u32 %v2442, 23
    %v2444 = vsub.s32 %v2443, 127
    %v2445 = vand.u32 2147483647, %v2438
    %v2446 = vand.u32 %v2445, 8388607
    %v2447 = vor.u32 %v2446, 8388608
    %v2448 = vsub.s32 0, %v2447
    %v2449 = vadd.s32 %v2444, 1
    %vm2450 = vcmp.gt.s32.totalorder %v2449, 0
    %v2451 = vsel %vm2450, %v2449, 0
    %v2452 = vshrl.u32 %v2451, 5
    %v2453 = vand.u32 %v2451, 31
    %v2454 = vsub.s32 32, %v2453
    %v2455 = vshrl.u32 683565275, %v2454
    %v2456 = vshll.u32 683565275, %v2453
    %v2457 = vshrl.u32 2475754826, %v2454
    %v2458 = vor.u32 %v2456, %v2457
    %v2459 = vshll.u32 2475754826, %v2453
    %v2460 = vshrl.u32 2131351028, %v2454
    %v2461 = vor.u32 %v2459, %v2460
    %v2462 = vshll.u32 2131351028, %v2453
    %v2463 = vshrl.u32 2102212464, %v2454
    %v2464 = vor.u32 %v2462, %v2463
    %v2465 = vshll.u32 2102212464, %v2453
    %v2466 = vshrl.u32 920167782, %v2454
    %v2467 = vor.u32 %v2465, %v2466
    %v2468 = vshll.u32 920167782, %v2453
    %v2469 = vshrl.u32 1326507024, %v2454
    %v2470 = vor.u32 %v2468, %v2469
    %vm2471 = vcmp.lt.s32.totalorder %v2452, 1
    %vm2472 = vcmp.lt.s32.totalorder %v2452, 2
    %vm2473 = vcmp.lt.s32.totalorder %v2452, 3
    %vm2474 = vcmp.lt.s32.totalorder %v2452, 4
    %v2475 = vsel %vm2471, %v2455, %v2458
    %v2476 = vsel %vm2474, %v2464, 2102212464
    %v2477 = vsel %vm2473, %v2461, %v2476
    %v2478 = vsel %vm2472, %v2475, %v2477
    %v2479 = vsel %vm2471, %v2458, %v2461
    %v2480 = vsel %vm2474, %v2467, 920167782
    %v2481 = vsel %vm2473, %v2464, %v2480
    %v2482 = vsel %vm2472, %v2479, %v2481
    %v2483 = vsel %vm2471, %v2461, %v2464
    %v2484 = vsel %vm2474, %v2470, 1326507024
    %v2485 = vsel %vm2473, %v2467, %v2484
    %v2486 = vsel %vm2472, %v2483, %v2485
    %v2487 = vshll.u32 %v2447, 8
    %v2488 = vmul.u32.u64.compose %v2487, %v2486
    %v2489 = vextract.low.u32 %v2488
    %v2490 = vextract.high.u32 %v2488
    %v2491 = vmul.u32.u64.compose %v2487, %v2482
    %v2492 = vextract.low.u32 %v2491
    %v2493 = vextract.high.u32 %v2491
    %v2494 = vmul.u32 %v2487, %v2478
    %v2495 = vadd.s32 %v2490, %v2492
    %vm2496 = vc.u32 %v2490, %v2492
    %v2497 = vadd.s32 %v2493, 1
    %v2498 = vsel %vm2496, %v2497, %v2493
    %v2499 = vadd.s32 %v2494, %v2498
    %v2500 = vadd.s32 %v2499, 536870912
    %v2501 = vshrl.u32 %v2500, 30
    %v2502 = vshll.u32 %v2501, 30
    %v2503 = vsub.s32 %v2499, %v2502
    %vm2504 = vcmp.lt.s32.totalorder %v2503, 0
    %v2505 = vsub.s32 0, %v2503
    %v2506 = vsel %vm2504, %v2505, %v2503
    %v2507 = vclz %v2506
    %v2508 = vsub.s32 %v2507, 2
    %vm2509 = vcmp.gt.s32.totalorder 0, %v2508
    %v2510 = vsel %vm2509, 0, %v2508
    %v2511 = vsub.s32 32, %v2510
    %v2512 = vshll.u32 %v2503, %v2510
    %v2513 = vshrl.u32 %v2495, %v2511
    %v2514 = vor.u32 %v2512, %v2513
    %v2515 = vsub.s32 4294967266, %v2510
    %v2516 = vadd.s32 %v2515, 127
    %v2517 = vshll.u32 %v2516, 23
    %v2518 = vor.u32 4788187, %v2517
    %v2519 = vand.u32 2147483647, %v2518
    %v2521 = vcvt.s32.f32 %v2514
    %v2522 = vmul.f32 %v2521, %v2519
    %v2523 = vxor.u32 %v2522, 2147483648
    %v2524 = vsel %vm2441, %v2523, %v2522
    %v2525 = vsub.s32 4, %v2501
    %v2526 = vsel %vm2441, %v2525, %v2501
    %v2527 = vsel %vm2440, %v2438, %v2524
    %v2528 = vsel %vm2440, 0, %v2526
    %v2529 = vcosq.f32.pop %v2527
    %v2530 = vsinq.f32.pop %v2527
    %vm2531 = vweird.f32 %v2438
    %v2532 = vadd.s32 %v2528, 3
    %v2533 = vand.u32 %v2532, 3
    %vm2534 = vcmp.lt.s32.totalorder %v2533, 2
    %vm2535 = vcmp.eq.s32.totalorder %v2533, 0
    %v2536 = vxor.u32 %v2530, 2147483648
    %v2537 = vsel %vm2535, %v2529, %v2536
    %vm2538 = vcmp.eq.s32.totalorder %v2533, 2
    %v2539 = vxor.u32 %v2529, 2147483648
    %v2540 = vsel %vm2538, %v2539, %v2530
    %v2541 = vsel %vm2534, %v2537, %v2540
    %v2542 = vsel %vm2531, nan, %v2541
    %v2543 = vand.u32 2147483647, %v2438
    %vm2544 = vcmp.le.f32.partialorder %v2543, 0.7853982
    %vm2545 = vcmp.lt.s32.totalorder %v2438, 0
    %v2546 = vand.u32 %v2438, 2139095040
    %v2547 = vshrl.u32 %v2546, 23
    %v2548 = vsub.s32 %v2547, 127
    %v2549 = vand.u32 2147483647, %v2438
    %v2550 = vand.u32 %v2549, 8388607
    %v2551 = vor.u32 %v2550, 8388608
    %v2552 = vsub.s32 0, %v2551
    %v2553 = vadd.s32 %v2548, 1
    %vm2554 = vcmp.gt.s32.totalorder %v2553, 0
    %v2555 = vsel %vm2554, %v2553, 0
    %v2556 = vshrl.u32 %v2555, 5
    %v2557 = vand.u32 %v2555, 31
    %v2558 = vsub.s32 32, %v2557
    %v2559 = vshrl.u32 683565275, %v2558
    %v2560 = vshll.u32 683565275, %v2557
    %v2561 = vshrl.u32 2475754826, %v2558
    %v2562 = vor.u32 %v2560, %v2561
    %v2563 = vshll.u32 2475754826, %v2557
    %v2564 = vshrl.u32 2131351028, %v2558
    %v2565 = vor.u32 %v2563, %v2564
    %v2566 = vshll.u32 2131351028, %v2557
    %v2567 = vshrl.u32 2102212464, %v2558
    %v2568 = vor.u32 %v2566, %v2567
    %v2569 = vshll.u32 2102212464, %v2557
    %v2570 = vshrl.u32 920167782, %v2558
    %v2571 = vor.u32 %v2569, %v2570
    %v2572 = vshll.u32 920167782, %v2557
    %v2573 = vshrl.u32 1326507024, %v2558
    %v2574 = vor.u32 %v2572, %v2573
    %vm2575 = vcmp.lt.s32.totalorder %v2556, 1
    %vm2576 = vcmp.lt.s32.totalorder %v2556, 2
    %vm2577 = vcmp.lt.s32.totalorder %v2556, 3
    %vm2578 = vcmp.lt.s32.totalorder %v2556, 4
    %v2579 = vsel %vm2575, %v2559, %v2562
    %v2580 = vsel %vm2578, %v2568, 2102212464
    %v2581 = vsel %vm2577, %v2565, %v2580
    %v2582 = vsel %vm2576, %v2579, %v2581
    %v2583 = vsel %vm2575, %v2562, %v2565
    %v2584 = vsel %vm2578, %v2571, 920167782
    %v2585 = vsel %vm2577, %v2568, %v2584
    %v2586 = vsel %vm2576, %v2583, %v2585
    %v2587 = vsel %vm2575, %v2565, %v2568
    %v2588 = vsel %vm2578, %v2574, 1326507024
    %v2589 = vsel %vm2577, %v2571, %v2588
    %v2590 = vsel %vm2576, %v2587, %v2589
    %v2591 = vshll.u32 %v2551, 8
    %v2592 = vmul.u32.u64.compose %v2591, %v2590
    %v2593 = vextract.low.u32 %v2592
    %v2594 = vextract.high.u32 %v2592
    %v2595 = vmul.u32.u64.compose %v2591, %v2586
    %v2596 = vextract.low.u32 %v2595
    %v2597 = vextract.high.u32 %v2595
    %v2598 = vmul.u32 %v2591, %v2582
    %v2599 = vadd.s32 %v2594, %v2596
    %vm2600 = vc.u32 %v2594, %v2596
    %v2601 = vadd.s32 %v2597, 1
    %v2602 = vsel %vm2600, %v2601, %v2597
    %v2603 = vadd.s32 %v2598, %v2602
    %v2604 = vadd.s32 %v2603, 536870912
    %v2605 = vshrl.u32 %v2604, 30
    %v2606 = vshll.u32 %v2605, 30
    %v2607 = vsub.s32 %v2603, %v2606
    %vm2608 = vcmp.lt.s32.totalorder %v2607, 0
    %v2609 = vsub.s32 0, %v2607
    %v2610 = vsel %vm2608, %v2609, %v2607
    %v2611 = vclz %v2610
    %v2612 = vsub.s32 %v2611, 2
    %vm2613 = vcmp.gt.s32.totalorder 0, %v2612
    %v2614 = vsel %vm2613, 0, %v2612
    %v2615 = vsub.s32 32, %v2614
    %v2616 = vshll.u32 %v2607, %v2614
    %v2617 = vshrl.u32 %v2599, %v2615
    %v2618 = vor.u32 %v2616, %v2617
    %v2619 = vsub.s32 4294967266, %v2614
    %v2620 = vadd.s32 %v2619, 127
    %v2621 = vshll.u32 %v2620, 23
    %v2622 = vor.u32 4788187, %v2621
    %v2623 = vand.u32 2147483647, %v2622
    %v2625 = vcvt.s32.f32 %v2618
    %v2626 = vmul.f32 %v2625, %v2623
    %v2627 = vxor.u32 %v2626, 2147483648
    %v2628 = vsel %vm2545, %v2627, %v2626
    %v2629 = vsub.s32 4, %v2605
    %v2630 = vsel %vm2545, %v2629, %v2605
    %v2631 = vsel %vm2544, %v2438, %v2628
    %v2632 = vsel %vm2544, 0, %v2630
    %v2633 = vcosq.f32.pop %v2631
    %v2634 = vsinq.f32.pop %v2631
    %vm2635 = vweird.f32 %v2438
    %v2636 = vand.u32 %v2632, 3
    %vm2637 = vcmp.lt.s32.totalorder %v2636, 2
    %vm2638 = vcmp.eq.s32.totalorder %v2636, 0
    %v2639 = vxor.u32 %v2634, 2147483648
    %v2640 = vsel %vm2638, %v2633, %v2639
    %vm2641 = vcmp.eq.s32.totalorder %v2636, 2
    %v2642 = vxor.u32 %v2633, 2147483648
    %v2643 = vsel %vm2641, %v2642, %v2634
    %v2644 = vsel %vm2637, %v2640, %v2643
    %v2645 = vsel %vm2635, nan, %v2644
    %v2646 = vmul.f32 %v40, 3.1415927
    %v2647 = vand.u32 2147483647, %v2646
    %vm2648 = vcmp.le.f32.partialorder %v2647, 0.7853982
    %vm2649 = vcmp.lt.s32.totalorder %v2646, 0
    %v2650 = vand.u32 %v2646, 2139095040
    %v2651 = vshrl.u32 %v2650, 23
    %v2652 = vsub.s32 %v2651, 127
    %v2653 = vand.u32 2147483647, %v2646
    %v2654 = vand.u32 %v2653, 8388607
    %v2655 = vor.u32 %v2654, 8388608
    %v2656 = vsub.s32 0, %v2655
    %v2657 = vadd.s32 %v2652, 1
    %vm2658 = vcmp.gt.s32.totalorder %v2657, 0
    %v2659 = vsel %vm2658, %v2657, 0
    %v2660 = vshrl.u32 %v2659, 5
    %v2661 = vand.u32 %v2659, 31
    %v2662 = vsub.s32 32, %v2661
    %v2663 = vshrl.u32 683565275, %v2662
    %v2664 = vshll.u32 683565275, %v2661
    %v2665 = vshrl.u32 2475754826, %v2662
    %v2666 = vor.u32 %v2664, %v2665
    %v2667 = vshll.u32 2475754826, %v2661
    %v2668 = vshrl.u32 2131351028, %v2662
    %v2669 = vor.u32 %v2667, %v2668
    %v2670 = vshll.u32 2131351028, %v2661
    %v2671 = vshrl.u32 2102212464, %v2662
    %v2672 = vor.u32 %v2670, %v2671
    %v2673 = vshll.u32 2102212464, %v2661
    %v2674 = vshrl.u32 920167782, %v2662
    %v2675 = vor.u32 %v2673, %v2674
    %v2676 = vshll.u32 920167782, %v2661
    %v2677 = vshrl.u32 1326507024, %v2662
    %v2678 = vor.u32 %v2676, %v2677
    %vm2679 = vcmp.lt.s32.totalorder %v2660, 1
    %vm2680 = vcmp.lt.s32.totalorder %v2660, 2
    %vm2681 = vcmp.lt.s32.totalorder %v2660, 3
    %vm2682 = vcmp.lt.s32.totalorder %v2660, 4
    %v2683 = vsel %vm2679, %v2663, %v2666
    %v2684 = vsel %vm2682, %v2672, 2102212464
    %v2685 = vsel %vm2681, %v2669, %v2684
    %v2686 = vsel %vm2680, %v2683, %v2685
    %v2687 = vsel %vm2679, %v2666, %v2669
    %v2688 = vsel %vm2682, %v2675, 920167782
    %v2689 = vsel %vm2681, %v2672, %v2688
    %v2690 = vsel %vm2680, %v2687, %v2689
    %v2691 = vsel %vm2679, %v2669, %v2672
    %v2692 = vsel %vm2682, %v2678, 1326507024
    %v2693 = vsel %vm2681, %v2675, %v2692
    %v2694 = vsel %vm2680, %v2691, %v2693
    %v2695 = vshll.u32 %v2655, 8
    %v2696 = vmul.u32.u64.compose %v2695, %v2694
    %v2697 = vextract.low.u32 %v2696
    %v2698 = vextract.high.u32 %v2696
    %v2699 = vmul.u32.u64.compose %v2695, %v2690
    %v2700 = vextract.low.u32 %v2699
    %v2701 = vextract.high.u32 %v2699
    %v2702 = vmul.u32 %v2695, %v2686
    %v2703 = vadd.s32 %v2698, %v2700
    %vm2704 = vc.u32 %v2698, %v2700
    %v2705 = vadd.s32 %v2701, 1
    %v2706 = vsel %vm2704, %v2705, %v2701
    %v2707 = vadd.s32 %v2702, %v2706
    %v2708 = vadd.s32 %v2707, 536870912
    %v2709 = vshrl.u32 %v2708, 30
    %v2710 = vshll.u32 %v2709, 30
    %v2711 = vsub.s32 %v2707, %v2710
    %vm2712 = vcmp.lt.s32.totalorder %v2711, 0
    %v2713 = vsub.s32 0, %v2711
    %v2714 = vsel %vm2712, %v2713, %v2711
    %v2715 = vclz %v2714
    %v2716 = vsub.s32 %v2715, 2
    %vm2717 = vcmp.gt.s32.totalorder 0, %v2716
    %v2718 = vsel %vm2717, 0, %v2716
    %v2719 = vsub.s32 32, %v2718
    %v2720 = vshll.u32 %v2711, %v2718
    %v2721 = vshrl.u32 %v2703, %v2719
    %v2722 = vor.u32 %v2720, %v2721
    %v2723 = vsub.s32 4294967266, %v2718
    %v2724 = vadd.s32 %v2723, 127
    %v2725 = vshll.u32 %v2724, 23
    %v2726 = vor.u32 4788187, %v2725
    %v2727 = vand.u32 2147483647, %v2726
    %v2729 = vcvt.s32.f32 %v2722
    %v2730 = vmul.f32 %v2729, %v2727
    %v2731 = vxor.u32 %v2730, 2147483648
    %v2732 = vsel %vm2649, %v2731, %v2730
    %v2733 = vsub.s32 4, %v2709
    %v2734 = vsel %vm2649, %v2733, %v2709
    %v2735 = vsel %vm2648, %v2646, %v2732
    %v2736 = vsel %vm2648, 0, %v2734
    %v2737 = vcosq.f32.pop %v2735
    %v2738 = vsinq.f32.pop %v2735
    %vm2739 = vweird.f32 %v2646
    %v2740 = vadd.s32 %v2736, 3
    %v2741 = vand.u32 %v2740, 3
    %vm2742 = vcmp.lt.s32.totalorder %v2741, 2
    %vm2743 = vcmp.eq.s32.totalorder %v2741, 0
    %v2744 = vxor.u32 %v2738, 2147483648
    %v2745 = vsel %vm2743, %v2737, %v2744
    %vm2746 = vcmp.eq.s32.totalorder %v2741, 2
    %v2747 = vxor.u32 %v2737, 2147483648
    %v2748 = vsel %vm2746, %v2747, %v2738
    %v2749 = vsel %vm2742, %v2745, %v2748
    %v2750 = vsel %vm2739, nan, %v2749
    %v2751 = vand.u32 2147483647, %v2646
    %vm2752 = vcmp.le.f32.partialorder %v2751, 0.7853982
    %vm2753 = vcmp.lt.s32.totalorder %v2646, 0
    %v2754 = vand.u32 %v2646, 2139095040
    %v2755 = vshrl.u32 %v2754, 23
    %v2756 = vsub.s32 %v2755, 127
    %v2757 = vand.u32 2147483647, %v2646
    %v2758 = vand.u32 %v2757, 8388607
    %v2759 = vor.u32 %v2758, 8388608
    %v2760 = vsub.s32 0, %v2759
    %v2761 = vadd.s32 %v2756, 1
    %vm2762 = vcmp.gt.s32.totalorder %v2761, 0
    %v2763 = vsel %vm2762, %v2761, 0
    %v2764 = vshrl.u32 %v2763, 5
    %v2765 = vand.u32 %v2763, 31
    %v2766 = vsub.s32 32, %v2765
    %v2767 = vshrl.u32 683565275, %v2766
    %v2768 = vshll.u32 683565275, %v2765
    %v2769 = vshrl.u32 2475754826, %v2766
    %v2770 = vor.u32 %v2768, %v2769
    %v2771 = vshll.u32 2475754826, %v2765
    %v2772 = vshrl.u32 2131351028, %v2766
    %v2773 = vor.u32 %v2771, %v2772
    %v2774 = vshll.u32 2131351028, %v2765
    %v2775 = vshrl.u32 2102212464, %v2766
    %v2776 = vor.u32 %v2774, %v2775
    %v2777 = vshll.u32 2102212464, %v2765
    %v2778 = vshrl.u32 920167782, %v2766
    %v2779 = vor.u32 %v2777, %v2778
    %v2780 = vshll.u32 920167782, %v2765
    %v2781 = vshrl.u32 1326507024, %v2766
    %v2782 = vor.u32 %v2780, %v2781
    %vm2783 = vcmp.lt.s32.totalorder %v2764, 1
    %vm2784 = vcmp.lt.s32.totalorder %v2764, 2
    %vm2785 = vcmp.lt.s32.totalorder %v2764, 3
    %vm2786 = vcmp.lt.s32.totalorder %v2764, 4
    %v2787 = vsel %vm2783, %v2767, %v2770
    %v2788 = vsel %vm2786, %v2776, 2102212464
    %v2789 = vsel %vm2785, %v2773, %v2788
    %v2790 = vsel %vm2784, %v2787, %v2789
    %v2791 = vsel %vm2783, %v2770, %v2773
    %v2792 = vsel %vm2786, %v2779, 920167782
    %v2793 = vsel %vm2785, %v2776, %v2792
    %v2794 = vsel %vm2784, %v2791, %v2793
    %v2795 = vsel %vm2783, %v2773, %v2776
    %v2796 = vsel %vm2786, %v2782, 1326507024
    %v2797 = vsel %vm2785, %v2779, %v2796
    %v2798 = vsel %vm2784, %v2795, %v2797
    %v2799 = vshll.u32 %v2759, 8
    %v2800 = vmul.u32.u64.compose %v2799, %v2798
    %v2801 = vextract.low.u32 %v2800
    %v2802 = vextract.high.u32 %v2800
    %v2803 = vmul.u32.u64.compose %v2799, %v2794
    %v2804 = vextract.low.u32 %v2803
    %v2805 = vextract.high.u32 %v2803
    %v2806 = vmul.u32 %v2799, %v2790
    %v2807 = vadd.s32 %v2802, %v2804
    %vm2808 = vc.u32 %v2802, %v2804
    %v2809 = vadd.s32 %v2805, 1
    %v2810 = vsel %vm2808, %v2809, %v2805
    %v2811 = vadd.s32 %v2806, %v2810
    %v2812 = vadd.s32 %v2811, 536870912
    %v2813 = vshrl.u32 %v2812, 30
    %v2814 = vshll.u32 %v2813, 30
    %v2815 = vsub.s32 %v2811, %v2814
    %vm2816 = vcmp.lt.s32.totalorder %v2815, 0
    %v2817 = vsub.s32 0, %v2815
    %v2818 = vsel %vm2816, %v2817, %v2815
    %v2819 = vclz %v2818
    %v2820 = vsub.s32 %v2819, 2
    %vm2821 = vcmp.gt.s32.totalorder 0, %v2820
    %v2822 = vsel %vm2821, 0, %v2820
    %v2823 = vsub.s32 32, %v2822
    %v2824 = vshll.u32 %v2815, %v2822
    %v2825 = vshrl.u32 %v2807, %v2823
    %v2826 = vor.u32 %v2824, %v2825
    %v2827 = vsub.s32 4294967266, %v2822
    %v2828 = vadd.s32 %v2827, 127
    %v2829 = vshll.u32 %v2828, 23
    %v2830 = vor.u32 4788187, %v2829
    %v2831 = vand.u32 2147483647, %v2830
    %v2833 = vcvt.s32.f32 %v2826
    %v2834 = vmul.f32 %v2833, %v2831
    %v2835 = vxor.u32 %v2834, 2147483648
    %v2836 = vsel %vm2753, %v2835, %v2834
    %v2837 = vsub.s32 4, %v2813
    %v2838 = vsel %vm2753, %v2837, %v2813
    %v2839 = vsel %vm2752, %v2646, %v2836
    %v2840 = vsel %vm2752, 0, %v2838
    %v2841 = vcosq.f32.pop %v2839
    %v2842 = vsinq.f32.pop %v2839
    %vm2843 = vweird.f32 %v2646
    %v2844 = vand.u32 %v2840, 3
    %vm2845 = vcmp.lt.s32.totalorder %v2844, 2
    %vm2846 = vcmp.eq.s32.totalorder %v2844, 0
    %v2847 = vxor.u32 %v2842, 2147483648
    %v2848 = vsel %vm2846, %v2841, %v2847
    %vm2849 = vcmp.eq.s32.totalorder %v2844, 2
    %v2850 = vxor.u32 %v2841, 2147483648
    %v2851 = vsel %vm2849, %v2850, %v2842
    %v2852 = vsel %vm2845, %v2848, %v2851
    %v2853 = vsel %vm2843, nan, %v2852
    %v2854 = vmul.f32 %v38, 6.2831855
    %v2855 = vand.u32 2147483647, %v2854
    %vm2856 = vcmp.le.f32.partialorder %v2855, 0.7853982
    %vm2857 = vcmp.lt.s32.totalorder %v2854, 0
    %v2858 = vand.u32 %v2854, 2139095040
    %v2859 = vshrl.u32 %v2858, 23
    %v2860 = vsub.s32 %v2859, 127
    %v2861 = vand.u32 2147483647, %v2854
    %v2862 = vand.u32 %v2861, 8388607
    %v2863 = vor.u32 %v2862, 8388608
    %v2864 = vsub.s32 0, %v2863
    %v2865 = vadd.s32 %v2860, 1
    %vm2866 = vcmp.gt.s32.totalorder %v2865, 0
    %v2867 = vsel %vm2866, %v2865, 0
    %v2868 = vshrl.u32 %v2867, 5
    %v2869 = vand.u32 %v2867, 31
    %v2870 = vsub.s32 32, %v2869
    %v2871 = vshrl.u32 683565275, %v2870
    %v2872 = vshll.u32 683565275, %v2869
    %v2873 = vshrl.u32 2475754826, %v2870
    %v2874 = vor.u32 %v2872, %v2873
    %v2875 = vshll.u32 2475754826, %v2869
    %v2876 = vshrl.u32 2131351028, %v2870
    %v2877 = vor.u32 %v2875, %v2876
    %v2878 = vshll.u32 2131351028, %v2869
    %v2879 = vshrl.u32 2102212464, %v2870
    %v2880 = vor.u32 %v2878, %v2879
    %v2881 = vshll.u32 2102212464, %v2869
    %v2882 = vshrl.u32 920167782, %v2870
    %v2883 = vor.u32 %v2881, %v2882
    %v2884 = vshll.u32 920167782, %v2869
    %v2885 = vshrl.u32 1326507024, %v2870
    %v2886 = vor.u32 %v2884, %v2885
    %vm2887 = vcmp.lt.s32.totalorder %v2868, 1
    %vm2888 = vcmp.lt.s32.totalorder %v2868, 2
    %vm2889 = vcmp.lt.s32.totalorder %v2868, 3
    %vm2890 = vcmp.lt.s32.totalorder %v2868, 4
    %v2891 = vsel %vm2887, %v2871, %v2874
    %v2892 = vsel %vm2890, %v2880, 2102212464
    %v2893 = vsel %vm2889, %v2877, %v2892
    %v2894 = vsel %vm2888, %v2891, %v2893
    %v2895 = vsel %vm2887, %v2874, %v2877
    %v2896 = vsel %vm2890, %v2883, 920167782
    %v2897 = vsel %vm2889, %v2880, %v2896
    %v2898 = vsel %vm2888, %v2895, %v2897
    %v2899 = vsel %vm2887, %v2877, %v2880
    %v2900 = vsel %vm2890, %v2886, 1326507024
    %v2901 = vsel %vm2889, %v2883, %v2900
    %v2902 = vsel %vm2888, %v2899, %v2901
    %v2903 = vshll.u32 %v2863, 8
    %v2904 = vmul.u32.u64.compose %v2903, %v2902
    %v2905 = vextract.low.u32 %v2904
    %v2906 = vextract.high.u32 %v2904
    %v2907 = vmul.u32.u64.compose %v2903, %v2898
    %v2908 = vextract.low.u32 %v2907
    %v2909 = vextract.high.u32 %v2907
    %v2910 = vmul.u32 %v2903, %v2894
    %v2911 = vadd.s32 %v2906, %v2908
    %vm2912 = vc.u32 %v2906, %v2908
    %v2913 = vadd.s32 %v2909, 1
    %v2914 = vsel %vm2912, %v2913, %v2909
    %v2915 = vadd.s32 %v2910, %v2914
    %v2916 = vadd.s32 %v2915, 536870912
    %v2917 = vshrl.u32 %v2916, 30
    %v2918 = vshll.u32 %v2917, 30
    %v2919 = vsub.s32 %v2915, %v2918
    %vm2920 = vcmp.lt.s32.totalorder %v2919, 0
    %v2921 = vsub.s32 0, %v2919
    %v2922 = vsel %vm2920, %v2921, %v2919
    %v2923 = vclz %v2922
    %v2924 = vsub.s32 %v2923, 2
    %vm2925 = vcmp.gt.s32.totalorder 0, %v2924
    %v2926 = vsel %vm2925, 0, %v2924
    %v2927 = vsub.s32 32, %v2926
    %v2928 = vshll.u32 %v2919, %v2926
    %v2929 = vshrl.u32 %v2911, %v2927
    %v2930 = vor.u32 %v2928, %v2929
    %v2931 = vsub.s32 4294967266, %v2926
    %v2932 = vadd.s32 %v2931, 127
    %v2933 = vshll.u32 %v2932, 23
    %v2934 = vor.u32 4788187, %v2933
    %v2935 = vand.u32 2147483647, %v2934
    %v2937 = vcvt.s32.f32 %v2930
    %v2938 = vmul.f32 %v2937, %v2935
    %v2939 = vxor.u32 %v2938, 2147483648
    %v2940 = vsel %vm2857, %v2939, %v2938
    %v2941 = vsub.s32 4, %v2917
    %v2942 = vsel %vm2857, %v2941, %v2917
    %v2943 = vsel %vm2856, %v2854, %v2940
    %v2944 = vsel %vm2856, 0, %v2942
    %v2945 = vcosq.f32.pop %v2943
    %v2946 = vsinq.f32.pop %v2943
    %vm2947 = vweird.f32 %v2854
    %v2948 = vadd.s32 %v2944, 3
    %v2949 = vand.u32 %v2948, 3
    %vm2950 = vcmp.lt.s32.totalorder %v2949, 2
    %vm2951 = vcmp.eq.s32.totalorder %v2949, 0
    %v2952 = vxor.u32 %v2946, 2147483648
    %v2953 = vsel %vm2951, %v2945, %v2952
    %vm2954 = vcmp.eq.s32.totalorder %v2949, 2
    %v2955 = vxor.u32 %v2945, 2147483648
    %v2956 = vsel %vm2954, %v2955, %v2946
    %v2957 = vsel %vm2950, %v2953, %v2956
    %v2958 = vsel %vm2947, nan, %v2957
    %v2959 = vand.u32 2147483647, %v2854
    %vm2960 = vcmp.le.f32.partialorder %v2959, 0.7853982
    %vm2961 = vcmp.lt.s32.totalorder %v2854, 0
    %v2962 = vand.u32 %v2854, 2139095040
    %v2963 = vshrl.u32 %v2962, 23
    %v2964 = vsub.s32 %v2963, 127
    %v2965 = vand.u32 2147483647, %v2854
    %v2966 = vand.u32 %v2965, 8388607
    %v2967 = vor.u32 %v2966, 8388608
    %v2968 = vsub.s32 0, %v2967
    %v2969 = vadd.s32 %v2964, 1
    %vm2970 = vcmp.gt.s32.totalorder %v2969, 0
    %v2971 = vsel %vm2970, %v2969, 0
    %v2972 = vshrl.u32 %v2971, 5
    %v2973 = vand.u32 %v2971, 31
    %v2974 = vsub.s32 32, %v2973
    %v2975 = vshrl.u32 683565275, %v2974
    %v2976 = vshll.u32 683565275, %v2973
    %v2977 = vshrl.u32 2475754826, %v2974
    %v2978 = vor.u32 %v2976, %v2977
    %v2979 = vshll.u32 2475754826, %v2973
    %v2980 = vshrl.u32 2131351028, %v2974
    %v2981 = vor.u32 %v2979, %v2980
    %v2982 = vshll.u32 2131351028, %v2973
    %v2983 = vshrl.u32 2102212464, %v2974
    %v2984 = vor.u32 %v2982, %v2983
    %v2985 = vshll.u32 2102212464, %v2973
    %v2986 = vshrl.u32 920167782, %v2974
    %v2987 = vor.u32 %v2985, %v2986
    %v2988 = vshll.u32 920167782, %v2973
    %v2989 = vshrl.u32 1326507024, %v2974
    %v2990 = vor.u32 %v2988, %v2989
    %vm2991 = vcmp.lt.s32.totalorder %v2972, 1
    %vm2992 = vcmp.lt.s32.totalorder %v2972, 2
    %vm2993 = vcmp.lt.s32.totalorder %v2972, 3
    %vm2994 = vcmp.lt.s32.totalorder %v2972, 4
    %v2995 = vsel %vm2991, %v2975, %v2978
    %v2996 = vsel %vm2994, %v2984, 2102212464
    %v2997 = vsel %vm2993, %v2981, %v2996
    %v2998 = vsel %vm2992, %v2995, %v2997
    %v2999 = vsel %vm2991, %v2978, %v2981
    %v3000 = vsel %vm2994, %v2987, 920167782
    %v3001 = vsel %vm2993, %v2984, %v3000
    %v3002 = vsel %vm2992, %v2999, %v3001
    %v3003 = vsel %vm2991, %v2981, %v2984
    %v3004 = vsel %vm2994, %v2990, 1326507024
    %v3005 = vsel %vm2993, %v2987, %v3004
    %v3006 = vsel %vm2992, %v3003, %v3005
    %v3007 = vshll.u32 %v2967, 8
    %v3008 = vmul.u32.u64.compose %v3007, %v3006
    %v3009 = vextract.low.u32 %v3008
    %v3010 = vextract.high.u32 %v3008
    %v3011 = vmul.u32.u64.compose %v3007, %v3002
    %v3012 = vextract.low.u32 %v3011
    %v3013 = vextract.high.u32 %v3011
    %v3014 = vmul.u32 %v3007, %v2998
    %v3015 = vadd.s32 %v3010, %v3012
    %vm3016 = vc.u32 %v3010, %v3012
    %v3017 = vadd.s32 %v3013, 1
    %v3018 = vsel %vm3016, %v3017, %v3013
    %v3019 = vadd.s32 %v3014, %v3018
    %v3020 = vadd.s32 %v3019, 536870912
    %v3021 = vshrl.u32 %v3020, 30
    %v3022 = vshll.u32 %v3021, 30
    %v3023 = vsub.s32 %v3019, %v3022
    %vm3024 = vcmp.lt.s32.totalorder %v3023, 0
    %v3025 = vsub.s32 0, %v3023
    %v3026 = vsel %vm3024, %v3025, %v3023
    %v3027 = vclz %v3026
    %v3028 = vsub.s32 %v3027, 2
    %vm3029 = vcmp.gt.s32.totalorder 0, %v3028
    %v3030 = vsel %vm3029, 0, %v3028
    %v3031 = vsub.s32 32, %v3030
    %v3032 = vshll.u32 %v3023, %v3030
    %v3033 = vshrl.u32 %v3015, %v3031
    %v3034 = vor.u32 %v3032, %v3033
    %v3035 = vsub.s32 4294967266, %v3030
    %v3036 = vadd.s32 %v3035, 127
    %v3037 = vshll.u32 %v3036, 23
    %v3038 = vor.u32 4788187, %v3037
    %v3039 = vand.u32 2147483647, %v3038
    %v3041 = vcvt.s32.f32 %v3034
    %v3042 = vmul.f32 %v3041, %v3039
    %v3043 = vxor.u32 %v3042, 2147483648
    %v3044 = vsel %vm2961, %v3043, %v3042
    %v3045 = vsub.s32 4, %v3021
    %v3046 = vsel %vm2961, %v3045, %v3021
    %v3047 = vsel %vm2960, %v2854, %v3044
    %v3048 = vsel %vm2960, 0, %v3046
    %v3049 = vcosq.f32.pop %v3047
    %v3050 = vsinq.f32.pop %v3047
    %vm3051 = vweird.f32 %v2854
    %v3052 = vand.u32 %v3048, 3
    %vm3053 = vcmp.lt.s32.totalorder %v3052, 2
    %vm3054 = vcmp.eq.s32.totalorder %v3052, 0
    %v3055 = vxor.u32 %v3050, 2147483648
    %v3056 = vsel %vm3054, %v3049, %v3055
    %vm3057 = vcmp.eq.s32.totalorder %v3052, 2
    %v3058 = vxor.u32 %v3049, 2147483648
    %v3059 = vsel %vm3057, %v3058, %v3050
    %v3060 = vsel %vm3053, %v3056, %v3059
    %v3061 = vsel %vm3051, nan, %v3060
    %v3062 = vmul.f32 %v40, %v40
    %v3063 = vmul.f32 %v3061, %v2750
    %v3064 = vmul.f32 %v3063, -83.89164
    %v3065 = vmul.f32 %v3062, %v40
    %v3066 = vmul.f32 %v3065, %v2645
    %v3067 = vmul.f32 %v3066, 18.849556
    %v3068 = vadd.f32 %v3064, %v3067
    %v3069 = vmul.f32 %v2853, %v2958
    %v3070 = vmul.f32 %v3069, -29.608812
    %v3071 = vmul.f32 %v3062, 24.0
    %v3072 = vmul.f32 %v3062, %v3062
    %v3073 = vmul.f32 %v3072, -4.934802
    %v3074 = vadd.f32 %v3071, %v3073
    %v3075 = vmul.f32 %v3074, %v2542
    %v3076 = vadd.f32 %v3070, %v3075
    %v3077 = vmul.f32 %v2412, 2.0
    %v3078 = vmul.f32 %v2413, 2.0
    %v3081 = vrot.slane %v2414, 1
    %v3082 = vrot.slane %v2415, 1
    %v3085 = vadd.f32 %v3077, %v3081
    %v3086 = vadd.f32 %v3078, %v3082
    %v3087 = vmul.f32 %v2414, 2.0
    %v3088 = vmul.f32 %v2415, 2.0
    %v3091 = vrot.slane %v2412, 7
    %v3092 = vrot.slane %v2413, 7
    %v3095 = vadd.f32 %v3087, %v3091
    %v3096 = vadd.f32 %v3088, %v3092
    %v3097 = vrot.slane %v2412, 1
    %v3098 = vrot.slane %v2413, 1
    %v3101 = vmul.f32 %v2414, %v3097
    %v3102 = vmul.f32 %v2415, %v3098
    %v3103 = vmul.f32 %v3101, 0.5
    %v3104 = vmul.f32 %v3102, 0.5
    %v3105 = vmul.f32 %v2422, 2.0
    %v3106 = vmul.f32 %v2423, 2.0
    %v3109 = vrot.slane %v2428, 1
    %v3110 = vrot.slane %v2429, 1
    %v3113 = vadd.f32 %v3105, %v3109
    %v3114 = vadd.f32 %v3106, %v3110
    %v3115 = vmul.f32 %v2436, %v3097
    %v3116 = vmul.f32 %v2437, %v3098
    %v3117 = vmul.f32 %v2414, %v3109
    %v3118 = vmul.f32 %v2415, %v3110
    %v3119 = vadd.f32 %v3115, %v3117
    %v3120 = vadd.f32 %v3116, %v3118
    %v3121 = vmul.f32 %v3119, 0.5
    %v3122 = vmul.f32 %v3120, 0.5
    %v3123 = vadd.f32 %v3113, %v3121
    %v3124 = vadd.f32 %v3114, %v3122
    %v3126 = vlaneseq
    %v3127 = vshrl.u32 %v3126, 7
    %v3128 = vsub.s32 0, %v3127
    %v3129 = vrot.slane %v3068, %v3128
    %v3130 = vlaneseq
    %v3131 = vshrl.u32 %v3130, 7
    %v3132 = vsub.s32 1, %v3131
    %v3133 = vrot.slane %v3068, %v3132
    %v3136 = vsub.f32 %v3123, %v3129
    %v3137 = vsub.f32 %v3124, %v3133
    %v3138 = vmul.f32 %v2428, %v3097
    %v3139 = vmul.f32 %v2429, %v3098
    %v3142 = vrot.slane %v2422, 1
    %v3143 = vrot.slane %v2423, 1
    %v3146 = vmul.f32 %v2414, %v3142
    %v3147 = vmul.f32 %v2415, %v3143
    %v3148 = vadd.f32 %v3138, %v3146
    %v3149 = vadd.f32 %v3139, %v3147
    %v3150 = vmul.f32 %v3148, 0.5
    %v3151 = vmul.f32 %v3149, 0.5
    %v3152 = vmul.f32 %v2436, 2.0
    %v3153 = vmul.f32 %v2437, 2.0
    %v3154 = vrot.slane %v2428, 7
    %v3155 = vrot.slane %v2429, 7
    %v3158 = vadd.f32 %v3152, %v3154
    %v3159 = vadd.f32 %v3153, %v3155
    %v3162 = vrot.slane %v3158, 1
    %v3163 = vrot.slane %v3159, 1
    %v3166 = vadd.f32 %v3150, %v3162
    %v3167 = vadd.f32 %v3151, %v3163
    %v3169 = vlaneseq
    %v3170 = vshrl.u32 %v3169, 7
    %v3171 = vsub.s32 0, %v3170
    %v3172 = vrot.slane %v3076, %v3171
    %v3173 = vlaneseq
    %v3174 = vshrl.u32 %v3173, 7
    %v3175 = vsub.s32 1, %v3174
    %v3176 = vrot.slane %v3076, %v3175
    %v3179 = vsub.f32 %v3166, %v3172
    %v3180 = vsub.f32 %v3167, %v3176
    %vm3181 = vcmp.eq.f32.partialorder %v38, 0.0
    %vm3182 = vcmp.eq.f32.partialorder %v38, 1.0
    %vm3183 = vcmp.eq.f32.partialorder %v40, 0.0
    %vm3184 = vcmp.eq.f32.partialorder %v40, 1.0
    %v3187 = vcombine.low %v3136, %v3137
    %v3189 = vunpack.c.l.s4 1966171168
    %v3190 = vunpack.c.0.s8 %v3189
    %v3191 = vlaneseq
    %v3192 = vshrl.u32 %v3191, 7
    %v3193 = vsub.s32 %v3190, %v3192
    %v3194 = vrot.slane %v3187, %v3193
    %v3196 = vunpack.c.l.s4 1966171168
    %v3197 = vunpack.c.0.s8 %v3196
    %v3198 = vlaneseq
    %v3199 = vshrl.u32 %v3198, 7
    %v3200 = vsub.s32 %v3197, %v3199
    %v3201 = vrot.slane %v3194, %v3200
    %v3203 = vlaneseq
    %vm3204 = vcmp.ge.s32.totalorder %v3203, 0
    %vm3205 = vcmp.lt.s32.totalorder %v3203, 256
    %vm3206 = vmand %vm3204, %vm3205
    %3207 = vst.msk [vmem:[#allocation8] ss:$8 sm:$0x3] %vm3206, %v3201
    %3208 = vst.msk [vmem:[#allocation8] ss:$8 sm:$0x0] %vm3206, %v3201
    %v3211 = vcombine.low %v3179, %v3180
    %v3213 = vunpack.c.l.s4 1966171168
    %v3214 = vunpack.c.0.s8 %v3213
    %v3215 = vlaneseq
    %v3216 = vshrl.u32 %v3215, 7
    %v3217 = vsub.s32 %v3214, %v3216
    %v3218 = vrot.slane %v3211, %v3217
    %v3220 = vunpack.c.l.s4 1966171168
    %v3221 = vunpack.c.0.s8 %v3220
    %v3222 = vlaneseq
    %v3223 = vshrl.u32 %v3222, 7
    %v3224 = vsub.s32 %v3221, %v3223
    %v3225 = vrot.slane %v3218, %v3224
    %s3227 = scalar_lea.vmem [#allocation8], 1
    %3228 = vst.msk [vmem:[%s3227] ss:$8 sm:$0x3] %vm3206, %v3225
    %3229 = vst.msk [vmem:[%s3227] ss:$8 sm:$0x0] %vm3206, %v3225
    %v3232 = vcombine.low %v3085, %v3086
    %v3234 = vunpack.c.l.s4 1966171168
    %v3235 = vunpack.c.0.s8 %v3234
    %v3236 = vlaneseq
    %v3237 = vshrl.u32 %v3236, 7
    %v3238 = vsub.s32 %v3235, %v3237
    %v3239 = vrot.slane %v3232, %v3238
    %v3241 = vunpack.c.l.s4 1966171168
    %v3242 = vunpack.c.0.s8 %v3241
    %v3243 = vlaneseq
    %v3244 = vshrl.u32 %v3243, 7
    %v3245 = vsub.s32 %v3242, %v3244
    %v3246 = vrot.slane %v3239, %v3245
    %s3248 = scalar_lea.vmem [#allocation8], 2
    %3249 = vst.msk [vmem:[%s3248] ss:$8 sm:$0x3] %vm3206, %v3246
    %3250 = vst.msk [vmem:[%s3248] ss:$8 sm:$0x0] %vm3206, %v3246
    %v3253 = vcombine.low %v3095, %v3096
    %v3255 = vunpack.c.l.s4 1966171168
    %v3256 = vunpack.c.0.s8 %v3255
    %v3257 = vlaneseq
    %v3258 = vshrl.u32 %v3257, 7
    %v3259 = vsub.s32 %v3256, %v3258
    %v3260 = vrot.slane %v3253, %v3259
    %v3261 = vcombine.high %v3260, %v3260
    %v3263 = vunpack.c.l.s4 1966171168
    %v3264 = vunpack.c.0.s8 %v3263
    %v3265 = vlaneseq
    %v3266 = vshrl.u32 %v3265, 7
    %v3267 = vsub.s32 %v3264, %v3266
    %v3268 = vrot.slane %v3261, %v3267
    %s3270 = scalar_lea.vmem [#allocation8], 3
    %3271 = vst.msk [vmem:[%s3270] ss:$8 sm:$0x3] %vm3206, %v3268
    %3272 = vst.msk [vmem:[%s3270] ss:$8 sm:$0x0] %vm3206, %v3268
    %v3275 = vcombine.low %v3103, %v3104
    %v3277 = vunpack.c.l.s4 1966171168
    %v3278 = vunpack.c.0.s8 %v3277
    %v3279 = vlaneseq
    %v3280 = vshrl.u32 %v3279, 7
    %v3281 = vsub.s32 %v3278, %v3280
    %v3282 = vrot.slane %v3275, %v3281
    %v3284 = vunpack.c.l.s4 1966171168
    %v3285 = vunpack.c.0.s8 %v3284
    %v3286 = vlaneseq
    %v3287 = vshrl.u32 %v3286, 7
    %v3288 = vsub.s32 %v3285, %v3287
    %v3289 = vrot.slane %v3282, %v3288
    %s3291 = scalar_lea.vmem [#allocation8], 4
    %3292 = vst.msk [vmem:[%s3291] ss:$8 sm:$0x3] %vm3206, %v3289
    %3293 = vst.msk [vmem:[%s3291] ss:$8 sm:$0x0] %vm3206, %v3289
    %v3296 = vcombine.low %v2402, %v2403
    %v3298 = vunpack.c.l.s4 1966171168
    %v3299 = vunpack.c.0.s8 %v3298
    %v3300 = vlaneseq
    %v3301 = vshrl.u32 %v3300, 7
    %v3302 = vsub.s32 %v3299, %v3301
    %v3303 = vrot.slane %v3296, %v3302
    %v3304 = vcombine.high %v3303, %v3303
    %v3306 = vunpack.c.l.s4 1966171168
    %v3307 = vunpack.c.0.s8 %v3306
    %v3308 = vlaneseq
    %v3309 = vshrl.u32 %v3308, 7
    %v3310 = vsub.s32 %v3307, %v3309
    %v3311 = vrot.slane %v3304, %v3310
    %v3313 = vsel %vm3181, %v3311, 0.0
    %s3314 = scalar_lea.vmem [#allocation8], 5
    %3315 = vst.msk [vmem:[%s3314] ss:$8 sm:$0x3] %vm3206, %v3313
    %3316 = vst.msk [vmem:[%s3314] ss:$8 sm:$0x0] %vm3206, %v3313
    %v3317 = vsel %vm3181, %v3246, 0.0
    %s3318 = scalar_lea.vmem [#allocation8], 6
    %3319 = vst.msk [vmem:[%s3318] ss:$8 sm:$0x3] %vm3206, %v3317
    %3320 = vst.msk [vmem:[%s3318] ss:$8 sm:$0x0] %vm3206, %v3317
    %v3321 = vsel %vm3182, %v3311, 0.0
    %s3322 = scalar_lea.vmem [#allocation8], 7
    %3323 = vst.msk [vmem:[%s3322] ss:$8 sm:$0x3] %vm3206, %v3321
    %3324 = vst.msk [vmem:[%s3322] ss:$8 sm:$0x0] %vm3206, %v3321
    %v3325 = vsel %vm3182, %v3246, 0.0
    %s3326 = scalar_lea.vmem [#allocation8], 16
    %3327 = vst.msk [vmem:[%s3326] ss:$8 sm:$0x3] %vm3206, %v3325
    %3328 = vst.msk [vmem:[%s3326] ss:$8 sm:$0x0] %vm3206, %v3325
    %v3330 = vunpack.c.l.s4 1966171168
    %v3331 = vunpack.c.0.s8 %v3330
    %v3332 = vlaneseq
    %v3333 = vshrl.u32 %v3332, 7
    %v3334 = vsub.s32 %v3331, %v3333
    %v3335 = vrot.slane %v3303, %v3334
    %v3337 = vsel %vm3183, %v3335, 0.0
    %s3338 = scalar_lea.vmem [#allocation8], 17
    %3339 = vst.msk [vmem:[%s3338] ss:$8 sm:$0x3] %vm3206, %v3337
    %3340 = vst.msk [vmem:[%s3338] ss:$8 sm:$0x0] %vm3206, %v3337
    %v3341 = vsel %vm3183, %v3311, 0.0
    %s3342 = scalar_lea.vmem [#allocation8], 18
    %3343 = vst.msk [vmem:[%s3342] ss:$8 sm:$0x3] %vm3206, %v3341
    %3344 = vst.msk [vmem:[%s3342] ss:$8 sm:$0x0] %vm3206, %v3341
    %v3345 = vsel %vm3184, %v3335, 0.0
    %s3346 = scalar_lea.vmem [#allocation8], 19
    %3347 = vst.msk [vmem:[%s3346] ss:$8 sm:$0x3] %vm3206, %v3345
    %3348 = vst.msk [vmem:[%s3346] ss:$8 sm:$0x0] %vm3206, %v3345
    %v3349 = vmul.f32 %v2542, 8.0
    %v3351 = vlaneseq
    %v3352 = vshrl.u32 %v3351, 7
    %v3353 = vsub.s32 0, %v3352
    %v3354 = vrot.slane %v3349, %v3353
    %v3355 = vlaneseq
    %v3356 = vshrl.u32 %v3355, 7
    %v3357 = vsub.s32 1, %v3356
    %v3358 = vrot.slane %v3349, %v3357
    %v3361 = vsub.f32 %v3095, %v3354
    %v3362 = vsub.f32 %v3096, %v3358
    %v3365 = vcombine.low %v3361, %v3362
    %v3367 = vunpack.c.l.s4 1966171168
    %v3368 = vunpack.c.0.s8 %v3367
    %v3369 = vlaneseq
    %v3370 = vshrl.u32 %v3369, 7
    %v3371 = vsub.s32 %v3368, %v3370
    %v3372 = vrot.slane %v3365, %v3371
    %v3373 = vcombine.high %v3372, %v3372
    %v3375 = vunpack.c.l.s4 1966171168
    %v3376 = vunpack.c.0.s8 %v3375
    %v3377 = vlaneseq
    %v3378 = vshrl.u32 %v3377, 7
    %v3379 = vsub.s32 %v3376, %v3378
    %v3380 = vrot.slane %v3373, %v3379
    %v3382 = vsel %vm3184, %v3380, 0.0
    %s3383 = scalar_lea.vmem [#allocation8], 20
    %3384 = vst.msk [vmem:[%s3383] ss:$8 sm:$0x3] %vm3206, %v3382
    %3385 = vst.msk [vmem:[%s3383] ss:$8 sm:$0x0] %vm3206, %v3382
    // Predicated region
    $region18: #{tpu_custom_call.1} parent=1 // pred_check
      _
    $region19: #{tpu_custom_call.1} parent=1 // pred_check_branch
      %3387 = sbr.rel (0) target = $region21
    $region20: #{tpu_custom_call.1} parent=1 // pred_region
      %s3389 = ssub.s32 512, 512
      %3390 = vsyncadd [#allocation5], %s3389
      %s3391 = sshll.u32 [#allocation8], 4
      %s3392 = int_to_ptr.vmem [resolvable:$true] %s3391
      %3397 = dma.vmem_to_hbm [thread:$0]  %s3392, 512, %s2, [#allocation5], 256, 256, 16
    $region21: #{tpu_custom_call.1} parent=1 // pred_fallthru
      _
    // Predicated region
    $region22: #{tpu_custom_call.1} parent=1 // pred_check
      _
    $region23: #{tpu_custom_call.1} parent=1 // pred_check_branch
      %3399 = sbr.rel (0) target = $region25
    $region24: #{tpu_custom_call.1} parent=1 // pred_region
      %3400 = dma.done [#allocation5], 512
    $region25: #{tpu_custom_call.1} parent=1 // pred_fallthru
      _
    %3401 = vsyncpa [#allocation4], 1
    %3402 = vsyncpa [#allocation7], 1
    %3403 = vsyncpa [#allocation5], 1

</llo_original>
